<compile_context>
chip_gen: v7x
topology: tpu7x:2x2x1
jax: 0.10.0
libtpu: 0.0.40
codegen_flags: <defaults>
</compile_context>

<pallas_src>
import functools

import jax
import jax.numpy as jnp
from jax.experimental import pallas as pl
from jax.experimental.pallas import tpu as pltpu

LANE = 128


def _round_up(x, m):
    return (x + m - 1) // m * m


# ----------------------------------------------------------------------------
# Pallas kernels
# ----------------------------------------------------------------------------
def _conv_stats_kernel(pat_ref, w_ref, b_ref, y_ref, sum_ref, sq_ref):
    """One M-tile of the im2col matmul + per-block BN partial statistics.

    pat_ref : (TILE_M, KKC_pad)  bf16 im2col patches
    w_ref   : (KKC_pad, C_pad)   bf16 conv weight matrix
    b_ref   : (1, C_pad)         f32 conv bias
    y_ref   : (TILE_M, C_pad)    f32 conv output
    sum_ref : (1, 1, C_pad)      f32 per-block channel sum
    sq_ref  : (1, 1, C_pad)      f32 per-block channel sum of squares
    """
    acc = jnp.dot(pat_ref[...], w_ref[...], preferred_element_type=jnp.float32)
    acc = acc + b_ref[...]                       # (1, C_pad) broadcast over rows
    y_ref[...] = acc
    # exactly one extra VPU mul per element (acc*acc); reductions go to the XLU
    sum_ref[0] = jnp.sum(acc, axis=0, keepdims=True)
    sq_ref[0] = jnp.sum(acc * acc, axis=0, keepdims=True)


def _affine_kernel(y_ref, scale_ref, shift_ref, o_ref):
    """Fused BatchNorm affine + TEBN per-time-step scale (elementwise).

    y_ref     : (g, HW, C_pad)
    scale_ref : (g, 1,  C_pad)
    shift_ref : (g, 1,  C_pad)
    """
    o_ref[...] = y_ref[...] * scale_ref[...] + shift_ref[...]


# ----------------------------------------------------------------------------
# pallas_call wrappers
# ----------------------------------------------------------------------------
def _conv_and_stats(patches, w_mat, bias, tile_m):
    m_total, kkc_pad = patches.shape
    c_pad = w_mat.shape[1]
    num_blocks = m_total // tile_m
    flops = 2 * m_total * kkc_pad * c_pad
    bytes_accessed = (patches.size * 2 + w_mat.size * 2 + bias.size * 4
                      + m_total * c_pad * 4 + 2 * num_blocks * c_pad * 4)
    y, s, sq = pl.pallas_call(
        _conv_stats_kernel,
        out_shape=(
            jax.ShapeDtypeStruct((m_total, c_pad), jnp.float32),
            jax.ShapeDtypeStruct((num_blocks, 1, c_pad), jnp.float32),
            jax.ShapeDtypeStruct((num_blocks, 1, c_pad), jnp.float32),
        ),
        grid=(num_blocks,),
        in_specs=[
            pl.BlockSpec((tile_m, kkc_pad), lambda i: (i, 0)),
            pl.BlockSpec((kkc_pad, c_pad), lambda i: (0, 0)),
            pl.BlockSpec((1, c_pad), lambda i: (0, 0)),
        ],
        out_specs=(
            pl.BlockSpec((tile_m, c_pad), lambda i: (i, 0)),
            pl.BlockSpec((1, 1, c_pad), lambda i: (i, 0, 0)),   # per-block partial
            pl.BlockSpec((1, 1, c_pad), lambda i: (i, 0, 0)),   # per-block partial
        ),
        compiler_params=pltpu.CompilerParams(
            dimension_semantics=("parallel",)),
        cost_estimate=pl.CostEstimate(
            flops=flops, transcendentals=0, bytes_accessed=bytes_accessed),
    )(patches, w_mat, bias)
    return y, s, sq


def _apply_affine(y3, scale, shift, g):
    nt, hw, c_pad = y3.shape
    num_blocks = nt // g
    bytes_accessed = 2 * nt * hw * c_pad * 4 + 2 * nt * c_pad * 4
    return pl.pallas_call(
        _affine_kernel,
        out_shape=jax.ShapeDtypeStruct((nt, hw, c_pad), jnp.float32),
        grid=(num_blocks,),
        in_specs=[
            pl.BlockSpec((g, hw, c_pad), lambda i: (i, 0, 0)),
            pl.BlockSpec((g, 1, c_pad), lambda i: (i, 0, 0)),
            pl.BlockSpec((g, 1, c_pad), lambda i: (i, 0, 0)),
        ],
        out_specs=pl.BlockSpec((g, hw, c_pad), lambda i: (i, 0, 0)),
        compiler_params=pltpu.CompilerParams(
            dimension_semantics=("parallel",)),
        cost_estimate=pl.CostEstimate(
            flops=2 * nt * hw * c_pad, transcendentals=0,
            bytes_accessed=bytes_accessed),
    )(y3, scale, shift)


# ----------------------------------------------------------------------------
# Glue: im2col + tiling choice + BN scalar math
# ----------------------------------------------------------------------------
def _im2col(x_nhwc, kh, kw, padding):
    nt, h, w, c = x_nhwc.shape
    xp = jnp.pad(x_nhwc, ((0, 0), (padding, padding), (padding, padding), (0, 0)))
    ho = h + 2 * padding - kh + 1
    wo = w + 2 * padding - kw + 1
    cols = []
    for dy in range(kh):
        for dx in range(kw):
            cols.append(xp[:, dy:dy + ho, dx:dx + wo, :])
    pat = jnp.stack(cols, axis=3)                 # [NT, Ho, Wo, KH*KW, C_in]
    return pat.reshape(nt * ho * wo, kh * kw * c), ho, wo


def _images_per_tile(nt, hw, kkc_pad, c_pad):
    """Largest divisor of nt whose M-tile fits a conservative VMEM budget."""
    row_bytes = kkc_pad * 2 + 2 * c_pad * 4       # bf16 patches + f32 y (both passes)
    budget = 6 * 1024 * 1024                      # per block; ~2x with double buffering
    best = 1
    for g in range(1, nt + 1):
        if nt % g == 0 and g * hw * row_bytes <= budget and g * hw <= 8192:
            best = g
    return best


@functools.partial(jax.jit, static_argnames=("stride", "padding", "eps"))
def tebn_layer_forward(x, params, *, stride=1, padding=1, eps=1e-5):
    """x: [N, T, C_in, H, W] float32 -> [N, T, C_out, H_out, W_out] float32."""
    assert stride == 1, "only stride=1 is implemented"
    n, t, c_in, h, w = x.shape
    conv_w = params["conv_w"]       # [C_out, C_in, KH, KW]  (PyTorch OIHW)
    conv_b = params["conv_b"]       # [C_out]
    gamma = params["bn_w"]          # [C_out]  BatchNorm3d weight
    beta = params["bn_b"]           # [C_out]  BatchNorm3d bias
    p = params["p"]                 # [T]      TEBN per-time-step scale (T==4)
    c_out, _, kh, kw = conv_w.shape

    nt = n * t
    kkc = kh * kw * c_in
    kkc_pad = _round_up(kkc, LANE)
    c_pad = _round_up(c_out, LANE)

    # NCHW -> NHWC, flatten (N, T), im2col to a single [NT*Ho*Wo, KKC] matrix.
    xf = x.reshape(nt, c_in, h, w).transpose(0, 2, 3, 1).astype(jnp.float32)
    patches, ho, wo = _im2col(xf, kh, kw, padding)
    hw = ho * wo
    m_total = nt * hw

    # Lane-dense, MXU-aligned operands: pad KKC and C_out to 128; cast the
    # matmul inputs to bf16 (f32 accumulation stays inside the kernel).
    patches = jnp.pad(patches, ((0, 0), (0, kkc_pad - kkc))).astype(jnp.bfloat16)
    w_mat = conv_w.transpose(2, 3, 1, 0).reshape(kkc, c_out)
    w_mat = jnp.pad(w_mat, ((0, kkc_pad - kkc),
                            (0, c_pad - c_out))).astype(jnp.bfloat16)
    b_mat = jnp.pad(conv_b, (0, c_pad - c_out)).reshape(1, c_pad).astype(jnp.float32)

    g = _images_per_tile(nt, hw, kkc_pad, c_pad)
    tile_m = g * hw

    # Pass 1: conv matmul + per-block partial channel sums / sum-of-squares.
    y, s_part, sq_part = _conv_and_stats(patches, w_mat, b_mat, tile_m)

    # BN scalar math on the real C_out channels only (padded channels are all
    # zero and would give var=0 -> inf inv_std if included). Training-mode
    # batch statistics, biased variance, exactly like nn.BatchNorm3d.train().
    count = m_total
    s = s_part.reshape(-1, c_pad).sum(axis=0)[:c_out]
    sq = sq_part.reshape(-1, c_pad).sum(axis=0)[:c_out]
    mean = s / count
    var = sq / count - mean * mean
    # TODO(synk): E[x^2]-E[x]^2 can cancel catastrophically at production
    # scales; switch to a shifted / two-pass variance there.
    inv_std = jax.lax.rsqrt(var + eps)
    scale_c = gamma * inv_std                       # [C_out]
    shift_c = beta - mean * scale_c                 # [C_out]

    # Fold TEBN's p[t] into the affine; padded channels stay exactly 0.
    p_i = p[jnp.arange(nt) % t]                     # [NT]
    scale_nt = jnp.pad(scale_c, (0, c_pad - c_out))[None, :] * p_i[:, None]
    shift_nt = jnp.pad(shift_c, (0, c_pad - c_out))[None, :] * p_i[:, None]
    scale_nt = scale_nt.reshape(nt, 1, c_pad).astype(jnp.float32)
    shift_nt = shift_nt.reshape(nt, 1, c_pad).astype(jnp.float32)

    # Pass 2: fused elementwise BN affine * p[t] on lane-dense tiles.
    y3 = y.reshape(nt, hw, c_pad)
    out = _apply_affine(y3, scale_nt, shift_nt, g)  # [NT, Ho*Wo, C_pad]

    # Back to PyTorch layout [N, T, C_out, H_out, W_out].
    out = out.reshape(n, t, ho, wo, c_pad)[..., :c_out]
    return out.transpose(0, 1, 4, 2, 3)


# ----------------------------------------------------------------------------
# Pure-JAX reference (mirrors the PyTorch forward) for verification
# ----------------------------------------------------------------------------
def ref_forward(x, params, *, padding=1, eps=1e-5):
    n, t, c_in, h, w = x.shape
    conv_w, conv_b = params["conv_w"], params["conv_b"]
    gamma, beta, p = params["bn_w"], params["bn_b"], params["p"]
    c_out = conv_w.shape[0]

    xf = x.reshape(n * t, c_in, h, w)
    y = jax.lax.conv_general_dilated(
        xf, conv_w, window_strides=(1, 1),
        padding=((padding, padding), (padding, padding)),
        dimension_numbers=("NCHW", "OIHW", "NCHW"))
    y = y + conv_b[None, :, None, None]
    mean = y.mean(axis=(0, 2, 3))
    var = y.var(axis=(0, 2, 3))                     # biased, like BN training
    y = (y - mean[None, :, None, None]) * jax.lax.rsqrt(var + eps)[None, :, None, None]
    y = y * gamma[None, :, None, None] + beta[None, :, None, None]
    y = y.reshape(n, t, c_out, y.shape[-2], y.shape[-1])
    return y * p[None, :, None, None, None]


# ----------------------------------------------------------------------------
if __name__ == "__main__":
    N, T, C_IN, C_OUT, H, W, K = 2, 4, 4, 8, 16, 16, 3

    key = jax.random.PRNGKey(0)
    k_x, k_w, k_b, k_g, k_be, k_p = jax.random.split(key, 6)
    x = jax.random.normal(k_x, (N, T, C_IN, H, W), jnp.float32)
    params = {
        "conv_w": 0.1 * jax.random.normal(k_w, (C_OUT, C_IN, K, K), jnp.float32),
        "conv_b": 0.1 * jax.random.normal(k_b, (C_OUT,), jnp.float32),
        "bn_w": 1.0 + 0.1 * jax.random.normal(k_g, (C_OUT,), jnp.float32),
        "bn_b": 0.1 * jax.random.normal(k_be, (C_OUT,), jnp.float32),
        "p": 1.0 + 0.1 * jax.random.normal(k_p, (T,), jnp.float32),
    }

    out = tebn_layer_forward(x, params)
    out = jax.block_until_ready(out)
    assert out.shape == (N, T, C_OUT, H, W), out.shape

    ref = ref_forward(x, params)
    # bf16 MXU inputs (f32 accumulation) -> slightly looser tolerance than f32.
    if not jnp.allclose(out, ref, rtol=2e-2, atol=2e-2):
        max_err = float(jnp.max(jnp.abs(out - ref)))
        raise AssertionError(f"Pallas output mismatch vs reference, max err {max_err}")

    print("KERNEL_OK")
</pallas_src>

<mosaic_0001>
module attributes {stable_mosaic.version = 11 : i64} {
  func.func @_conv_stats_kernel(%arg0: i32, %arg1: memref<2048x128xbf16, #tpu.memory_space<vmem>>, %arg2: memref<128x128xbf16, #tpu.memory_space<vmem>>, %arg3: memref<1x128xf32, #tpu.memory_space<vmem>>, %arg4: memref<2048x128xf32, #tpu.memory_space<vmem>>, %arg5: memref<1x1x128xf32, #tpu.memory_space<vmem>>, %arg6: memref<1x1x128xf32, #tpu.memory_space<vmem>>) attributes {dimension_semantics = [#tpu.dimension_semantics<parallel>], iteration_bounds = array<i64: 1>, scalar_prefetch = 0 : i64, scratch_operands = 0 : i64, tpu.core_type = #tpu.core_type<tc>, window_params = [{transform_indices = @transform_0, window_bounds = array<i64: 2048, 128>}, {pipeline_mode = #tpu.pipeline_mode<synchronous>, transform_indices = @transform_1, window_bounds = array<i64: 128, 128>}, {pipeline_mode = #tpu.pipeline_mode<synchronous>, transform_indices = @transform_2, window_bounds = array<i64: 1, 128>}, {transform_indices = @transform_3, window_bounds = array<i64: 2048, 128>}, {transform_indices = @transform_4, window_bounds = array<i64: 1, 1, 128>}, {transform_indices = @transform_5, window_bounds = array<i64: 1, 1, 128>}]} {
    %c0 = arith.constant 0 : index
    %c0_0 = arith.constant 0 : index
    %0 = vector.load %arg1[%c0, %c0_0] : memref<2048x128xbf16, #tpu.memory_space<vmem>>, vector<2048x128xbf16>
    %c0_1 = arith.constant 0 : index
    %c0_2 = arith.constant 0 : index
    %1 = vector.load %arg2[%c0_1, %c0_2] : memref<128x128xbf16, #tpu.memory_space<vmem>>, vector<128x128xbf16>
    %cst = arith.constant dense<0.000000e+00> : vector<2048x128xf32>
    %2 = tpu.matmul %0, %1, %cst {dimension_numbers = #tpu.dot_dimension_numbers<[1], [0], [0], [1], [0, 0, 1, 1], [], []>} : vector<2048x128xbf16>, vector<128x128xbf16>, vector<2048x128xf32> -> vector<2048x128xf32>
    %c0_3 = arith.constant 0 : index
    %c0_4 = arith.constant 0 : index
    %3 = vector.load %arg3[%c0_3, %c0_4] : memref<1x128xf32, #tpu.memory_space<vmem>>, vector<1x128xf32>
    %4 = vector.broadcast %3 : vector<1x128xf32> to vector<2048x128xf32>
    %5 = arith.addf %2, %4 : vector<2048x128xf32>
    %c0_5 = arith.constant 0 : index
    %c0_6 = arith.constant 0 : index
    %6 = vector.load %arg4[%c0_5, %c0_6] : memref<2048x128xf32, #tpu.memory_space<vmem>>, vector<2048x128xf32>
    tpu.vector_store %arg4[%c0_5, %c0_6], %5 {strides = array<i32>} : memref<2048x128xf32, #tpu.memory_space<vmem>>, vector<2048x128xf32>,
    %cst_7 = arith.constant dense<0.000000e+00> : vector<128xf32>
    %7 = vector.multi_reduction <add>, %5, %cst_7 [0] : vector<2048x128xf32> to vector<128xf32>
    %8 = vector.shape_cast %7 : vector<128xf32> to vector<1x128xf32>
    %c0_8 = arith.constant 0 : index
    %c0_9 = arith.constant 0 : index
    %c0_10 = arith.constant 0 : index
    %9 = vector.load %arg5[%c0_8, %c0_9, %c0_10] : memref<1x1x128xf32, #tpu.memory_space<vmem>>, vector<1x1x128xf32>
    %10 = vector.shape_cast %9 : vector<1x1x128xf32> to vector<1x128xf32>
    %11 = vector.shape_cast %8 : vector<1x128xf32> to vector<1x1x128xf32>
    tpu.vector_store %arg5[%c0_8, %c0_9, %c0_10], %11 {strides = array<i32>} : memref<1x1x128xf32, #tpu.memory_space<vmem>>, vector<1x1x128xf32>,
    %12 = arith.mulf %5, %5 : vector<2048x128xf32>
    %cst_11 = arith.constant dense<0.000000e+00> : vector<128xf32>
    %13 = vector.multi_reduction <add>, %12, %cst_11 [0] : vector<2048x128xf32> to vector<128xf32>
    %14 = vector.shape_cast %13 : vector<128xf32> to vector<1x128xf32>
    %c0_12 = arith.constant 0 : index
    %c0_13 = arith.constant 0 : index
    %c0_14 = arith.constant 0 : index
    %15 = vector.load %arg6[%c0_12, %c0_13, %c0_14] : memref<1x1x128xf32, #tpu.memory_space<vmem>>, vector<1x1x128xf32>
    %16 = vector.shape_cast %15 : vector<1x1x128xf32> to vector<1x128xf32>
    %17 = vector.shape_cast %14 : vector<1x128xf32> to vector<1x1x128xf32>
    tpu.vector_store %arg6[%c0_12, %c0_13, %c0_14], %17 {strides = array<i32>} : memref<1x1x128xf32, #tpu.memory_space<vmem>>, vector<1x1x128xf32>,
    return
  }
  func.func @transform_0(%arg0: i32) -> (i32, i32) {
    %c0_i32 = arith.constant 0 : i32
    %c0_i32_0 = arith.constant 0 : i32
    return %arg0, %c0_i32 : i32, i32
  }
  func.func @transform_1(%arg0: i32) -> (i32, i32) {
    %c0_i32 = arith.constant 0 : i32
    %c0_i32_0 = arith.constant 0 : i32
    %c0_i32_1 = arith.constant 0 : i32
    return %c0_i32, %c0_i32_0 : i32, i32
  }
  func.func @transform_2(%arg0: i32) -> (i32, i32) {
    %c0_i32 = arith.constant 0 : i32
    %c0_i32_0 = arith.constant 0 : i32
    %c0_i32_1 = arith.constant 0 : i32
    return %c0_i32, %c0_i32_0 : i32, i32
  }
  func.func @transform_3(%arg0: i32) -> (i32, i32) {
    %c0_i32 = arith.constant 0 : i32
    %c0_i32_0 = arith.constant 0 : i32
    return %arg0, %c0_i32 : i32, i32
  }
  func.func @transform_4(%arg0: i32) -> (i32, i32, i32) {
    %c0_i32 = arith.constant 0 : i32
    %c0_i32_0 = arith.constant 0 : i32
    %c0_i32_1 = arith.constant 0 : i32
    return %arg0, %c0_i32, %c0_i32_0 : i32, i32, i32
  }
  func.func @transform_5(%arg0: i32) -> (i32, i32, i32) {
    %c0_i32 = arith.constant 0 : i32
    %c0_i32_0 = arith.constant 0 : i32
    %c0_i32_1 = arith.constant 0 : i32
    return %arg0, %c0_i32, %c0_i32_0 : i32, i32, i32
  }
}

module attributes {stable_mosaic.version = 11 : i64} {
  func.func @_affine_kernel(%arg0: i32, %arg1: memref<8x256x128xf32, #tpu.memory_space<vmem>>, %arg2: memref<8x1x128xf32, #tpu.memory_space<vmem>>, %arg3: memref<8x1x128xf32, #tpu.memory_space<vmem>>, %arg4: memref<8x256x128xf32, #tpu.memory_space<vmem>>) attributes {dimension_semantics = [#tpu.dimension_semantics<parallel>], iteration_bounds = array<i64: 1>, scalar_prefetch = 0 : i64, scratch_operands = 0 : i64, tpu.core_type = #tpu.core_type<tc>, window_params = [{transform_indices = @transform_0, window_bounds = array<i64: 8, 256, 128>}, {transform_indices = @transform_1, window_bounds = array<i64: 8, 1, 128>}, {transform_indices = @transform_2, window_bounds = array<i64: 8, 1, 128>}, {transform_indices = @transform_3, window_bounds = array<i64: 8, 256, 128>}]} {
    %c0 = arith.constant 0 : index
    %c0_0 = arith.constant 0 : index
    %c0_1 = arith.constant 0 : index
    %0 = vector.load %arg1[%c0, %c0_0, %c0_1] : memref<8x256x128xf32, #tpu.memory_space<vmem>>, vector<8x256x128xf32>
    %c0_2 = arith.constant 0 : index
    %c0_3 = arith.constant 0 : index
    %c0_4 = arith.constant 0 : index
    %1 = vector.load %arg2[%c0_2, %c0_3, %c0_4] : memref<8x1x128xf32, #tpu.memory_space<vmem>>, vector<8x1x128xf32>
    %2 = vector.broadcast %1 : vector<8x1x128xf32> to vector<8x256x128xf32>
    %3 = arith.mulf %0, %2 : vector<8x256x128xf32>
    %c0_5 = arith.constant 0 : index
    %c0_6 = arith.constant 0 : index
    %c0_7 = arith.constant 0 : index
    %4 = vector.load %arg3[%c0_5, %c0_6, %c0_7] : memref<8x1x128xf32, #tpu.memory_space<vmem>>, vector<8x1x128xf32>
    %5 = vector.broadcast %4 : vector<8x1x128xf32> to vector<8x256x128xf32>
    %6 = arith.addf %3, %5 : vector<8x256x128xf32>
    %c0_8 = arith.constant 0 : index
    %c0_9 = arith.constant 0 : index
    %c0_10 = arith.constant 0 : index
    %7 = vector.load %arg4[%c0_8, %c0_9, %c0_10] : memref<8x256x128xf32, #tpu.memory_space<vmem>>, vector<8x256x128xf32>
    tpu.vector_store %arg4[%c0_8, %c0_9, %c0_10], %6 {strides = array<i32>} : memref<8x256x128xf32, #tpu.memory_space<vmem>>, vector<8x256x128xf32>,
    return
  }
  func.func @transform_0(%arg0: i32) -> (i32, i32, i32) {
    %c0_i32 = arith.constant 0 : i32
    %c0_i32_0 = arith.constant 0 : i32
    %c0_i32_1 = arith.constant 0 : i32
    return %arg0, %c0_i32, %c0_i32_0 : i32, i32, i32
  }
  func.func @transform_1(%arg0: i32) -> (i32, i32, i32) {
    %c0_i32 = arith.constant 0 : i32
    %c0_i32_0 = arith.constant 0 : i32
    %c0_i32_1 = arith.constant 0 : i32
    return %arg0, %c0_i32, %c0_i32_0 : i32, i32, i32
  }
  func.func @transform_2(%arg0: i32) -> (i32, i32, i32) {
    %c0_i32 = arith.constant 0 : i32
    %c0_i32_0 = arith.constant 0 : i32
    %c0_i32_1 = arith.constant 0 : i32
    return %arg0, %c0_i32, %c0_i32_0 : i32, i32, i32
  }
  func.func @transform_3(%arg0: i32) -> (i32, i32, i32) {
    %c0_i32 = arith.constant 0 : i32
    %c0_i32_0 = arith.constant 0 : i32
    %c0_i32_1 = arith.constant 0 : i32
    return %arg0, %c0_i32, %c0_i32_0 : i32, i32, i32
  }
}

</mosaic_0001>

<llo_original>
// kernel: tebn_layer_forward.3
$region0: #{tebn_layer_forward.3}
  #allocation0 [shape = 'u32[]', space=smem, size = 0x4, offset = 0x4, fixed_abs, tag = 'smem constant byte address 0x4 - core index']
  #allocation1 [shape = 'u32[144,128]{1,0:T(1,128)}', space=vmem, size = 0x12000, scoped, tag = 'internal scratch']
  %s0 = inlined_call_operand.vmem [shape: f32[8,256,128], index: 0, kind: input, shape index: {}]
  %s1 = inlined_call_operand.vmem [shape: f32[8,1,128], index: 1, kind: input, shape index: {}]
  %s2 = inlined_call_operand.vmem [shape: f32[8,1,128], index: 2, kind: input, shape index: {}]
  %s3 = inlined_call_operand.vmem [shape: f32[8,256,128], index: 3, kind: output, shape index: {}]
  %s4 = sld [smem:[#allocation0]]
  $region22: #{tebn_layer_forward.3} parent=0
    _
  %s6 = ssub.s32 1, %s4
  %s7 = scalar_select 0, %s6, %s4
  // Predicated region
  $region2: #{tebn_layer_forward.3} parent=0 // pred_check
    _
  $region3: #{tebn_layer_forward.3} parent=0 // pred_check_branch
    %9 = sbr.rel (0) target = $region5
  $region4: #{tebn_layer_forward.3} parent=0 // pred_region
    _
  $region5: #{tebn_layer_forward.3} parent=0 // pred_fallthru
    _
  // Predicated region
  $region6: #{tebn_layer_forward.3} parent=0 // pred_check
    _
  $region7: #{tebn_layer_forward.3} parent=0 // pred_check_branch
    %11 = sbr.rel (0) target = $region9
  $region8: #{tebn_layer_forward.3} parent=0 // pred_region
    _
  $region9: #{tebn_layer_forward.3} parent=0 // pred_fallthru
    _
  // Predicated region
  $region10: #{tebn_layer_forward.3} parent=0 // pred_check
    _
  $region11: #{tebn_layer_forward.3} parent=0 // pred_check_branch
    %13 = sbr.rel (0) target = $region13
  $region12: #{tebn_layer_forward.3} parent=0 // pred_region
    _
  $region13: #{tebn_layer_forward.3} parent=0 // pred_fallthru
    _
  %v14 = vld [vmem:[%s0] sm:$0xff]
  %v15 = vld [vmem:[%s0 + $0x8] sm:$0xff]
  %v16 = vld [vmem:[%s0 + $0x10] sm:$0xff]
  %v17 = vld [vmem:[%s0 + $0x18] sm:$0xff]
  %v18 = vld [vmem:[%s0 + $0x20] sm:$0xff]
  %v19 = vld [vmem:[%s0 + $0x28] sm:$0xff]
  %v20 = vld [vmem:[%s0 + $0x30] sm:$0xff]
  %v21 = vld [vmem:[%s0 + $0x38] sm:$0xff]
  %v22 = vld [vmem:[%s0 + $0x40] sm:$0xff]
  %v23 = vld [vmem:[%s0 + $0x48] sm:$0xff]
  %v24 = vld [vmem:[%s0 + $0x50] sm:$0xff]
  %v25 = vld [vmem:[%s0 + $0x58] sm:$0xff]
  %v26 = vld [vmem:[%s0 + $0x60] sm:$0xff]
  %v27 = vld [vmem:[%s0 + $0x68] sm:$0xff]
  %v28 = vld [vmem:[%s0 + $0x70] sm:$0xff]
  %v29 = vld [vmem:[%s0 + $0x78] sm:$0xff]
  %v30 = vld [vmem:[%s0 + $0x80] sm:$0xff]
  %v31 = vld [vmem:[%s0 + $0x88] sm:$0xff]
  %v32 = vld [vmem:[%s0 + $0x90] sm:$0xff]
  %v33 = vld [vmem:[%s0 + $0x98] sm:$0xff]
  %v34 = vld [vmem:[%s0 + $0xa0] sm:$0xff]
  %v35 = vld [vmem:[%s0 + $0xa8] sm:$0xff]
  %v36 = vld [vmem:[%s0 + $0xb0] sm:$0xff]
  %v37 = vld [vmem:[%s0 + $0xb8] sm:$0xff]
  %v38 = vld [vmem:[%s0 + $0xc0] sm:$0xff]
  %v39 = vld [vmem:[%s0 + $0xc8] sm:$0xff]
  %v40 = vld [vmem:[%s0 + $0xd0] sm:$0xff]
  %v41 = vld [vmem:[%s0 + $0xd8] sm:$0xff]
  %v42 = vld [vmem:[%s0 + $0xe0] sm:$0xff]
  %v43 = vld [vmem:[%s0 + $0xe8] sm:$0xff]
  %v44 = vld [vmem:[%s0 + $0xf0] sm:$0xff]
  %v45 = vld [vmem:[%s0 + $0xf8] sm:$0xff]
  %v46 = vld [vmem:[%s0 + $0x100] sm:$0xff]
  %v47 = vld [vmem:[%s0 + $0x108] sm:$0xff]
  %v48 = vld [vmem:[%s0 + $0x110] sm:$0xff]
  %v49 = vld [vmem:[%s0 + $0x118] sm:$0xff]
  %v50 = vld [vmem:[%s0 + $0x120] sm:$0xff]
  %v51 = vld [vmem:[%s0 + $0x128] sm:$0xff]
  %v52 = vld [vmem:[%s0 + $0x130] sm:$0xff]
  %v53 = vld [vmem:[%s0 + $0x138] sm:$0xff]
  %v54 = vld [vmem:[%s0 + $0x140] sm:$0xff]
  %v55 = vld [vmem:[%s0 + $0x148] sm:$0xff]
  %v56 = vld [vmem:[%s0 + $0x150] sm:$0xff]
  %v57 = vld [vmem:[%s0 + $0x158] sm:$0xff]
  %v58 = vld [vmem:[%s0 + $0x160] sm:$0xff]
  %v59 = vld [vmem:[%s0 + $0x168] sm:$0xff]
  %v60 = vld [vmem:[%s0 + $0x170] sm:$0xff]
  %v61 = vld [vmem:[%s0 + $0x178] sm:$0xff]
  %v62 = vld [vmem:[%s0 + $0x180] sm:$0xff]
  %v63 = vld [vmem:[%s0 + $0x188] sm:$0xff]
  %v64 = vld [vmem:[%s0 + $0x190] sm:$0xff]
  %v65 = vld [vmem:[%s0 + $0x198] sm:$0xff]
  %v66 = vld [vmem:[%s0 + $0x1a0] sm:$0xff]
  %v67 = vld [vmem:[%s0 + $0x1a8] sm:$0xff]
  %v68 = vld [vmem:[%s0 + $0x1b0] sm:$0xff]
  %v69 = vld [vmem:[%s0 + $0x1b8] sm:$0xff]
  %v70 = vld [vmem:[%s0 + $0x1c0] sm:$0xff]
  %v71 = vld [vmem:[%s0 + $0x1c8] sm:$0xff]
  %v72 = vld [vmem:[%s0 + $0x1d0] sm:$0xff]
  %v73 = vld [vmem:[%s0 + $0x1d8] sm:$0xff]
  %v74 = vld [vmem:[%s0 + $0x1e0] sm:$0xff]
  %v75 = vld [vmem:[%s0 + $0x1e8] sm:$0xff]
  %v76 = vld [vmem:[%s0 + $0x1f0] sm:$0xff]
  %v77 = vld [vmem:[%s0 + $0x1f8] sm:$0xff]
  %v78 = vld [vmem:[%s0 + $0x200] sm:$0xff]
  %v79 = vld [vmem:[%s0 + $0x208] sm:$0xff]
  %v80 = vld [vmem:[%s0 + $0x210] sm:$0xff]
  %v81 = vld [vmem:[%s0 + $0x218] sm:$0xff]
  %v82 = vld [vmem:[%s0 + $0x220] sm:$0xff]
  %v83 = vld [vmem:[%s0 + $0x228] sm:$0xff]
  %v84 = vld [vmem:[%s0 + $0x230] sm:$0xff]
  %v85 = vld [vmem:[%s0 + $0x238] sm:$0xff]
  %v86 = vld [vmem:[%s0 + $0x240] sm:$0xff]
  %v87 = vld [vmem:[%s0 + $0x248] sm:$0xff]
  %v88 = vld [vmem:[%s0 + $0x250] sm:$0xff]
  %v89 = vld [vmem:[%s0 + $0x258] sm:$0xff]
  %v90 = vld [vmem:[%s0 + $0x260] sm:$0xff]
  %v91 = vld [vmem:[%s0 + $0x268] sm:$0xff]
  %v92 = vld [vmem:[%s0 + $0x270] sm:$0xff]
  %v93 = vld [vmem:[%s0 + $0x278] sm:$0xff]
  %v94 = vld [vmem:[%s0 + $0x280] sm:$0xff]
  %v95 = vld [vmem:[%s0 + $0x288] sm:$0xff]
  %v96 = vld [vmem:[%s0 + $0x290] sm:$0xff]
  %v97 = vld [vmem:[%s0 + $0x298] sm:$0xff]
  %v98 = vld [vmem:[%s0 + $0x2a0] sm:$0xff]
  %v99 = vld [vmem:[%s0 + $0x2a8] sm:$0xff]
  %v100 = vld [vmem:[%s0 + $0x2b0] sm:$0xff]
  %v101 = vld [vmem:[%s0 + $0x2b8] sm:$0xff]
  %v102 = vld [vmem:[%s0 + $0x2c0] sm:$0xff]
  %v103 = vld [vmem:[%s0 + $0x2c8] sm:$0xff]
  %v104 = vld [vmem:[%s0 + $0x2d0] sm:$0xff]
  %v105 = vld [vmem:[%s0 + $0x2d8] sm:$0xff]
  %v106 = vld [vmem:[%s0 + $0x2e0] sm:$0xff]
  %v107 = vld [vmem:[%s0 + $0x2e8] sm:$0xff]
  %v108 = vld [vmem:[%s0 + $0x2f0] sm:$0xff]
  %v109 = vld [vmem:[%s0 + $0x2f8] sm:$0xff]
  %v110 = vld [vmem:[%s0 + $0x300] sm:$0xff]
  %v111 = vld [vmem:[%s0 + $0x308] sm:$0xff]
  %v112 = vld [vmem:[%s0 + $0x310] sm:$0xff]
  %v113 = vld [vmem:[%s0 + $0x318] sm:$0xff]
  %v114 = vld [vmem:[%s0 + $0x320] sm:$0xff]
  %v115 = vld [vmem:[%s0 + $0x328] sm:$0xff]
  %v116 = vld [vmem:[%s0 + $0x330] sm:$0xff]
  %v117 = vld [vmem:[%s0 + $0x338] sm:$0xff]
  %v118 = vld [vmem:[%s0 + $0x340] sm:$0xff]
  %v119 = vld [vmem:[%s0 + $0x348] sm:$0xff]
  %v120 = vld [vmem:[%s0 + $0x350] sm:$0xff]
  %v121 = vld [vmem:[%s0 + $0x358] sm:$0xff]
  %v122 = vld [vmem:[%s0 + $0x360] sm:$0xff]
  %v123 = vld [vmem:[%s0 + $0x368] sm:$0xff]
  %v124 = vld [vmem:[%s0 + $0x370] sm:$0xff]
  %v125 = vld [vmem:[%s0 + $0x378] sm:$0xff]
  %v126 = vld [vmem:[%s0 + $0x380] sm:$0xff]
  %v127 = vld [vmem:[%s0 + $0x388] sm:$0xff]
  %v128 = vld [vmem:[%s0 + $0x390] sm:$0xff]
  %v129 = vld [vmem:[%s0 + $0x398] sm:$0xff]
  %v130 = vld [vmem:[%s0 + $0x3a0] sm:$0xff]
  %v131 = vld [vmem:[%s0 + $0x3a8] sm:$0xff]
  %v132 = vld [vmem:[%s0 + $0x3b0] sm:$0xff]
  %v133 = vld [vmem:[%s0 + $0x3b8] sm:$0xff]
  %v134 = vld [vmem:[%s0 + $0x3c0] sm:$0xff]
  %v135 = vld [vmem:[%s0 + $0x3c8] sm:$0xff]
  %v136 = vld [vmem:[%s0 + $0x3d0] sm:$0xff]
  %v137 = vld [vmem:[%s0 + $0x3d8] sm:$0xff]
  %v138 = vld [vmem:[%s0 + $0x3e0] sm:$0xff]
  %v139 = vld [vmem:[%s0 + $0x3e8] sm:$0xff]
  %v140 = vld [vmem:[%s0 + $0x3f0] sm:$0xff]
  %v141 = vld [vmem:[%s0 + $0x3f8] sm:$0xff]
  %v142 = vld [vmem:[%s0 + $0x400] sm:$0xff]
  %v143 = vld [vmem:[%s0 + $0x408] sm:$0xff]
  %v144 = vld [vmem:[%s0 + $0x410] sm:$0xff]
  %v145 = vld [vmem:[%s0 + $0x418] sm:$0xff]
  %v146 = vld [vmem:[%s0 + $0x420] sm:$0xff]
  %v147 = vld [vmem:[%s0 + $0x428] sm:$0xff]
  %v148 = vld [vmem:[%s0 + $0x430] sm:$0xff]
  %v149 = vld [vmem:[%s0 + $0x438] sm:$0xff]
  %v150 = vld [vmem:[%s0 + $0x440] sm:$0xff]
  %v151 = vld [vmem:[%s0 + $0x448] sm:$0xff]
  %v152 = vld [vmem:[%s0 + $0x450] sm:$0xff]
  %v153 = vld [vmem:[%s0 + $0x458] sm:$0xff]
  %v154 = vld [vmem:[%s0 + $0x460] sm:$0xff]
  %v155 = vld [vmem:[%s0 + $0x468] sm:$0xff]
  %v156 = vld [vmem:[%s0 + $0x470] sm:$0xff]
  %v157 = vld [vmem:[%s0 + $0x478] sm:$0xff]
  %v158 = vld [vmem:[%s0 + $0x480] sm:$0xff]
  %v159 = vld [vmem:[%s0 + $0x488] sm:$0xff]
  %v160 = vld [vmem:[%s0 + $0x490] sm:$0xff]
  %v161 = vld [vmem:[%s0 + $0x498] sm:$0xff]
  %v162 = vld [vmem:[%s0 + $0x4a0] sm:$0xff]
  %v163 = vld [vmem:[%s0 + $0x4a8] sm:$0xff]
  %v164 = vld [vmem:[%s0 + $0x4b0] sm:$0xff]
  %v165 = vld [vmem:[%s0 + $0x4b8] sm:$0xff]
  %v166 = vld [vmem:[%s0 + $0x4c0] sm:$0xff]
  %v167 = vld [vmem:[%s0 + $0x4c8] sm:$0xff]
  %v168 = vld [vmem:[%s0 + $0x4d0] sm:$0xff]
  %v169 = vld [vmem:[%s0 + $0x4d8] sm:$0xff]
  %v170 = vld [vmem:[%s0 + $0x4e0] sm:$0xff]
  %v171 = vld [vmem:[%s0 + $0x4e8] sm:$0xff]
  %v172 = vld [vmem:[%s0 + $0x4f0] sm:$0xff]
  %v173 = vld [vmem:[%s0 + $0x4f8] sm:$0xff]
  %v174 = vld [vmem:[%s0 + $0x500] sm:$0xff]
  %v175 = vld [vmem:[%s0 + $0x508] sm:$0xff]
  %v176 = vld [vmem:[%s0 + $0x510] sm:$0xff]
  %v177 = vld [vmem:[%s0 + $0x518] sm:$0xff]
  %v178 = vld [vmem:[%s0 + $0x520] sm:$0xff]
  %v179 = vld [vmem:[%s0 + $0x528] sm:$0xff]
  %v180 = vld [vmem:[%s0 + $0x530] sm:$0xff]
  %v181 = vld [vmem:[%s0 + $0x538] sm:$0xff]
  %v182 = vld [vmem:[%s0 + $0x540] sm:$0xff]
  %v183 = vld [vmem:[%s0 + $0x548] sm:$0xff]
  %v184 = vld [vmem:[%s0 + $0x550] sm:$0xff]
  %v185 = vld [vmem:[%s0 + $0x558] sm:$0xff]
  %v186 = vld [vmem:[%s0 + $0x560] sm:$0xff]
  %v187 = vld [vmem:[%s0 + $0x568] sm:$0xff]
  %v188 = vld [vmem:[%s0 + $0x570] sm:$0xff]
  %v189 = vld [vmem:[%s0 + $0x578] sm:$0xff]
  %v190 = vld [vmem:[%s0 + $0x580] sm:$0xff]
  %v191 = vld [vmem:[%s0 + $0x588] sm:$0xff]
  %v192 = vld [vmem:[%s0 + $0x590] sm:$0xff]
  %v193 = vld [vmem:[%s0 + $0x598] sm:$0xff]
  %v194 = vld [vmem:[%s0 + $0x5a0] sm:$0xff]
  %v195 = vld [vmem:[%s0 + $0x5a8] sm:$0xff]
  %v196 = vld [vmem:[%s0 + $0x5b0] sm:$0xff]
  %v197 = vld [vmem:[%s0 + $0x5b8] sm:$0xff]
  %v198 = vld [vmem:[%s0 + $0x5c0] sm:$0xff]
  %v199 = vld [vmem:[%s0 + $0x5c8] sm:$0xff]
  %v200 = vld [vmem:[%s0 + $0x5d0] sm:$0xff]
  %v201 = vld [vmem:[%s0 + $0x5d8] sm:$0xff]
  %v202 = vld [vmem:[%s0 + $0x5e0] sm:$0xff]
  %v203 = vld [vmem:[%s0 + $0x5e8] sm:$0xff]
  %v204 = vld [vmem:[%s0 + $0x5f0] sm:$0xff]
  %v205 = vld [vmem:[%s0 + $0x5f8] sm:$0xff]
  %v206 = vld [vmem:[%s0 + $0x600] sm:$0xff]
  %v207 = vld [vmem:[%s0 + $0x608] sm:$0xff]
  %v208 = vld [vmem:[%s0 + $0x610] sm:$0xff]
  %v209 = vld [vmem:[%s0 + $0x618] sm:$0xff]
  %v210 = vld [vmem:[%s0 + $0x620] sm:$0xff]
  %v211 = vld [vmem:[%s0 + $0x628] sm:$0xff]
  %v212 = vld [vmem:[%s0 + $0x630] sm:$0xff]
  %v213 = vld [vmem:[%s0 + $0x638] sm:$0xff]
  %v214 = vld [vmem:[%s0 + $0x640] sm:$0xff]
  %v215 = vld [vmem:[%s0 + $0x648] sm:$0xff]
  %v216 = vld [vmem:[%s0 + $0x650] sm:$0xff]
  %v217 = vld [vmem:[%s0 + $0x658] sm:$0xff]
  %v218 = vld [vmem:[%s0 + $0x660] sm:$0xff]
  %v219 = vld [vmem:[%s0 + $0x668] sm:$0xff]
  %v220 = vld [vmem:[%s0 + $0x670] sm:$0xff]
  %v221 = vld [vmem:[%s0 + $0x678] sm:$0xff]
  %v222 = vld [vmem:[%s0 + $0x680] sm:$0xff]
  %v223 = vld [vmem:[%s0 + $0x688] sm:$0xff]
  %v224 = vld [vmem:[%s0 + $0x690] sm:$0xff]
  %v225 = vld [vmem:[%s0 + $0x698] sm:$0xff]
  %v226 = vld [vmem:[%s0 + $0x6a0] sm:$0xff]
  %v227 = vld [vmem:[%s0 + $0x6a8] sm:$0xff]
  %v228 = vld [vmem:[%s0 + $0x6b0] sm:$0xff]
  %v229 = vld [vmem:[%s0 + $0x6b8] sm:$0xff]
  %v230 = vld [vmem:[%s0 + $0x6c0] sm:$0xff]
  %v231 = vld [vmem:[%s0 + $0x6c8] sm:$0xff]
  %v232 = vld [vmem:[%s0 + $0x6d0] sm:$0xff]
  %v233 = vld [vmem:[%s0 + $0x6d8] sm:$0xff]
  %v234 = vld [vmem:[%s0 + $0x6e0] sm:$0xff]
  %v235 = vld [vmem:[%s0 + $0x6e8] sm:$0xff]
  %v236 = vld [vmem:[%s0 + $0x6f0] sm:$0xff]
  %v237 = vld [vmem:[%s0 + $0x6f8] sm:$0xff]
  %v238 = vld [vmem:[%s0 + $0x700] sm:$0xff]
  %v239 = vld [vmem:[%s0 + $0x708] sm:$0xff]
  %v240 = vld [vmem:[%s0 + $0x710] sm:$0xff]
  %v241 = vld [vmem:[%s0 + $0x718] sm:$0xff]
  %v242 = vld [vmem:[%s0 + $0x720] sm:$0xff]
  %v243 = vld [vmem:[%s0 + $0x728] sm:$0xff]
  %v244 = vld [vmem:[%s0 + $0x730] sm:$0xff]
  %v245 = vld [vmem:[%s0 + $0x738] sm:$0xff]
  %v246 = vld [vmem:[%s0 + $0x740] sm:$0xff]
  %v247 = vld [vmem:[%s0 + $0x748] sm:$0xff]
  %v248 = vld [vmem:[%s0 + $0x750] sm:$0xff]
  %v249 = vld [vmem:[%s0 + $0x758] sm:$0xff]
  %v250 = vld [vmem:[%s0 + $0x760] sm:$0xff]
  %v251 = vld [vmem:[%s0 + $0x768] sm:$0xff]
  %v252 = vld [vmem:[%s0 + $0x770] sm:$0xff]
  %v253 = vld [vmem:[%s0 + $0x778] sm:$0xff]
  %v254 = vld [vmem:[%s0 + $0x780] sm:$0xff]
  %v255 = vld [vmem:[%s0 + $0x788] sm:$0xff]
  %v256 = vld [vmem:[%s0 + $0x790] sm:$0xff]
  %v257 = vld [vmem:[%s0 + $0x798] sm:$0xff]
  %v258 = vld [vmem:[%s0 + $0x7a0] sm:$0xff]
  %v259 = vld [vmem:[%s0 + $0x7a8] sm:$0xff]
  %v260 = vld [vmem:[%s0 + $0x7b0] sm:$0xff]
  %v261 = vld [vmem:[%s0 + $0x7b8] sm:$0xff]
  %v262 = vld [vmem:[%s0 + $0x7c0] sm:$0xff]
  %v263 = vld [vmem:[%s0 + $0x7c8] sm:$0xff]
  %v264 = vld [vmem:[%s0 + $0x7d0] sm:$0xff]
  %v265 = vld [vmem:[%s0 + $0x7d8] sm:$0xff]
  %v266 = vld [vmem:[%s0 + $0x7e0] sm:$0xff]
  %v267 = vld [vmem:[%s0 + $0x7e8] sm:$0xff]
  %v268 = vld [vmem:[%s0 + $0x7f0] sm:$0xff]
  %v269 = vld [vmem:[%s0 + $0x7f8] sm:$0xff]
  %v270 = vld [vmem:[%s1] sm:$0x1]
  %v271 = vld [vmem:[%s1 + $0x1] sm:$0x1]
  %v272 = vld [vmem:[%s1 + $0x2] sm:$0x1]
  %v273 = vld [vmem:[%s1 + $0x3] sm:$0x1]
  %v274 = vld [vmem:[%s1 + $0x4] sm:$0x1]
  %v275 = vld [vmem:[%s1 + $0x5] sm:$0x1]
  %v276 = vld [vmem:[%s1 + $0x6] sm:$0x1]
  %v277 = vld [vmem:[%s1 + $0x7] sm:$0x1]
  %v286 = vlaneseq
  %v287 = vshrl.u32 %v286, 7
  %v288 = vsub.s32 0, %v287
  %v289 = vrot.slane %v270, %v288
  %v290 = vlaneseq
  %v291 = vshrl.u32 %v290, 7
  %v292 = vsub.s32 0, %v291
  %v293 = vrot.slane %v271, %v292
  %v294 = vlaneseq
  %v295 = vshrl.u32 %v294, 7
  %v296 = vsub.s32 0, %v295
  %v297 = vrot.slane %v272, %v296
  %v298 = vlaneseq
  %v299 = vshrl.u32 %v298, 7
  %v300 = vsub.s32 0, %v299
  %v301 = vrot.slane %v273, %v300
  %v302 = vlaneseq
  %v303 = vshrl.u32 %v302, 7
  %v304 = vsub.s32 0, %v303
  %v305 = vrot.slane %v274, %v304
  %v306 = vlaneseq
  %v307 = vshrl.u32 %v306, 7
  %v308 = vsub.s32 0, %v307
  %v309 = vrot.slane %v275, %v308
  %v310 = vlaneseq
  %v311 = vshrl.u32 %v310, 7
  %v312 = vsub.s32 0, %v311
  %v313 = vrot.slane %v276, %v312
  %v314 = vlaneseq
  %v315 = vshrl.u32 %v314, 7
  %v316 = vsub.s32 0, %v315
  %v317 = vrot.slane %v277, %v316
  %v326 = vmul.f32 %v14, %v289
  %v327 = vmul.f32 %v15, %v289
  %v328 = vmul.f32 %v16, %v289
  %v329 = vmul.f32 %v17, %v289
  %v330 = vmul.f32 %v18, %v289
  %v331 = vmul.f32 %v19, %v289
  %v332 = vmul.f32 %v20, %v289
  %v333 = vmul.f32 %v21, %v289
  %v334 = vmul.f32 %v22, %v289
  %v335 = vmul.f32 %v23, %v289
  %v336 = vmul.f32 %v24, %v289
  %v337 = vmul.f32 %v25, %v289
  %v338 = vmul.f32 %v26, %v289
  %v339 = vmul.f32 %v27, %v289
  %v340 = vmul.f32 %v28, %v289
  %v341 = vmul.f32 %v29, %v289
  %v342 = vmul.f32 %v30, %v289
  %v343 = vmul.f32 %v31, %v289
  %v344 = vmul.f32 %v32, %v289
  %v345 = vmul.f32 %v33, %v289
  %v346 = vmul.f32 %v34, %v289
  %v347 = vmul.f32 %v35, %v289
  %v348 = vmul.f32 %v36, %v289
  %v349 = vmul.f32 %v37, %v289
  %v350 = vmul.f32 %v38, %v289
  %v351 = vmul.f32 %v39, %v289
  %v352 = vmul.f32 %v40, %v289
  %v353 = vmul.f32 %v41, %v289
  %v354 = vmul.f32 %v42, %v289
  %v355 = vmul.f32 %v43, %v289
  %v356 = vmul.f32 %v44, %v289
  %v357 = vmul.f32 %v45, %v289
  %v358 = vmul.f32 %v46, %v293
  %v359 = vmul.f32 %v47, %v293
  %v360 = vmul.f32 %v48, %v293
  %v361 = vmul.f32 %v49, %v293
  %v362 = vmul.f32 %v50, %v293
  %v363 = vmul.f32 %v51, %v293
  %v364 = vmul.f32 %v52, %v293
  %v365 = vmul.f32 %v53, %v293
  %v366 = vmul.f32 %v54, %v293
  %v367 = vmul.f32 %v55, %v293
  %v368 = vmul.f32 %v56, %v293
  %v369 = vmul.f32 %v57, %v293
  %v370 = vmul.f32 %v58, %v293
  %v371 = vmul.f32 %v59, %v293
  %v372 = vmul.f32 %v60, %v293
  %v373 = vmul.f32 %v61, %v293
  %v374 = vmul.f32 %v62, %v293
  %v375 = vmul.f32 %v63, %v293
  %v376 = vmul.f32 %v64, %v293
  %v377 = vmul.f32 %v65, %v293
  %v378 = vmul.f32 %v66, %v293
  %v379 = vmul.f32 %v67, %v293
  %v380 = vmul.f32 %v68, %v293
  %v381 = vmul.f32 %v69, %v293
  %v382 = vmul.f32 %v70, %v293
  %v383 = vmul.f32 %v71, %v293
  %v384 = vmul.f32 %v72, %v293
  %v385 = vmul.f32 %v73, %v293
  %v386 = vmul.f32 %v74, %v293
  %v387 = vmul.f32 %v75, %v293
  %v388 = vmul.f32 %v76, %v293
  %v389 = vmul.f32 %v77, %v293
  %v390 = vmul.f32 %v78, %v297
  %v391 = vmul.f32 %v79, %v297
  %v392 = vmul.f32 %v80, %v297
  %v393 = vmul.f32 %v81, %v297
  %v394 = vmul.f32 %v82, %v297
  %v395 = vmul.f32 %v83, %v297
  %v396 = vmul.f32 %v84, %v297
  %v397 = vmul.f32 %v85, %v297
  %v398 = vmul.f32 %v86, %v297
  %v399 = vmul.f32 %v87, %v297
  %v400 = vmul.f32 %v88, %v297
  %v401 = vmul.f32 %v89, %v297
  %v402 = vmul.f32 %v90, %v297
  %v403 = vmul.f32 %v91, %v297
  %v404 = vmul.f32 %v92, %v297
  %v405 = vmul.f32 %v93, %v297
  %v406 = vmul.f32 %v94, %v297
  %v407 = vmul.f32 %v95, %v297
  %v408 = vmul.f32 %v96, %v297
  %v409 = vmul.f32 %v97, %v297
  %v410 = vmul.f32 %v98, %v297
  %v411 = vmul.f32 %v99, %v297
  %v412 = vmul.f32 %v100, %v297
  %v413 = vmul.f32 %v101, %v297
  %v414 = vmul.f32 %v102, %v297
  %v415 = vmul.f32 %v103, %v297
  %v416 = vmul.f32 %v104, %v297
  %v417 = vmul.f32 %v105, %v297
  %v418 = vmul.f32 %v106, %v297
  %v419 = vmul.f32 %v107, %v297
  %v420 = vmul.f32 %v108, %v297
  %v421 = vmul.f32 %v109, %v297
  %v422 = vmul.f32 %v110, %v301
  %v423 = vmul.f32 %v111, %v301
  %v424 = vmul.f32 %v112, %v301
  %v425 = vmul.f32 %v113, %v301
  %v426 = vmul.f32 %v114, %v301
  %v427 = vmul.f32 %v115, %v301
  %v428 = vmul.f32 %v116, %v301
  %v429 = vmul.f32 %v117, %v301
  %v430 = vmul.f32 %v118, %v301
  %v431 = vmul.f32 %v119, %v301
  %v432 = vmul.f32 %v120, %v301
  %v433 = vmul.f32 %v121, %v301
  %v434 = vmul.f32 %v122, %v301
  %v435 = vmul.f32 %v123, %v301
  %v436 = vmul.f32 %v124, %v301
  %v437 = vmul.f32 %v125, %v301
  %v438 = vmul.f32 %v126, %v301
  %v439 = vmul.f32 %v127, %v301
  %v440 = vmul.f32 %v128, %v301
  %v441 = vmul.f32 %v129, %v301
  %v442 = vmul.f32 %v130, %v301
  %v443 = vmul.f32 %v131, %v301
  %v444 = vmul.f32 %v132, %v301
  %v445 = vmul.f32 %v133, %v301
  %v446 = vmul.f32 %v134, %v301
  %v447 = vmul.f32 %v135, %v301
  %v448 = vmul.f32 %v136, %v301
  %v449 = vmul.f32 %v137, %v301
  %v450 = vmul.f32 %v138, %v301
  %v451 = vmul.f32 %v139, %v301
  %v452 = vmul.f32 %v140, %v301
  %v453 = vmul.f32 %v141, %v301
  %v454 = vmul.f32 %v142, %v305
  %v455 = vmul.f32 %v143, %v305
  %v456 = vmul.f32 %v144, %v305
  %v457 = vmul.f32 %v145, %v305
  %v458 = vmul.f32 %v146, %v305
  %v459 = vmul.f32 %v147, %v305
  %v460 = vmul.f32 %v148, %v305
  %v461 = vmul.f32 %v149, %v305
  %v462 = vmul.f32 %v150, %v305
  %v463 = vmul.f32 %v151, %v305
  %v464 = vmul.f32 %v152, %v305
  %v465 = vmul.f32 %v153, %v305
  %v466 = vmul.f32 %v154, %v305
  %v467 = vmul.f32 %v155, %v305
  %v468 = vmul.f32 %v156, %v305
  %v469 = vmul.f32 %v157, %v305
  %v470 = vmul.f32 %v158, %v305
  %v471 = vmul.f32 %v159, %v305
  %v472 = vmul.f32 %v160, %v305
  %v473 = vmul.f32 %v161, %v305
  %v474 = vmul.f32 %v162, %v305
  %v475 = vmul.f32 %v163, %v305
  %v476 = vmul.f32 %v164, %v305
  %v477 = vmul.f32 %v165, %v305
  %v478 = vmul.f32 %v166, %v305
  %v479 = vmul.f32 %v167, %v305
  %v480 = vmul.f32 %v168, %v305
  %v481 = vmul.f32 %v169, %v305
  %v482 = vmul.f32 %v170, %v305
  %v483 = vmul.f32 %v171, %v305
  %v484 = vmul.f32 %v172, %v305
  %v485 = vmul.f32 %v173, %v305
  %v486 = vmul.f32 %v174, %v309
  %v487 = vmul.f32 %v175, %v309
  %v488 = vmul.f32 %v176, %v309
  %v489 = vmul.f32 %v177, %v309
  %v490 = vmul.f32 %v178, %v309
  %v491 = vmul.f32 %v179, %v309
  %v492 = vmul.f32 %v180, %v309
  %v493 = vmul.f32 %v181, %v309
  %v494 = vmul.f32 %v182, %v309
  %v495 = vmul.f32 %v183, %v309
  %v496 = vmul.f32 %v184, %v309
  %v497 = vmul.f32 %v185, %v309
  %v498 = vmul.f32 %v186, %v309
  %v499 = vmul.f32 %v187, %v309
  %v500 = vmul.f32 %v188, %v309
  %v501 = vmul.f32 %v189, %v309
  %v502 = vmul.f32 %v190, %v309
  %v503 = vmul.f32 %v191, %v309
  %v504 = vmul.f32 %v192, %v309
  %v505 = vmul.f32 %v193, %v309
  %v506 = vmul.f32 %v194, %v309
  %v507 = vmul.f32 %v195, %v309
  %v508 = vmul.f32 %v196, %v309
  %v509 = vmul.f32 %v197, %v309
  %v510 = vmul.f32 %v198, %v309
  %v511 = vmul.f32 %v199, %v309
  %v512 = vmul.f32 %v200, %v309
  %v513 = vmul.f32 %v201, %v309
  %v514 = vmul.f32 %v202, %v309
  %v515 = vmul.f32 %v203, %v309
  %v516 = vmul.f32 %v204, %v309
  %v517 = vmul.f32 %v205, %v309
  %v518 = vmul.f32 %v206, %v313
  %v519 = vmul.f32 %v207, %v313
  %v520 = vmul.f32 %v208, %v313
  %v521 = vmul.f32 %v209, %v313
  %v522 = vmul.f32 %v210, %v313
  %v523 = vmul.f32 %v211, %v313
  %v524 = vmul.f32 %v212, %v313
  %v525 = vmul.f32 %v213, %v313
  %v526 = vmul.f32 %v214, %v313
  %v527 = vmul.f32 %v215, %v313
  %v528 = vmul.f32 %v216, %v313
  %v529 = vmul.f32 %v217, %v313
  %v530 = vmul.f32 %v218, %v313
  %v531 = vmul.f32 %v219, %v313
  %v532 = vmul.f32 %v220, %v313
  %v533 = vmul.f32 %v221, %v313
  %v534 = vmul.f32 %v222, %v313
  %v535 = vmul.f32 %v223, %v313
  %v536 = vmul.f32 %v224, %v313
  %v537 = vmul.f32 %v225, %v313
  %v538 = vmul.f32 %v226, %v313
  %v539 = vmul.f32 %v227, %v313
  %v540 = vmul.f32 %v228, %v313
  %v541 = vmul.f32 %v229, %v313
  %v542 = vmul.f32 %v230, %v313
  %v543 = vmul.f32 %v231, %v313
  %v544 = vmul.f32 %v232, %v313
  %v545 = vmul.f32 %v233, %v313
  %v546 = vmul.f32 %v234, %v313
  %v547 = vmul.f32 %v235, %v313
  %v548 = vmul.f32 %v236, %v313
  %v549 = vmul.f32 %v237, %v313
  %v550 = vmul.f32 %v238, %v317
  %v551 = vmul.f32 %v239, %v317
  %v552 = vmul.f32 %v240, %v317
  %v553 = vmul.f32 %v241, %v317
  %v554 = vmul.f32 %v242, %v317
  %v555 = vmul.f32 %v243, %v317
  %v556 = vmul.f32 %v244, %v317
  %v557 = vmul.f32 %v245, %v317
  %v558 = vmul.f32 %v246, %v317
  %v559 = vmul.f32 %v247, %v317
  %v560 = vmul.f32 %v248, %v317
  %v561 = vmul.f32 %v249, %v317
  %v562 = vmul.f32 %v250, %v317
  %v563 = vmul.f32 %v251, %v317
  %v564 = vmul.f32 %v252, %v317
  %v565 = vmul.f32 %v253, %v317
  %v566 = vmul.f32 %v254, %v317
  %v567 = vmul.f32 %v255, %v317
  %v568 = vmul.f32 %v256, %v317
  %v569 = vmul.f32 %v257, %v317
  %v570 = vmul.f32 %v258, %v317
  %v571 = vmul.f32 %v259, %v317
  %v572 = vmul.f32 %v260, %v317
  %v573 = vmul.f32 %v261, %v317
  %v574 = vmul.f32 %v262, %v317
  %v575 = vmul.f32 %v263, %v317
  %v576 = vmul.f32 %v264, %v317
  %v577 = vmul.f32 %v265, %v317
  %v578 = vmul.f32 %v266, %v317
  %v579 = vmul.f32 %v267, %v317
  %v580 = vmul.f32 %v268, %v317
  %v581 = vmul.f32 %v269, %v317
  %v582 = vld [vmem:[%s2] sm:$0x1]
  %v583 = vld [vmem:[%s2 + $0x1] sm:$0x1]
  %v584 = vld [vmem:[%s2 + $0x2] sm:$0x1]
  %v585 = vld [vmem:[%s2 + $0x3] sm:$0x1]
  %v586 = vld [vmem:[%s2 + $0x4] sm:$0x1]
  %v587 = vld [vmem:[%s2 + $0x5] sm:$0x1]
  %v588 = vld [vmem:[%s2 + $0x6] sm:$0x1]
  %v589 = vld [vmem:[%s2 + $0x7] sm:$0x1]
  %v598 = vlaneseq
  %v599 = vshrl.u32 %v598, 7
  %v600 = vsub.s32 0, %v599
  %v601 = vrot.slane %v582, %v600
  %v602 = vlaneseq
  %v603 = vshrl.u32 %v602, 7
  %v604 = vsub.s32 0, %v603
  %v605 = vrot.slane %v583, %v604
  %v606 = vlaneseq
  %v607 = vshrl.u32 %v606, 7
  %v608 = vsub.s32 0, %v607
  %v609 = vrot.slane %v584, %v608
  %v610 = vlaneseq
  %v611 = vshrl.u32 %v610, 7
  %v612 = vsub.s32 0, %v611
  %v613 = vrot.slane %v585, %v612
  %v614 = vlaneseq
  %v615 = vshrl.u32 %v614, 7
  %v616 = vsub.s32 0, %v615
  %v617 = vrot.slane %v586, %v616
  %v618 = vlaneseq
  %v619 = vshrl.u32 %v618, 7
  %v620 = vsub.s32 0, %v619
  %v621 = vrot.slane %v587, %v620
  %v622 = vlaneseq
  %v623 = vshrl.u32 %v622, 7
  %v624 = vsub.s32 0, %v623
  %v625 = vrot.slane %v588, %v624
  %v626 = vlaneseq
  %v627 = vshrl.u32 %v626, 7
  %v628 = vsub.s32 0, %v627
  %v629 = vrot.slane %v589, %v628
  %v638 = vadd.f32 %v326, %v601
  %v639 = vadd.f32 %v327, %v601
  %v640 = vadd.f32 %v328, %v601
  %v641 = vadd.f32 %v329, %v601
  %v642 = vadd.f32 %v330, %v601
  %v643 = vadd.f32 %v331, %v601
  %v644 = vadd.f32 %v332, %v601
  %v645 = vadd.f32 %v333, %v601
  %v646 = vadd.f32 %v334, %v601
  %v647 = vadd.f32 %v335, %v601
  %v648 = vadd.f32 %v336, %v601
  %v649 = vadd.f32 %v337, %v601
  %v650 = vadd.f32 %v338, %v601
  %v651 = vadd.f32 %v339, %v601
  %v652 = vadd.f32 %v340, %v601
  %v653 = vadd.f32 %v341, %v601
  %v654 = vadd.f32 %v342, %v601
  %v655 = vadd.f32 %v343, %v601
  %v656 = vadd.f32 %v344, %v601
  %v657 = vadd.f32 %v345, %v601
  %v658 = vadd.f32 %v346, %v601
  %v659 = vadd.f32 %v347, %v601
  %v660 = vadd.f32 %v348, %v601
  %v661 = vadd.f32 %v349, %v601
  %v662 = vadd.f32 %v350, %v601
  %v663 = vadd.f32 %v351, %v601
  %v664 = vadd.f32 %v352, %v601
  %v665 = vadd.f32 %v353, %v601
  %v666 = vadd.f32 %v354, %v601
  %v667 = vadd.f32 %v355, %v601
  %v668 = vadd.f32 %v356, %v601
  %v669 = vadd.f32 %v357, %v601
  %v670 = vadd.f32 %v358, %v605
  %v671 = vadd.f32 %v359, %v605
  %v672 = vadd.f32 %v360, %v605
  %v673 = vadd.f32 %v361, %v605
  %v674 = vadd.f32 %v362, %v605
  %v675 = vadd.f32 %v363, %v605
  %v676 = vadd.f32 %v364, %v605
  %v677 = vadd.f32 %v365, %v605
  %v678 = vadd.f32 %v366, %v605
  %v679 = vadd.f32 %v367, %v605
  %v680 = vadd.f32 %v368, %v605
  %v681 = vadd.f32 %v369, %v605
  %v682 = vadd.f32 %v370, %v605
  %v683 = vadd.f32 %v371, %v605
  %v684 = vadd.f32 %v372, %v605
  %v685 = vadd.f32 %v373, %v605
  %v686 = vadd.f32 %v374, %v605
  %v687 = vadd.f32 %v375, %v605
  %v688 = vadd.f32 %v376, %v605
  %v689 = vadd.f32 %v377, %v605
  %v690 = vadd.f32 %v378, %v605
  %v691 = vadd.f32 %v379, %v605
  %v692 = vadd.f32 %v380, %v605
  %v693 = vadd.f32 %v381, %v605
  %v694 = vadd.f32 %v382, %v605
  %v695 = vadd.f32 %v383, %v605
  %v696 = vadd.f32 %v384, %v605
  %v697 = vadd.f32 %v385, %v605
  %v698 = vadd.f32 %v386, %v605
  %v699 = vadd.f32 %v387, %v605
  %v700 = vadd.f32 %v388, %v605
  %v701 = vadd.f32 %v389, %v605
  %v702 = vadd.f32 %v390, %v609
  %v703 = vadd.f32 %v391, %v609
  %v704 = vadd.f32 %v392, %v609
  %v705 = vadd.f32 %v393, %v609
  %v706 = vadd.f32 %v394, %v609
  %v707 = vadd.f32 %v395, %v609
  %v708 = vadd.f32 %v396, %v609
  %v709 = vadd.f32 %v397, %v609
  %v710 = vadd.f32 %v398, %v609
  %v711 = vadd.f32 %v399, %v609
  %v712 = vadd.f32 %v400, %v609
  %v713 = vadd.f32 %v401, %v609
  %v714 = vadd.f32 %v402, %v609
  %v715 = vadd.f32 %v403, %v609
  %v716 = vadd.f32 %v404, %v609
  %v717 = vadd.f32 %v405, %v609
  %v718 = vadd.f32 %v406, %v609
  %v719 = vadd.f32 %v407, %v609
  %v720 = vadd.f32 %v408, %v609
  %v721 = vadd.f32 %v409, %v609
  %v722 = vadd.f32 %v410, %v609
  %v723 = vadd.f32 %v411, %v609
  %v724 = vadd.f32 %v412, %v609
  %v725 = vadd.f32 %v413, %v609
  %v726 = vadd.f32 %v414, %v609
  %v727 = vadd.f32 %v415, %v609
  %v728 = vadd.f32 %v416, %v609
  %v729 = vadd.f32 %v417, %v609
  %v730 = vadd.f32 %v418, %v609
  %v731 = vadd.f32 %v419, %v609
  %v732 = vadd.f32 %v420, %v609
  %v733 = vadd.f32 %v421, %v609
  %v734 = vadd.f32 %v422, %v613
  %v735 = vadd.f32 %v423, %v613
  %v736 = vadd.f32 %v424, %v613
  %v737 = vadd.f32 %v425, %v613
  %v738 = vadd.f32 %v426, %v613
  %v739 = vadd.f32 %v427, %v613
  %v740 = vadd.f32 %v428, %v613
  %v741 = vadd.f32 %v429, %v613
  %v742 = vadd.f32 %v430, %v613
  %v743 = vadd.f32 %v431, %v613
  %v744 = vadd.f32 %v432, %v613
  %v745 = vadd.f32 %v433, %v613
  %v746 = vadd.f32 %v434, %v613
  %v747 = vadd.f32 %v435, %v613
  %v748 = vadd.f32 %v436, %v613
  %v749 = vadd.f32 %v437, %v613
  %v750 = vadd.f32 %v438, %v613
  %v751 = vadd.f32 %v439, %v613
  %v752 = vadd.f32 %v440, %v613
  %v753 = vadd.f32 %v441, %v613
  %v754 = vadd.f32 %v442, %v613
  %v755 = vadd.f32 %v443, %v613
  %v756 = vadd.f32 %v444, %v613
  %v757 = vadd.f32 %v445, %v613
  %v758 = vadd.f32 %v446, %v613
  %v759 = vadd.f32 %v447, %v613
  %v760 = vadd.f32 %v448, %v613
  %v761 = vadd.f32 %v449, %v613
  %v762 = vadd.f32 %v450, %v613
  %v763 = vadd.f32 %v451, %v613
  %v764 = vadd.f32 %v452, %v613
  %v765 = vadd.f32 %v453, %v613
  %v766 = vadd.f32 %v454, %v617
  %v767 = vadd.f32 %v455, %v617
  %v768 = vadd.f32 %v456, %v617
  %v769 = vadd.f32 %v457, %v617
  %v770 = vadd.f32 %v458, %v617
  %v771 = vadd.f32 %v459, %v617
  %v772 = vadd.f32 %v460, %v617
  %v773 = vadd.f32 %v461, %v617
  %v774 = vadd.f32 %v462, %v617
  %v775 = vadd.f32 %v463, %v617
  %v776 = vadd.f32 %v464, %v617
  %v777 = vadd.f32 %v465, %v617
  %v778 = vadd.f32 %v466, %v617
  %v779 = vadd.f32 %v467, %v617
  %v780 = vadd.f32 %v468, %v617
  %v781 = vadd.f32 %v469, %v617
  %v782 = vadd.f32 %v470, %v617
  %v783 = vadd.f32 %v471, %v617
  %v784 = vadd.f32 %v472, %v617
  %v785 = vadd.f32 %v473, %v617
  %v786 = vadd.f32 %v474, %v617
  %v787 = vadd.f32 %v475, %v617
  %v788 = vadd.f32 %v476, %v617
  %v789 = vadd.f32 %v477, %v617
  %v790 = vadd.f32 %v478, %v617
  %v791 = vadd.f32 %v479, %v617
  %v792 = vadd.f32 %v480, %v617
  %v793 = vadd.f32 %v481, %v617
  %v794 = vadd.f32 %v482, %v617
  %v795 = vadd.f32 %v483, %v617
  %v796 = vadd.f32 %v484, %v617
  %v797 = vadd.f32 %v485, %v617
  %v798 = vadd.f32 %v486, %v621
  %v799 = vadd.f32 %v487, %v621
  %v800 = vadd.f32 %v488, %v621
  %v801 = vadd.f32 %v489, %v621
  %v802 = vadd.f32 %v490, %v621
  %v803 = vadd.f32 %v491, %v621
  %v804 = vadd.f32 %v492, %v621
  %v805 = vadd.f32 %v493, %v621
  %v806 = vadd.f32 %v494, %v621
  %v807 = vadd.f32 %v495, %v621
  %v808 = vadd.f32 %v496, %v621
  %v809 = vadd.f32 %v497, %v621
  %v810 = vadd.f32 %v498, %v621
  %v811 = vadd.f32 %v499, %v621
  %v812 = vadd.f32 %v500, %v621
  %v813 = vadd.f32 %v501, %v621
  %v814 = vadd.f32 %v502, %v621
  %v815 = vadd.f32 %v503, %v621
  %v816 = vadd.f32 %v504, %v621
  %v817 = vadd.f32 %v505, %v621
  %v818 = vadd.f32 %v506, %v621
  %v819 = vadd.f32 %v507, %v621
  %v820 = vadd.f32 %v508, %v621
  %v821 = vadd.f32 %v509, %v621
  %v822 = vadd.f32 %v510, %v621
  %v823 = vadd.f32 %v511, %v621
  %v824 = vadd.f32 %v512, %v621
  %v825 = vadd.f32 %v513, %v621
  %v826 = vadd.f32 %v514, %v621
  %v827 = vadd.f32 %v515, %v621
  %v828 = vadd.f32 %v516, %v621
  %v829 = vadd.f32 %v517, %v621
  %v830 = vadd.f32 %v518, %v625
  %v831 = vadd.f32 %v519, %v625
  %v832 = vadd.f32 %v520, %v625
  %v833 = vadd.f32 %v521, %v625
  %v834 = vadd.f32 %v522, %v625
  %v835 = vadd.f32 %v523, %v625
  %v836 = vadd.f32 %v524, %v625
  %v837 = vadd.f32 %v525, %v625
  %v838 = vadd.f32 %v526, %v625
  %v839 = vadd.f32 %v527, %v625
  %v840 = vadd.f32 %v528, %v625
  %v841 = vadd.f32 %v529, %v625
  %v842 = vadd.f32 %v530, %v625
  %v843 = vadd.f32 %v531, %v625
  %v844 = vadd.f32 %v532, %v625
  %v845 = vadd.f32 %v533, %v625
  %v846 = vadd.f32 %v534, %v625
  %v847 = vadd.f32 %v535, %v625
  %v848 = vadd.f32 %v536, %v625
  %v849 = vadd.f32 %v537, %v625
  %v850 = vadd.f32 %v538, %v625
  %v851 = vadd.f32 %v539, %v625
  %v852 = vadd.f32 %v540, %v625
  %v853 = vadd.f32 %v541, %v625
  %v854 = vadd.f32 %v542, %v625
  %v855 = vadd.f32 %v543, %v625
  %v856 = vadd.f32 %v544, %v625
  %v857 = vadd.f32 %v545, %v625
  %v858 = vadd.f32 %v546, %v625
  %v859 = vadd.f32 %v547, %v625
  %v860 = vadd.f32 %v548, %v625
  %v861 = vadd.f32 %v549, %v625
  %v862 = vadd.f32 %v550, %v629
  %v863 = vadd.f32 %v551, %v629
  %v864 = vadd.f32 %v552, %v629
  %v865 = vadd.f32 %v553, %v629
  %v866 = vadd.f32 %v554, %v629
  %v867 = vadd.f32 %v555, %v629
  %v868 = vadd.f32 %v556, %v629
  %v869 = vadd.f32 %v557, %v629
  %v870 = vadd.f32 %v558, %v629
  %v871 = vadd.f32 %v559, %v629
  %v872 = vadd.f32 %v560, %v629
  %v873 = vadd.f32 %v561, %v629
  %v874 = vadd.f32 %v562, %v629
  %v875 = vadd.f32 %v563, %v629
  %v876 = vadd.f32 %v564, %v629
  %v877 = vadd.f32 %v565, %v629
  %v878 = vadd.f32 %v566, %v629
  %v879 = vadd.f32 %v567, %v629
  %v880 = vadd.f32 %v568, %v629
  %v881 = vadd.f32 %v569, %v629
  %v882 = vadd.f32 %v570, %v629
  %v883 = vadd.f32 %v571, %v629
  %v884 = vadd.f32 %v572, %v629
  %v885 = vadd.f32 %v573, %v629
  %v886 = vadd.f32 %v574, %v629
  %v887 = vadd.f32 %v575, %v629
  %v888 = vadd.f32 %v576, %v629
  %v889 = vadd.f32 %v577, %v629
  %v890 = vadd.f32 %v578, %v629
  %v891 = vadd.f32 %v579, %v629
  %v892 = vadd.f32 %v580, %v629
  %v893 = vadd.f32 %v581, %v629
  %894 = vst [vmem:[%s3] sm:$0xff] %v638
  %895 = vst [vmem:[%s3 + $0x8] sm:$0xff] %v639
  %896 = vst [vmem:[%s3 + $0x10] sm:$0xff] %v640
  %897 = vst [vmem:[%s3 + $0x18] sm:$0xff] %v641
  %898 = vst [vmem:[%s3 + $0x20] sm:$0xff] %v642
  %899 = vst [vmem:[%s3 + $0x28] sm:$0xff] %v643
  %900 = vst [vmem:[%s3 + $0x30] sm:$0xff] %v644
  %901 = vst [vmem:[%s3 + $0x38] sm:$0xff] %v645
  %902 = vst [vmem:[%s3 + $0x40] sm:$0xff] %v646
  %903 = vst [vmem:[%s3 + $0x48] sm:$0xff] %v647
  %904 = vst [vmem:[%s3 + $0x50] sm:$0xff] %v648
  %905 = vst [vmem:[%s3 + $0x58] sm:$0xff] %v649
  %906 = vst [vmem:[%s3 + $0x60] sm:$0xff] %v650
  %907 = vst [vmem:[%s3 + $0x68] sm:$0xff] %v651
  %908 = vst [vmem:[%s3 + $0x70] sm:$0xff] %v652
  %909 = vst [vmem:[%s3 + $0x78] sm:$0xff] %v653
  %910 = vst [vmem:[%s3 + $0x80] sm:$0xff] %v654
  %911 = vst [vmem:[%s3 + $0x88] sm:$0xff] %v655
  %912 = vst [vmem:[%s3 + $0x90] sm:$0xff] %v656
  %913 = vst [vmem:[%s3 + $0x98] sm:$0xff] %v657
  %914 = vst [vmem:[%s3 + $0xa0] sm:$0xff] %v658
  %915 = vst [vmem:[%s3 + $0xa8] sm:$0xff] %v659
  %916 = vst [vmem:[%s3 + $0xb0] sm:$0xff] %v660
  %917 = vst [vmem:[%s3 + $0xb8] sm:$0xff] %v661
  %918 = vst [vmem:[%s3 + $0xc0] sm:$0xff] %v662
  %919 = vst [vmem:[%s3 + $0xc8] sm:$0xff] %v663
  %920 = vst [vmem:[%s3 + $0xd0] sm:$0xff] %v664
  %921 = vst [vmem:[%s3 + $0xd8] sm:$0xff] %v665
  %922 = vst [vmem:[%s3 + $0xe0] sm:$0xff] %v666
  %923 = vst [vmem:[%s3 + $0xe8] sm:$0xff] %v667
  %924 = vst [vmem:[%s3 + $0xf0] sm:$0xff] %v668
  %925 = vst [vmem:[%s3 + $0xf8] sm:$0xff] %v669
  %926 = vst [vmem:[%s3 + $0x100] sm:$0xff] %v670
  %927 = vst [vmem:[%s3 + $0x108] sm:$0xff] %v671
  %928 = vst [vmem:[%s3 + $0x110] sm:$0xff] %v672
  %929 = vst [vmem:[%s3 + $0x118] sm:$0xff] %v673
  %930 = vst [vmem:[%s3 + $0x120] sm:$0xff] %v674
  %931 = vst [vmem:[%s3 + $0x128] sm:$0xff] %v675
  %932 = vst [vmem:[%s3 + $0x130] sm:$0xff] %v676
  %933 = vst [vmem:[%s3 + $0x138] sm:$0xff] %v677
  %934 = vst [vmem:[%s3 + $0x140] sm:$0xff] %v678
  %935 = vst [vmem:[%s3 + $0x148] sm:$0xff] %v679
  %936 = vst [vmem:[%s3 + $0x150] sm:$0xff] %v680
  %937 = vst [vmem:[%s3 + $0x158] sm:$0xff] %v681
  %938 = vst [vmem:[%s3 + $0x160] sm:$0xff] %v682
  %939 = vst [vmem:[%s3 + $0x168] sm:$0xff] %v683
  %940 = vst [vmem:[%s3 + $0x170] sm:$0xff] %v684
  %941 = vst [vmem:[%s3 + $0x178] sm:$0xff] %v685
  %942 = vst [vmem:[%s3 + $0x180] sm:$0xff] %v686
  %943 = vst [vmem:[%s3 + $0x188] sm:$0xff] %v687
  %944 = vst [vmem:[%s3 + $0x190] sm:$0xff] %v688
  %945 = vst [vmem:[%s3 + $0x198] sm:$0xff] %v689
  %946 = vst [vmem:[%s3 + $0x1a0] sm:$0xff] %v690
  %947 = vst [vmem:[%s3 + $0x1a8] sm:$0xff] %v691
  %948 = vst [vmem:[%s3 + $0x1b0] sm:$0xff] %v692
  %949 = vst [vmem:[%s3 + $0x1b8] sm:$0xff] %v693
  %950 = vst [vmem:[%s3 + $0x1c0] sm:$0xff] %v694
  %951 = vst [vmem:[%s3 + $0x1c8] sm:$0xff] %v695
  %952 = vst [vmem:[%s3 + $0x1d0] sm:$0xff] %v696
  %953 = vst [vmem:[%s3 + $0x1d8] sm:$0xff] %v697
  %954 = vst [vmem:[%s3 + $0x1e0] sm:$0xff] %v698
  %955 = vst [vmem:[%s3 + $0x1e8] sm:$0xff] %v699
  %956 = vst [vmem:[%s3 + $0x1f0] sm:$0xff] %v700
  %957 = vst [vmem:[%s3 + $0x1f8] sm:$0xff] %v701
  %958 = vst [vmem:[%s3 + $0x200] sm:$0xff] %v702
  %959 = vst [vmem:[%s3 + $0x208] sm:$0xff] %v703
  %960 = vst [vmem:[%s3 + $0x210] sm:$0xff] %v704
  %961 = vst [vmem:[%s3 + $0x218] sm:$0xff] %v705
  %962 = vst [vmem:[%s3 + $0x220] sm:$0xff] %v706
  %963 = vst [vmem:[%s3 + $0x228] sm:$0xff] %v707
  %964 = vst [vmem:[%s3 + $0x230] sm:$0xff] %v708
  %965 = vst [vmem:[%s3 + $0x238] sm:$0xff] %v709
  %966 = vst [vmem:[%s3 + $0x240] sm:$0xff] %v710
  %967 = vst [vmem:[%s3 + $0x248] sm:$0xff] %v711
  %968 = vst [vmem:[%s3 + $0x250] sm:$0xff] %v712
  %969 = vst [vmem:[%s3 + $0x258] sm:$0xff] %v713
  %970 = vst [vmem:[%s3 + $0x260] sm:$0xff] %v714
  %971 = vst [vmem:[%s3 + $0x268] sm:$0xff] %v715
  %972 = vst [vmem:[%s3 + $0x270] sm:$0xff] %v716
  %973 = vst [vmem:[%s3 + $0x278] sm:$0xff] %v717
  %974 = vst [vmem:[%s3 + $0x280] sm:$0xff] %v718
  %975 = vst [vmem:[%s3 + $0x288] sm:$0xff] %v719
  %976 = vst [vmem:[%s3 + $0x290] sm:$0xff] %v720
  %977 = vst [vmem:[%s3 + $0x298] sm:$0xff] %v721
  %978 = vst [vmem:[%s3 + $0x2a0] sm:$0xff] %v722
  %979 = vst [vmem:[%s3 + $0x2a8] sm:$0xff] %v723
  %980 = vst [vmem:[%s3 + $0x2b0] sm:$0xff] %v724
  %981 = vst [vmem:[%s3 + $0x2b8] sm:$0xff] %v725
  %982 = vst [vmem:[%s3 + $0x2c0] sm:$0xff] %v726
  %983 = vst [vmem:[%s3 + $0x2c8] sm:$0xff] %v727
  %984 = vst [vmem:[%s3 + $0x2d0] sm:$0xff] %v728
  %985 = vst [vmem:[%s3 + $0x2d8] sm:$0xff] %v729
  %986 = vst [vmem:[%s3 + $0x2e0] sm:$0xff] %v730
  %987 = vst [vmem:[%s3 + $0x2e8] sm:$0xff] %v731
  %988 = vst [vmem:[%s3 + $0x2f0] sm:$0xff] %v732
  %989 = vst [vmem:[%s3 + $0x2f8] sm:$0xff] %v733
  %990 = vst [vmem:[%s3 + $0x300] sm:$0xff] %v734
  %991 = vst [vmem:[%s3 + $0x308] sm:$0xff] %v735
  %992 = vst [vmem:[%s3 + $0x310] sm:$0xff] %v736
  %993 = vst [vmem:[%s3 + $0x318] sm:$0xff] %v737
  %994 = vst [vmem:[%s3 + $0x320] sm:$0xff] %v738
  %995 = vst [vmem:[%s3 + $0x328] sm:$0xff] %v739
  %996 = vst [vmem:[%s3 + $0x330] sm:$0xff] %v740
  %997 = vst [vmem:[%s3 + $0x338] sm:$0xff] %v741
  %998 = vst [vmem:[%s3 + $0x340] sm:$0xff] %v742
  %999 = vst [vmem:[%s3 + $0x348] sm:$0xff] %v743
  %1000 = vst [vmem:[%s3 + $0x350] sm:$0xff] %v744
  %1001 = vst [vmem:[%s3 + $0x358] sm:$0xff] %v745
  %1002 = vst [vmem:[%s3 + $0x360] sm:$0xff] %v746
  %1003 = vst [vmem:[%s3 + $0x368] sm:$0xff] %v747
  %1004 = vst [vmem:[%s3 + $0x370] sm:$0xff] %v748
  %1005 = vst [vmem:[%s3 + $0x378] sm:$0xff] %v749
  %1006 = vst [vmem:[%s3 + $0x380] sm:$0xff] %v750
  %1007 = vst [vmem:[%s3 + $0x388] sm:$0xff] %v751
  %1008 = vst [vmem:[%s3 + $0x390] sm:$0xff] %v752
  %1009 = vst [vmem:[%s3 + $0x398] sm:$0xff] %v753
  %1010 = vst [vmem:[%s3 + $0x3a0] sm:$0xff] %v754
  %1011 = vst [vmem:[%s3 + $0x3a8] sm:$0xff] %v755
  %1012 = vst [vmem:[%s3 + $0x3b0] sm:$0xff] %v756
  %1013 = vst [vmem:[%s3 + $0x3b8] sm:$0xff] %v757
  %1014 = vst [vmem:[%s3 + $0x3c0] sm:$0xff] %v758
  %1015 = vst [vmem:[%s3 + $0x3c8] sm:$0xff] %v759
  %1016 = vst [vmem:[%s3 + $0x3d0] sm:$0xff] %v760
  %1017 = vst [vmem:[%s3 + $0x3d8] sm:$0xff] %v761
  %1018 = vst [vmem:[%s3 + $0x3e0] sm:$0xff] %v762
  %1019 = vst [vmem:[%s3 + $0x3e8] sm:$0xff] %v763
  %1020 = vst [vmem:[%s3 + $0x3f0] sm:$0xff] %v764
  %1021 = vst [vmem:[%s3 + $0x3f8] sm:$0xff] %v765
  %1022 = vst [vmem:[%s3 + $0x400] sm:$0xff] %v766
  %1023 = vst [vmem:[%s3 + $0x408] sm:$0xff] %v767
  %1024 = vst [vmem:[%s3 + $0x410] sm:$0xff] %v768
  %1025 = vst [vmem:[%s3 + $0x418] sm:$0xff] %v769
  %1026 = vst [vmem:[%s3 + $0x420] sm:$0xff] %v770
  %1027 = vst [vmem:[%s3 + $0x428] sm:$0xff] %v771
  %1028 = vst [vmem:[%s3 + $0x430] sm:$0xff] %v772
  %1029 = vst [vmem:[%s3 + $0x438] sm:$0xff] %v773
  %1030 = vst [vmem:[%s3 + $0x440] sm:$0xff] %v774
  %1031 = vst [vmem:[%s3 + $0x448] sm:$0xff] %v775
  %1032 = vst [vmem:[%s3 + $0x450] sm:$0xff] %v776
  %1033 = vst [vmem:[%s3 + $0x458] sm:$0xff] %v777
  %1034 = vst [vmem:[%s3 + $0x460] sm:$0xff] %v778
  %1035 = vst [vmem:[%s3 + $0x468] sm:$0xff] %v779
  %1036 = vst [vmem:[%s3 + $0x470] sm:$0xff] %v780
  %1037 = vst [vmem:[%s3 + $0x478] sm:$0xff] %v781
  %1038 = vst [vmem:[%s3 + $0x480] sm:$0xff] %v782
  %1039 = vst [vmem:[%s3 + $0x488] sm:$0xff] %v783
  %1040 = vst [vmem:[%s3 + $0x490] sm:$0xff] %v784
  %1041 = vst [vmem:[%s3 + $0x498] sm:$0xff] %v785
  %1042 = vst [vmem:[%s3 + $0x4a0] sm:$0xff] %v786
  %1043 = vst [vmem:[%s3 + $0x4a8] sm:$0xff] %v787
  %1044 = vst [vmem:[%s3 + $0x4b0] sm:$0xff] %v788
  %1045 = vst [vmem:[%s3 + $0x4b8] sm:$0xff] %v789
  %1046 = vst [vmem:[%s3 + $0x4c0] sm:$0xff] %v790
  %1047 = vst [vmem:[%s3 + $0x4c8] sm:$0xff] %v791
  %1048 = vst [vmem:[%s3 + $0x4d0] sm:$0xff] %v792
  %1049 = vst [vmem:[%s3 + $0x4d8] sm:$0xff] %v793
  %1050 = vst [vmem:[%s3 + $0x4e0] sm:$0xff] %v794
  %1051 = vst [vmem:[%s3 + $0x4e8] sm:$0xff] %v795
  %1052 = vst [vmem:[%s3 + $0x4f0] sm:$0xff] %v796
  %1053 = vst [vmem:[%s3 + $0x4f8] sm:$0xff] %v797
  %1054 = vst [vmem:[%s3 + $0x500] sm:$0xff] %v798
  %1055 = vst [vmem:[%s3 + $0x508] sm:$0xff] %v799
  %1056 = vst [vmem:[%s3 + $0x510] sm:$0xff] %v800
  %1057 = vst [vmem:[%s3 + $0x518] sm:$0xff] %v801
  %1058 = vst [vmem:[%s3 + $0x520] sm:$0xff] %v802
  %1059 = vst [vmem:[%s3 + $0x528] sm:$0xff] %v803
  %1060 = vst [vmem:[%s3 + $0x530] sm:$0xff] %v804
  %1061 = vst [vmem:[%s3 + $0x538] sm:$0xff] %v805
  %1062 = vst [vmem:[%s3 + $0x540] sm:$0xff] %v806
  %1063 = vst [vmem:[%s3 + $0x548] sm:$0xff] %v807
  %1064 = vst [vmem:[%s3 + $0x550] sm:$0xff] %v808
  %1065 = vst [vmem:[%s3 + $0x558] sm:$0xff] %v809
  %1066 = vst [vmem:[%s3 + $0x560] sm:$0xff] %v810
  %1067 = vst [vmem:[%s3 + $0x568] sm:$0xff] %v811
  %1068 = vst [vmem:[%s3 + $0x570] sm:$0xff] %v812
  %1069 = vst [vmem:[%s3 + $0x578] sm:$0xff] %v813
  %1070 = vst [vmem:[%s3 + $0x580] sm:$0xff] %v814
  %1071 = vst [vmem:[%s3 + $0x588] sm:$0xff] %v815
  %1072 = vst [vmem:[%s3 + $0x590] sm:$0xff] %v816
  %1073 = vst [vmem:[%s3 + $0x598] sm:$0xff] %v817
  %1074 = vst [vmem:[%s3 + $0x5a0] sm:$0xff] %v818
  %1075 = vst [vmem:[%s3 + $0x5a8] sm:$0xff] %v819
  %1076 = vst [vmem:[%s3 + $0x5b0] sm:$0xff] %v820
  %1077 = vst [vmem:[%s3 + $0x5b8] sm:$0xff] %v821
  %1078 = vst [vmem:[%s3 + $0x5c0] sm:$0xff] %v822
  %1079 = vst [vmem:[%s3 + $0x5c8] sm:$0xff] %v823
  %1080 = vst [vmem:[%s3 + $0x5d0] sm:$0xff] %v824
  %1081 = vst [vmem:[%s3 + $0x5d8] sm:$0xff] %v825
  %1082 = vst [vmem:[%s3 + $0x5e0] sm:$0xff] %v826
  %1083 = vst [vmem:[%s3 + $0x5e8] sm:$0xff] %v827
  %1084 = vst [vmem:[%s3 + $0x5f0] sm:$0xff] %v828
  %1085 = vst [vmem:[%s3 + $0x5f8] sm:$0xff] %v829
  %1086 = vst [vmem:[%s3 + $0x600] sm:$0xff] %v830
  %1087 = vst [vmem:[%s3 + $0x608] sm:$0xff] %v831
  %1088 = vst [vmem:[%s3 + $0x610] sm:$0xff] %v832
  %1089 = vst [vmem:[%s3 + $0x618] sm:$0xff] %v833
  %1090 = vst [vmem:[%s3 + $0x620] sm:$0xff] %v834
  %1091 = vst [vmem:[%s3 + $0x628] sm:$0xff] %v835
  %1092 = vst [vmem:[%s3 + $0x630] sm:$0xff] %v836
  %1093 = vst [vmem:[%s3 + $0x638] sm:$0xff] %v837
  %1094 = vst [vmem:[%s3 + $0x640] sm:$0xff] %v838
  %1095 = vst [vmem:[%s3 + $0x648] sm:$0xff] %v839
  %1096 = vst [vmem:[%s3 + $0x650] sm:$0xff] %v840
  %1097 = vst [vmem:[%s3 + $0x658] sm:$0xff] %v841
  %1098 = vst [vmem:[%s3 + $0x660] sm:$0xff] %v842
  %1099 = vst [vmem:[%s3 + $0x668] sm:$0xff] %v843
  %1100 = vst [vmem:[%s3 + $0x670] sm:$0xff] %v844
  %1101 = vst [vmem:[%s3 + $0x678] sm:$0xff] %v845
  %1102 = vst [vmem:[%s3 + $0x680] sm:$0xff] %v846
  %1103 = vst [vmem:[%s3 + $0x688] sm:$0xff] %v847
  %1104 = vst [vmem:[%s3 + $0x690] sm:$0xff] %v848
  %1105 = vst [vmem:[%s3 + $0x698] sm:$0xff] %v849
  %1106 = vst [vmem:[%s3 + $0x6a0] sm:$0xff] %v850
  %1107 = vst [vmem:[%s3 + $0x6a8] sm:$0xff] %v851
  %1108 = vst [vmem:[%s3 + $0x6b0] sm:$0xff] %v852
  %1109 = vst [vmem:[%s3 + $0x6b8] sm:$0xff] %v853
  %1110 = vst [vmem:[%s3 + $0x6c0] sm:$0xff] %v854
  %1111 = vst [vmem:[%s3 + $0x6c8] sm:$0xff] %v855
  %1112 = vst [vmem:[%s3 + $0x6d0] sm:$0xff] %v856
  %1113 = vst [vmem:[%s3 + $0x6d8] sm:$0xff] %v857
  %1114 = vst [vmem:[%s3 + $0x6e0] sm:$0xff] %v858
  %1115 = vst [vmem:[%s3 + $0x6e8] sm:$0xff] %v859
  %1116 = vst [vmem:[%s3 + $0x6f0] sm:$0xff] %v860
  %1117 = vst [vmem:[%s3 + $0x6f8] sm:$0xff] %v861
  %1118 = vst [vmem:[%s3 + $0x700] sm:$0xff] %v862
  %1119 = vst [vmem:[%s3 + $0x708] sm:$0xff] %v863
  %1120 = vst [vmem:[%s3 + $0x710] sm:$0xff] %v864
  %1121 = vst [vmem:[%s3 + $0x718] sm:$0xff] %v865
  %1122 = vst [vmem:[%s3 + $0x720] sm:$0xff] %v866
  %1123 = vst [vmem:[%s3 + $0x728] sm:$0xff] %v867
  %1124 = vst [vmem:[%s3 + $0x730] sm:$0xff] %v868
  %1125 = vst [vmem:[%s3 + $0x738] sm:$0xff] %v869
  %1126 = vst [vmem:[%s3 + $0x740] sm:$0xff] %v870
  %1127 = vst [vmem:[%s3 + $0x748] sm:$0xff] %v871
  %1128 = vst [vmem:[%s3 + $0x750] sm:$0xff] %v872
  %1129 = vst [vmem:[%s3 + $0x758] sm:$0xff] %v873
  %1130 = vst [vmem:[%s3 + $0x760] sm:$0xff] %v874
  %1131 = vst [vmem:[%s3 + $0x768] sm:$0xff] %v875
  %1132 = vst [vmem:[%s3 + $0x770] sm:$0xff] %v876
  %1133 = vst [vmem:[%s3 + $0x778] sm:$0xff] %v877
  %1134 = vst [vmem:[%s3 + $0x780] sm:$0xff] %v878
  %1135 = vst [vmem:[%s3 + $0x788] sm:$0xff] %v879
  %1136 = vst [vmem:[%s3 + $0x790] sm:$0xff] %v880
  %1137 = vst [vmem:[%s3 + $0x798] sm:$0xff] %v881
  %1138 = vst [vmem:[%s3 + $0x7a0] sm:$0xff] %v882
  %1139 = vst [vmem:[%s3 + $0x7a8] sm:$0xff] %v883
  %1140 = vst [vmem:[%s3 + $0x7b0] sm:$0xff] %v884
  %1141 = vst [vmem:[%s3 + $0x7b8] sm:$0xff] %v885
  %1142 = vst [vmem:[%s3 + $0x7c0] sm:$0xff] %v886
  %1143 = vst [vmem:[%s3 + $0x7c8] sm:$0xff] %v887
  %1144 = vst [vmem:[%s3 + $0x7d0] sm:$0xff] %v888
  %1145 = vst [vmem:[%s3 + $0x7d8] sm:$0xff] %v889
  %1146 = vst [vmem:[%s3 + $0x7e0] sm:$0xff] %v890
  %1147 = vst [vmem:[%s3 + $0x7e8] sm:$0xff] %v891
  %1148 = vst [vmem:[%s3 + $0x7f0] sm:$0xff] %v892
  %1149 = vst [vmem:[%s3 + $0x7f8] sm:$0xff] %v893
  // Predicated region
  $region14: #{tebn_layer_forward.3} parent=0 // pred_check
    _
  $region15: #{tebn_layer_forward.3} parent=0 // pred_check_branch
    %1151 = sbr.rel (0) target = $region17
  $region16: #{tebn_layer_forward.3} parent=0 // pred_region
    _
  $region17: #{tebn_layer_forward.3} parent=0 // pred_fallthru
    _
  // Predicated region
  $region18: #{tebn_layer_forward.3} parent=0 // pred_check
    _
  $region19: #{tebn_layer_forward.3} parent=0 // pred_check_branch
    %1153 = sbr.rel (0) target = $region21
  $region20: #{tebn_layer_forward.3} parent=0 // pred_region
    _
  $region21: #{tebn_layer_forward.3} parent=0 // pred_fallthru
    _

// kernel: tebn_layer_forward.2
$region0: #{tebn_layer_forward.2}
  #allocation0 [shape = 'u32[]', space=smem, size = 0x4, offset = 0x4, fixed_abs, tag = 'smem constant byte address 0x4 - core index']
  #allocation1 [shape = 'u32[144,128]{1,0:T(1,128)}', space=vmem, size = 0x12000, scoped, tag = 'internal scratch']
  %s0 = inlined_call_operand.vmem [shape: bf16[2048,128], index: 0, kind: input, shape index: {}]
  %s1 = inlined_call_operand.vmem [shape: bf16[128,128], index: 1, kind: input, shape index: {}]
  %s2 = inlined_call_operand.vmem [shape: f32[1,128], index: 2, kind: input, shape index: {}]
  %s3 = inlined_call_operand.vmem [shape: f32[2048,128], index: 3, kind: output, shape index: {0}]
  %s4 = inlined_call_operand.vmem [shape: f32[1,1,128], index: 4, kind: output, shape index: {1}]
  %s5 = inlined_call_operand.vmem [shape: f32[1,1,128], index: 5, kind: output, shape index: {2}]
  %6 = xla_tuple %s3, %s4, %s5
  %s7 = sld [smem:[#allocation0]]
  $region38: #{tebn_layer_forward.2} parent=0
    _
  %s9 = ssub.s32 1, %s7
  %s10 = scalar_select 0, %s9, %s7
  // Predicated region
  $region2: #{tebn_layer_forward.2} parent=0 // pred_check
    _
  $region3: #{tebn_layer_forward.2} parent=0 // pred_check_branch
    %12 = sbr.rel (0) target = $region5
  $region4: #{tebn_layer_forward.2} parent=0 // pred_region
    _
  $region5: #{tebn_layer_forward.2} parent=0 // pred_fallthru
    _
  // Predicated region
  $region6: #{tebn_layer_forward.2} parent=0 // pred_check
    _
  $region7: #{tebn_layer_forward.2} parent=0 // pred_check_branch
    %14 = sbr.rel (0) target = $region9
  $region8: #{tebn_layer_forward.2} parent=0 // pred_region
    _
  $region9: #{tebn_layer_forward.2} parent=0 // pred_fallthru
    _
  // Predicated region
  $region10: #{tebn_layer_forward.2} parent=0 // pred_check
    _
  $region11: #{tebn_layer_forward.2} parent=0 // pred_check_branch
    %16 = sbr.rel (0) target = $region13
  $region12: #{tebn_layer_forward.2} parent=0 // pred_region
    _
  $region13: #{tebn_layer_forward.2} parent=0 // pred_fallthru
    _
  %v18 = vld [vmem:[%s0] sm:$0xf]
  %v19 = vld [vmem:[%s0 + $0x4] sm:$0xf]
  %v20 = vld [vmem:[%s0 + $0x8] sm:$0xf]
  %v21 = vld [vmem:[%s0 + $0xc] sm:$0xf]
  %v22 = vld [vmem:[%s0 + $0x10] sm:$0xf]
  %v23 = vld [vmem:[%s0 + $0x14] sm:$0xf]
  %v24 = vld [vmem:[%s0 + $0x18] sm:$0xf]
  %v25 = vld [vmem:[%s0 + $0x1c] sm:$0xf]
  %v26 = vld [vmem:[%s0 + $0x20] sm:$0xf]
  %v27 = vld [vmem:[%s0 + $0x24] sm:$0xf]
  %v28 = vld [vmem:[%s0 + $0x28] sm:$0xf]
  %v29 = vld [vmem:[%s0 + $0x2c] sm:$0xf]
  %v30 = vld [vmem:[%s0 + $0x30] sm:$0xf]
  %v31 = vld [vmem:[%s0 + $0x34] sm:$0xf]
  %v32 = vld [vmem:[%s0 + $0x38] sm:$0xf]
  %v33 = vld [vmem:[%s0 + $0x3c] sm:$0xf]
  %v34 = vld [vmem:[%s0 + $0x40] sm:$0xf]
  %v35 = vld [vmem:[%s0 + $0x44] sm:$0xf]
  %v36 = vld [vmem:[%s0 + $0x48] sm:$0xf]
  %v37 = vld [vmem:[%s0 + $0x4c] sm:$0xf]
  %v38 = vld [vmem:[%s0 + $0x50] sm:$0xf]
  %v39 = vld [vmem:[%s0 + $0x54] sm:$0xf]
  %v40 = vld [vmem:[%s0 + $0x58] sm:$0xf]
  %v41 = vld [vmem:[%s0 + $0x5c] sm:$0xf]
  %v42 = vld [vmem:[%s0 + $0x60] sm:$0xf]
  %v43 = vld [vmem:[%s0 + $0x64] sm:$0xf]
  %v44 = vld [vmem:[%s0 + $0x68] sm:$0xf]
  %v45 = vld [vmem:[%s0 + $0x6c] sm:$0xf]
  %v46 = vld [vmem:[%s0 + $0x70] sm:$0xf]
  %v47 = vld [vmem:[%s0 + $0x74] sm:$0xf]
  %v48 = vld [vmem:[%s0 + $0x78] sm:$0xf]
  %v49 = vld [vmem:[%s0 + $0x7c] sm:$0xf]
  %v50 = vld [vmem:[%s0 + $0x80] sm:$0xf]
  %v51 = vld [vmem:[%s0 + $0x84] sm:$0xf]
  %v52 = vld [vmem:[%s0 + $0x88] sm:$0xf]
  %v53 = vld [vmem:[%s0 + $0x8c] sm:$0xf]
  %v54 = vld [vmem:[%s0 + $0x90] sm:$0xf]
  %v55 = vld [vmem:[%s0 + $0x94] sm:$0xf]
  %v56 = vld [vmem:[%s0 + $0x98] sm:$0xf]
  %v57 = vld [vmem:[%s0 + $0x9c] sm:$0xf]
  %v58 = vld [vmem:[%s0 + $0xa0] sm:$0xf]
  %v59 = vld [vmem:[%s0 + $0xa4] sm:$0xf]
  %v60 = vld [vmem:[%s0 + $0xa8] sm:$0xf]
  %v61 = vld [vmem:[%s0 + $0xac] sm:$0xf]
  %v62 = vld [vmem:[%s0 + $0xb0] sm:$0xf]
  %v63 = vld [vmem:[%s0 + $0xb4] sm:$0xf]
  %v64 = vld [vmem:[%s0 + $0xb8] sm:$0xf]
  %v65 = vld [vmem:[%s0 + $0xbc] sm:$0xf]
  %v66 = vld [vmem:[%s0 + $0xc0] sm:$0xf]
  %v67 = vld [vmem:[%s0 + $0xc4] sm:$0xf]
  %v68 = vld [vmem:[%s0 + $0xc8] sm:$0xf]
  %v69 = vld [vmem:[%s0 + $0xcc] sm:$0xf]
  %v70 = vld [vmem:[%s0 + $0xd0] sm:$0xf]
  %v71 = vld [vmem:[%s0 + $0xd4] sm:$0xf]
  %v72 = vld [vmem:[%s0 + $0xd8] sm:$0xf]
  %v73 = vld [vmem:[%s0 + $0xdc] sm:$0xf]
  %v74 = vld [vmem:[%s0 + $0xe0] sm:$0xf]
  %v75 = vld [vmem:[%s0 + $0xe4] sm:$0xf]
  %v76 = vld [vmem:[%s0 + $0xe8] sm:$0xf]
  %v77 = vld [vmem:[%s0 + $0xec] sm:$0xf]
  %v78 = vld [vmem:[%s0 + $0xf0] sm:$0xf]
  %v79 = vld [vmem:[%s0 + $0xf4] sm:$0xf]
  %v80 = vld [vmem:[%s0 + $0xf8] sm:$0xf]
  %v81 = vld [vmem:[%s0 + $0xfc] sm:$0xf]
  %v82 = vld [vmem:[%s0 + $0x100] sm:$0xf]
  %v83 = vld [vmem:[%s0 + $0x104] sm:$0xf]
  %v84 = vld [vmem:[%s0 + $0x108] sm:$0xf]
  %v85 = vld [vmem:[%s0 + $0x10c] sm:$0xf]
  %v86 = vld [vmem:[%s0 + $0x110] sm:$0xf]
  %v87 = vld [vmem:[%s0 + $0x114] sm:$0xf]
  %v88 = vld [vmem:[%s0 + $0x118] sm:$0xf]
  %v89 = vld [vmem:[%s0 + $0x11c] sm:$0xf]
  %v90 = vld [vmem:[%s0 + $0x120] sm:$0xf]
  %v91 = vld [vmem:[%s0 + $0x124] sm:$0xf]
  %v92 = vld [vmem:[%s0 + $0x128] sm:$0xf]
  %v93 = vld [vmem:[%s0 + $0x12c] sm:$0xf]
  %v94 = vld [vmem:[%s0 + $0x130] sm:$0xf]
  %v95 = vld [vmem:[%s0 + $0x134] sm:$0xf]
  %v96 = vld [vmem:[%s0 + $0x138] sm:$0xf]
  %v97 = vld [vmem:[%s0 + $0x13c] sm:$0xf]
  %v98 = vld [vmem:[%s0 + $0x140] sm:$0xf]
  %v99 = vld [vmem:[%s0 + $0x144] sm:$0xf]
  %v100 = vld [vmem:[%s0 + $0x148] sm:$0xf]
  %v101 = vld [vmem:[%s0 + $0x14c] sm:$0xf]
  %v102 = vld [vmem:[%s0 + $0x150] sm:$0xf]
  %v103 = vld [vmem:[%s0 + $0x154] sm:$0xf]
  %v104 = vld [vmem:[%s0 + $0x158] sm:$0xf]
  %v105 = vld [vmem:[%s0 + $0x15c] sm:$0xf]
  %v106 = vld [vmem:[%s0 + $0x160] sm:$0xf]
  %v107 = vld [vmem:[%s0 + $0x164] sm:$0xf]
  %v108 = vld [vmem:[%s0 + $0x168] sm:$0xf]
  %v109 = vld [vmem:[%s0 + $0x16c] sm:$0xf]
  %v110 = vld [vmem:[%s0 + $0x170] sm:$0xf]
  %v111 = vld [vmem:[%s0 + $0x174] sm:$0xf]
  %v112 = vld [vmem:[%s0 + $0x178] sm:$0xf]
  %v113 = vld [vmem:[%s0 + $0x17c] sm:$0xf]
  %v114 = vld [vmem:[%s0 + $0x180] sm:$0xf]
  %v115 = vld [vmem:[%s0 + $0x184] sm:$0xf]
  %v116 = vld [vmem:[%s0 + $0x188] sm:$0xf]
  %v117 = vld [vmem:[%s0 + $0x18c] sm:$0xf]
  %v118 = vld [vmem:[%s0 + $0x190] sm:$0xf]
  %v119 = vld [vmem:[%s0 + $0x194] sm:$0xf]
  %v120 = vld [vmem:[%s0 + $0x198] sm:$0xf]
  %v121 = vld [vmem:[%s0 + $0x19c] sm:$0xf]
  %v122 = vld [vmem:[%s0 + $0x1a0] sm:$0xf]
  %v123 = vld [vmem:[%s0 + $0x1a4] sm:$0xf]
  %v124 = vld [vmem:[%s0 + $0x1a8] sm:$0xf]
  %v125 = vld [vmem:[%s0 + $0x1ac] sm:$0xf]
  %v126 = vld [vmem:[%s0 + $0x1b0] sm:$0xf]
  %v127 = vld [vmem:[%s0 + $0x1b4] sm:$0xf]
  %v128 = vld [vmem:[%s0 + $0x1b8] sm:$0xf]
  %v129 = vld [vmem:[%s0 + $0x1bc] sm:$0xf]
  %v130 = vld [vmem:[%s0 + $0x1c0] sm:$0xf]
  %v131 = vld [vmem:[%s0 + $0x1c4] sm:$0xf]
  %v132 = vld [vmem:[%s0 + $0x1c8] sm:$0xf]
  %v133 = vld [vmem:[%s0 + $0x1cc] sm:$0xf]
  %v134 = vld [vmem:[%s0 + $0x1d0] sm:$0xf]
  %v135 = vld [vmem:[%s0 + $0x1d4] sm:$0xf]
  %v136 = vld [vmem:[%s0 + $0x1d8] sm:$0xf]
  %v137 = vld [vmem:[%s0 + $0x1dc] sm:$0xf]
  %v138 = vld [vmem:[%s0 + $0x1e0] sm:$0xf]
  %v139 = vld [vmem:[%s0 + $0x1e4] sm:$0xf]
  %v140 = vld [vmem:[%s0 + $0x1e8] sm:$0xf]
  %v141 = vld [vmem:[%s0 + $0x1ec] sm:$0xf]
  %v142 = vld [vmem:[%s0 + $0x1f0] sm:$0xf]
  %v143 = vld [vmem:[%s0 + $0x1f4] sm:$0xf]
  %v144 = vld [vmem:[%s0 + $0x1f8] sm:$0xf]
  %v145 = vld [vmem:[%s0 + $0x1fc] sm:$0xf]
  %v146 = vld [vmem:[%s0 + $0x200] sm:$0xf]
  %v147 = vld [vmem:[%s0 + $0x204] sm:$0xf]
  %v148 = vld [vmem:[%s0 + $0x208] sm:$0xf]
  %v149 = vld [vmem:[%s0 + $0x20c] sm:$0xf]
  %v150 = vld [vmem:[%s0 + $0x210] sm:$0xf]
  %v151 = vld [vmem:[%s0 + $0x214] sm:$0xf]
  %v152 = vld [vmem:[%s0 + $0x218] sm:$0xf]
  %v153 = vld [vmem:[%s0 + $0x21c] sm:$0xf]
  %v154 = vld [vmem:[%s0 + $0x220] sm:$0xf]
  %v155 = vld [vmem:[%s0 + $0x224] sm:$0xf]
  %v156 = vld [vmem:[%s0 + $0x228] sm:$0xf]
  %v157 = vld [vmem:[%s0 + $0x22c] sm:$0xf]
  %v158 = vld [vmem:[%s0 + $0x230] sm:$0xf]
  %v159 = vld [vmem:[%s0 + $0x234] sm:$0xf]
  %v160 = vld [vmem:[%s0 + $0x238] sm:$0xf]
  %v161 = vld [vmem:[%s0 + $0x23c] sm:$0xf]
  %v162 = vld [vmem:[%s0 + $0x240] sm:$0xf]
  %v163 = vld [vmem:[%s0 + $0x244] sm:$0xf]
  %v164 = vld [vmem:[%s0 + $0x248] sm:$0xf]
  %v165 = vld [vmem:[%s0 + $0x24c] sm:$0xf]
  %v166 = vld [vmem:[%s0 + $0x250] sm:$0xf]
  %v167 = vld [vmem:[%s0 + $0x254] sm:$0xf]
  %v168 = vld [vmem:[%s0 + $0x258] sm:$0xf]
  %v169 = vld [vmem:[%s0 + $0x25c] sm:$0xf]
  %v170 = vld [vmem:[%s0 + $0x260] sm:$0xf]
  %v171 = vld [vmem:[%s0 + $0x264] sm:$0xf]
  %v172 = vld [vmem:[%s0 + $0x268] sm:$0xf]
  %v173 = vld [vmem:[%s0 + $0x26c] sm:$0xf]
  %v174 = vld [vmem:[%s0 + $0x270] sm:$0xf]
  %v175 = vld [vmem:[%s0 + $0x274] sm:$0xf]
  %v176 = vld [vmem:[%s0 + $0x278] sm:$0xf]
  %v177 = vld [vmem:[%s0 + $0x27c] sm:$0xf]
  %v178 = vld [vmem:[%s0 + $0x280] sm:$0xf]
  %v179 = vld [vmem:[%s0 + $0x284] sm:$0xf]
  %v180 = vld [vmem:[%s0 + $0x288] sm:$0xf]
  %v181 = vld [vmem:[%s0 + $0x28c] sm:$0xf]
  %v182 = vld [vmem:[%s0 + $0x290] sm:$0xf]
  %v183 = vld [vmem:[%s0 + $0x294] sm:$0xf]
  %v184 = vld [vmem:[%s0 + $0x298] sm:$0xf]
  %v185 = vld [vmem:[%s0 + $0x29c] sm:$0xf]
  %v186 = vld [vmem:[%s0 + $0x2a0] sm:$0xf]
  %v187 = vld [vmem:[%s0 + $0x2a4] sm:$0xf]
  %v188 = vld [vmem:[%s0 + $0x2a8] sm:$0xf]
  %v189 = vld [vmem:[%s0 + $0x2ac] sm:$0xf]
  %v190 = vld [vmem:[%s0 + $0x2b0] sm:$0xf]
  %v191 = vld [vmem:[%s0 + $0x2b4] sm:$0xf]
  %v192 = vld [vmem:[%s0 + $0x2b8] sm:$0xf]
  %v193 = vld [vmem:[%s0 + $0x2bc] sm:$0xf]
  %v194 = vld [vmem:[%s0 + $0x2c0] sm:$0xf]
  %v195 = vld [vmem:[%s0 + $0x2c4] sm:$0xf]
  %v196 = vld [vmem:[%s0 + $0x2c8] sm:$0xf]
  %v197 = vld [vmem:[%s0 + $0x2cc] sm:$0xf]
  %v198 = vld [vmem:[%s0 + $0x2d0] sm:$0xf]
  %v199 = vld [vmem:[%s0 + $0x2d4] sm:$0xf]
  %v200 = vld [vmem:[%s0 + $0x2d8] sm:$0xf]
  %v201 = vld [vmem:[%s0 + $0x2dc] sm:$0xf]
  %v202 = vld [vmem:[%s0 + $0x2e0] sm:$0xf]
  %v203 = vld [vmem:[%s0 + $0x2e4] sm:$0xf]
  %v204 = vld [vmem:[%s0 + $0x2e8] sm:$0xf]
  %v205 = vld [vmem:[%s0 + $0x2ec] sm:$0xf]
  %v206 = vld [vmem:[%s0 + $0x2f0] sm:$0xf]
  %v207 = vld [vmem:[%s0 + $0x2f4] sm:$0xf]
  %v208 = vld [vmem:[%s0 + $0x2f8] sm:$0xf]
  %v209 = vld [vmem:[%s0 + $0x2fc] sm:$0xf]
  %v210 = vld [vmem:[%s0 + $0x300] sm:$0xf]
  %v211 = vld [vmem:[%s0 + $0x304] sm:$0xf]
  %v212 = vld [vmem:[%s0 + $0x308] sm:$0xf]
  %v213 = vld [vmem:[%s0 + $0x30c] sm:$0xf]
  %v214 = vld [vmem:[%s0 + $0x310] sm:$0xf]
  %v215 = vld [vmem:[%s0 + $0x314] sm:$0xf]
  %v216 = vld [vmem:[%s0 + $0x318] sm:$0xf]
  %v217 = vld [vmem:[%s0 + $0x31c] sm:$0xf]
  %v218 = vld [vmem:[%s0 + $0x320] sm:$0xf]
  %v219 = vld [vmem:[%s0 + $0x324] sm:$0xf]
  %v220 = vld [vmem:[%s0 + $0x328] sm:$0xf]
  %v221 = vld [vmem:[%s0 + $0x32c] sm:$0xf]
  %v222 = vld [vmem:[%s0 + $0x330] sm:$0xf]
  %v223 = vld [vmem:[%s0 + $0x334] sm:$0xf]
  %v224 = vld [vmem:[%s0 + $0x338] sm:$0xf]
  %v225 = vld [vmem:[%s0 + $0x33c] sm:$0xf]
  %v226 = vld [vmem:[%s0 + $0x340] sm:$0xf]
  %v227 = vld [vmem:[%s0 + $0x344] sm:$0xf]
  %v228 = vld [vmem:[%s0 + $0x348] sm:$0xf]
  %v229 = vld [vmem:[%s0 + $0x34c] sm:$0xf]
  %v230 = vld [vmem:[%s0 + $0x350] sm:$0xf]
  %v231 = vld [vmem:[%s0 + $0x354] sm:$0xf]
  %v232 = vld [vmem:[%s0 + $0x358] sm:$0xf]
  %v233 = vld [vmem:[%s0 + $0x35c] sm:$0xf]
  %v234 = vld [vmem:[%s0 + $0x360] sm:$0xf]
  %v235 = vld [vmem:[%s0 + $0x364] sm:$0xf]
  %v236 = vld [vmem:[%s0 + $0x368] sm:$0xf]
  %v237 = vld [vmem:[%s0 + $0x36c] sm:$0xf]
  %v238 = vld [vmem:[%s0 + $0x370] sm:$0xf]
  %v239 = vld [vmem:[%s0 + $0x374] sm:$0xf]
  %v240 = vld [vmem:[%s0 + $0x378] sm:$0xf]
  %v241 = vld [vmem:[%s0 + $0x37c] sm:$0xf]
  %v242 = vld [vmem:[%s0 + $0x380] sm:$0xf]
  %v243 = vld [vmem:[%s0 + $0x384] sm:$0xf]
  %v244 = vld [vmem:[%s0 + $0x388] sm:$0xf]
  %v245 = vld [vmem:[%s0 + $0x38c] sm:$0xf]
  %v246 = vld [vmem:[%s0 + $0x390] sm:$0xf]
  %v247 = vld [vmem:[%s0 + $0x394] sm:$0xf]
  %v248 = vld [vmem:[%s0 + $0x398] sm:$0xf]
  %v249 = vld [vmem:[%s0 + $0x39c] sm:$0xf]
  %v250 = vld [vmem:[%s0 + $0x3a0] sm:$0xf]
  %v251 = vld [vmem:[%s0 + $0x3a4] sm:$0xf]
  %v252 = vld [vmem:[%s0 + $0x3a8] sm:$0xf]
  %v253 = vld [vmem:[%s0 + $0x3ac] sm:$0xf]
  %v254 = vld [vmem:[%s0 + $0x3b0] sm:$0xf]
  %v255 = vld [vmem:[%s0 + $0x3b4] sm:$0xf]
  %v256 = vld [vmem:[%s0 + $0x3b8] sm:$0xf]
  %v257 = vld [vmem:[%s0 + $0x3bc] sm:$0xf]
  %v258 = vld [vmem:[%s0 + $0x3c0] sm:$0xf]
  %v259 = vld [vmem:[%s0 + $0x3c4] sm:$0xf]
  %v260 = vld [vmem:[%s0 + $0x3c8] sm:$0xf]
  %v261 = vld [vmem:[%s0 + $0x3cc] sm:$0xf]
  %v262 = vld [vmem:[%s0 + $0x3d0] sm:$0xf]
  %v263 = vld [vmem:[%s0 + $0x3d4] sm:$0xf]
  %v264 = vld [vmem:[%s0 + $0x3d8] sm:$0xf]
  %v265 = vld [vmem:[%s0 + $0x3dc] sm:$0xf]
  %v266 = vld [vmem:[%s0 + $0x3e0] sm:$0xf]
  %v267 = vld [vmem:[%s0 + $0x3e4] sm:$0xf]
  %v268 = vld [vmem:[%s0 + $0x3e8] sm:$0xf]
  %v269 = vld [vmem:[%s0 + $0x3ec] sm:$0xf]
  %v270 = vld [vmem:[%s0 + $0x3f0] sm:$0xf]
  %v271 = vld [vmem:[%s0 + $0x3f4] sm:$0xf]
  %v272 = vld [vmem:[%s0 + $0x3f8] sm:$0xf]
  %v273 = vld [vmem:[%s0 + $0x3fc] sm:$0xf]
  %v274 = vld [vmem:[%s1] sm:$0xf]
  %v275 = vld [vmem:[%s1 + $0x4] sm:$0xf]
  %v276 = vld [vmem:[%s1 + $0x8] sm:$0xf]
  %v277 = vld [vmem:[%s1 + $0xc] sm:$0xf]
  %v278 = vld [vmem:[%s1 + $0x10] sm:$0xf]
  %v279 = vld [vmem:[%s1 + $0x14] sm:$0xf]
  %v280 = vld [vmem:[%s1 + $0x18] sm:$0xf]
  %v281 = vld [vmem:[%s1 + $0x1c] sm:$0xf]
  %v282 = vld [vmem:[%s1 + $0x20] sm:$0xf]
  %v283 = vld [vmem:[%s1 + $0x24] sm:$0xf]
  %v284 = vld [vmem:[%s1 + $0x28] sm:$0xf]
  %v285 = vld [vmem:[%s1 + $0x2c] sm:$0xf]
  %v286 = vld [vmem:[%s1 + $0x30] sm:$0xf]
  %v287 = vld [vmem:[%s1 + $0x34] sm:$0xf]
  %v288 = vld [vmem:[%s1 + $0x38] sm:$0xf]
  %v289 = vld [vmem:[%s1 + $0x3c] sm:$0xf]
  %v290 = vld [vmem:[%s2] sm:$0x1]
  %v292 = vlaneseq
  %v293 = vshrl.u32 %v292, 7
  %v294 = vsub.s32 0, %v293
  %v295 = vrot.slane %v290, %v294
  %v553 = vunpack.c.l.b16 %v18
  %v554 = vunpack.c.l.b16 %v19
  %v555 = vunpack.c.l.b16 %v20
  %v556 = vunpack.c.l.b16 %v21
  %v557 = vunpack.c.l.b16 %v22
  %v558 = vunpack.c.l.b16 %v23
  %v559 = vunpack.c.l.b16 %v24
  %v560 = vunpack.c.l.b16 %v25
  %v561 = vunpack.c.l.b16 %v26
  %v562 = vunpack.c.l.b16 %v27
  %v563 = vunpack.c.l.b16 %v28
  %v564 = vunpack.c.l.b16 %v29
  %v565 = vunpack.c.l.b16 %v30
  %v566 = vunpack.c.l.b16 %v31
  %v567 = vunpack.c.l.b16 %v32
  %v568 = vunpack.c.l.b16 %v33
  %v569 = vunpack.c.l.b16 %v34
  %v570 = vunpack.c.l.b16 %v35
  %v571 = vunpack.c.l.b16 %v36
  %v572 = vunpack.c.l.b16 %v37
  %v573 = vunpack.c.l.b16 %v38
  %v574 = vunpack.c.l.b16 %v39
  %v575 = vunpack.c.l.b16 %v40
  %v576 = vunpack.c.l.b16 %v41
  %v577 = vunpack.c.l.b16 %v42
  %v578 = vunpack.c.l.b16 %v43
  %v579 = vunpack.c.l.b16 %v44
  %v580 = vunpack.c.l.b16 %v45
  %v581 = vunpack.c.l.b16 %v46
  %v582 = vunpack.c.l.b16 %v47
  %v583 = vunpack.c.l.b16 %v48
  %v584 = vunpack.c.l.b16 %v49
  %v585 = vunpack.c.l.b16 %v50
  %v586 = vunpack.c.l.b16 %v51
  %v587 = vunpack.c.l.b16 %v52
  %v588 = vunpack.c.l.b16 %v53
  %v589 = vunpack.c.l.b16 %v54
  %v590 = vunpack.c.l.b16 %v55
  %v591 = vunpack.c.l.b16 %v56
  %v592 = vunpack.c.l.b16 %v57
  %v593 = vunpack.c.l.b16 %v58
  %v594 = vunpack.c.l.b16 %v59
  %v595 = vunpack.c.l.b16 %v60
  %v596 = vunpack.c.l.b16 %v61
  %v597 = vunpack.c.l.b16 %v62
  %v598 = vunpack.c.l.b16 %v63
  %v599 = vunpack.c.l.b16 %v64
  %v600 = vunpack.c.l.b16 %v65
  %v601 = vunpack.c.l.b16 %v66
  %v602 = vunpack.c.l.b16 %v67
  %v603 = vunpack.c.l.b16 %v68
  %v604 = vunpack.c.l.b16 %v69
  %v605 = vunpack.c.l.b16 %v70
  %v606 = vunpack.c.l.b16 %v71
  %v607 = vunpack.c.l.b16 %v72
  %v608 = vunpack.c.l.b16 %v73
  %v609 = vunpack.c.l.b16 %v74
  %v610 = vunpack.c.l.b16 %v75
  %v611 = vunpack.c.l.b16 %v76
  %v612 = vunpack.c.l.b16 %v77
  %v613 = vunpack.c.l.b16 %v78
  %v614 = vunpack.c.l.b16 %v79
  %v615 = vunpack.c.l.b16 %v80
  %v616 = vunpack.c.l.b16 %v81
  %v617 = vunpack.c.l.b16 %v82
  %v618 = vunpack.c.l.b16 %v83
  %v619 = vunpack.c.l.b16 %v84
  %v620 = vunpack.c.l.b16 %v85
  %v621 = vunpack.c.l.b16 %v86
  %v622 = vunpack.c.l.b16 %v87
  %v623 = vunpack.c.l.b16 %v88
  %v624 = vunpack.c.l.b16 %v89
  %v625 = vunpack.c.l.b16 %v90
  %v626 = vunpack.c.l.b16 %v91
  %v627 = vunpack.c.l.b16 %v92
  %v628 = vunpack.c.l.b16 %v93
  %v629 = vunpack.c.l.b16 %v94
  %v630 = vunpack.c.l.b16 %v95
  %v631 = vunpack.c.l.b16 %v96
  %v632 = vunpack.c.l.b16 %v97
  %v633 = vunpack.c.l.b16 %v98
  %v634 = vunpack.c.l.b16 %v99
  %v635 = vunpack.c.l.b16 %v100
  %v636 = vunpack.c.l.b16 %v101
  %v637 = vunpack.c.l.b16 %v102
  %v638 = vunpack.c.l.b16 %v103
  %v639 = vunpack.c.l.b16 %v104
  %v640 = vunpack.c.l.b16 %v105
  %v641 = vunpack.c.l.b16 %v106
  %v642 = vunpack.c.l.b16 %v107
  %v643 = vunpack.c.l.b16 %v108
  %v644 = vunpack.c.l.b16 %v109
  %v645 = vunpack.c.l.b16 %v110
  %v646 = vunpack.c.l.b16 %v111
  %v647 = vunpack.c.l.b16 %v112
  %v648 = vunpack.c.l.b16 %v113
  %v649 = vunpack.c.l.b16 %v114
  %v650 = vunpack.c.l.b16 %v115
  %v651 = vunpack.c.l.b16 %v116
  %v652 = vunpack.c.l.b16 %v117
  %v653 = vunpack.c.l.b16 %v118
  %v654 = vunpack.c.l.b16 %v119
  %v655 = vunpack.c.l.b16 %v120
  %v656 = vunpack.c.l.b16 %v121
  %v657 = vunpack.c.l.b16 %v122
  %v658 = vunpack.c.l.b16 %v123
  %v659 = vunpack.c.l.b16 %v124
  %v660 = vunpack.c.l.b16 %v125
  %v661 = vunpack.c.l.b16 %v126
  %v662 = vunpack.c.l.b16 %v127
  %v663 = vunpack.c.l.b16 %v128
  %v664 = vunpack.c.l.b16 %v129
  %v665 = vunpack.c.l.b16 %v130
  %v666 = vunpack.c.l.b16 %v131
  %v667 = vunpack.c.l.b16 %v132
  %v668 = vunpack.c.l.b16 %v133
  %v669 = vunpack.c.l.b16 %v134
  %v670 = vunpack.c.l.b16 %v135
  %v671 = vunpack.c.l.b16 %v136
  %v672 = vunpack.c.l.b16 %v137
  %v673 = vunpack.c.l.b16 %v138
  %v674 = vunpack.c.l.b16 %v139
  %v675 = vunpack.c.l.b16 %v140
  %v676 = vunpack.c.l.b16 %v141
  %v677 = vunpack.c.l.b16 %v142
  %v678 = vunpack.c.l.b16 %v143
  %v679 = vunpack.c.l.b16 %v144
  %v680 = vunpack.c.l.b16 %v145
  %v681 = vunpack.c.l.b16 %v146
  %v682 = vunpack.c.l.b16 %v147
  %v683 = vunpack.c.l.b16 %v148
  %v684 = vunpack.c.l.b16 %v149
  %v685 = vunpack.c.l.b16 %v150
  %v686 = vunpack.c.l.b16 %v151
  %v687 = vunpack.c.l.b16 %v152
  %v688 = vunpack.c.l.b16 %v153
  %v689 = vunpack.c.l.b16 %v154
  %v690 = vunpack.c.l.b16 %v155
  %v691 = vunpack.c.l.b16 %v156
  %v692 = vunpack.c.l.b16 %v157
  %v693 = vunpack.c.l.b16 %v158
  %v694 = vunpack.c.l.b16 %v159
  %v695 = vunpack.c.l.b16 %v160
  %v696 = vunpack.c.l.b16 %v161
  %v697 = vunpack.c.l.b16 %v162
  %v698 = vunpack.c.l.b16 %v163
  %v699 = vunpack.c.l.b16 %v164
  %v700 = vunpack.c.l.b16 %v165
  %v701 = vunpack.c.l.b16 %v166
  %v702 = vunpack.c.l.b16 %v167
  %v703 = vunpack.c.l.b16 %v168
  %v704 = vunpack.c.l.b16 %v169
  %v705 = vunpack.c.l.b16 %v170
  %v706 = vunpack.c.l.b16 %v171
  %v707 = vunpack.c.l.b16 %v172
  %v708 = vunpack.c.l.b16 %v173
  %v709 = vunpack.c.l.b16 %v174
  %v710 = vunpack.c.l.b16 %v175
  %v711 = vunpack.c.l.b16 %v176
  %v712 = vunpack.c.l.b16 %v177
  %v713 = vunpack.c.l.b16 %v178
  %v714 = vunpack.c.l.b16 %v179
  %v715 = vunpack.c.l.b16 %v180
  %v716 = vunpack.c.l.b16 %v181
  %v717 = vunpack.c.l.b16 %v182
  %v718 = vunpack.c.l.b16 %v183
  %v719 = vunpack.c.l.b16 %v184
  %v720 = vunpack.c.l.b16 %v185
  %v721 = vunpack.c.l.b16 %v186
  %v722 = vunpack.c.l.b16 %v187
  %v723 = vunpack.c.l.b16 %v188
  %v724 = vunpack.c.l.b16 %v189
  %v725 = vunpack.c.l.b16 %v190
  %v726 = vunpack.c.l.b16 %v191
  %v727 = vunpack.c.l.b16 %v192
  %v728 = vunpack.c.l.b16 %v193
  %v729 = vunpack.c.l.b16 %v194
  %v730 = vunpack.c.l.b16 %v195
  %v731 = vunpack.c.l.b16 %v196
  %v732 = vunpack.c.l.b16 %v197
  %v733 = vunpack.c.l.b16 %v198
  %v734 = vunpack.c.l.b16 %v199
  %v735 = vunpack.c.l.b16 %v200
  %v736 = vunpack.c.l.b16 %v201
  %v737 = vunpack.c.l.b16 %v202
  %v738 = vunpack.c.l.b16 %v203
  %v739 = vunpack.c.l.b16 %v204
  %v740 = vunpack.c.l.b16 %v205
  %v741 = vunpack.c.l.b16 %v206
  %v742 = vunpack.c.l.b16 %v207
  %v743 = vunpack.c.l.b16 %v208
  %v744 = vunpack.c.l.b16 %v209
  %v745 = vunpack.c.l.b16 %v210
  %v746 = vunpack.c.l.b16 %v211
  %v747 = vunpack.c.l.b16 %v212
  %v748 = vunpack.c.l.b16 %v213
  %v749 = vunpack.c.l.b16 %v214
  %v750 = vunpack.c.l.b16 %v215
  %v751 = vunpack.c.l.b16 %v216
  %v752 = vunpack.c.l.b16 %v217
  %v753 = vunpack.c.l.b16 %v218
  %v754 = vunpack.c.l.b16 %v219
  %v755 = vunpack.c.l.b16 %v220
  %v756 = vunpack.c.l.b16 %v221
  %v757 = vunpack.c.l.b16 %v222
  %v758 = vunpack.c.l.b16 %v223
  %v759 = vunpack.c.l.b16 %v224
  %v760 = vunpack.c.l.b16 %v225
  %v761 = vunpack.c.l.b16 %v226
  %v762 = vunpack.c.l.b16 %v227
  %v763 = vunpack.c.l.b16 %v228
  %v764 = vunpack.c.l.b16 %v229
  %v765 = vunpack.c.l.b16 %v230
  %v766 = vunpack.c.l.b16 %v231
  %v767 = vunpack.c.l.b16 %v232
  %v768 = vunpack.c.l.b16 %v233
  %v769 = vunpack.c.l.b16 %v234
  %v770 = vunpack.c.l.b16 %v235
  %v771 = vunpack.c.l.b16 %v236
  %v772 = vunpack.c.l.b16 %v237
  %v773 = vunpack.c.l.b16 %v238
  %v774 = vunpack.c.l.b16 %v239
  %v775 = vunpack.c.l.b16 %v240
  %v776 = vunpack.c.l.b16 %v241
  %v777 = vunpack.c.l.b16 %v242
  %v778 = vunpack.c.l.b16 %v243
  %v779 = vunpack.c.l.b16 %v244
  %v780 = vunpack.c.l.b16 %v245
  %v781 = vunpack.c.l.b16 %v246
  %v782 = vunpack.c.l.b16 %v247
  %v783 = vunpack.c.l.b16 %v248
  %v784 = vunpack.c.l.b16 %v249
  %v785 = vunpack.c.l.b16 %v250
  %v786 = vunpack.c.l.b16 %v251
  %v787 = vunpack.c.l.b16 %v252
  %v788 = vunpack.c.l.b16 %v253
  %v789 = vunpack.c.l.b16 %v254
  %v790 = vunpack.c.l.b16 %v255
  %v791 = vunpack.c.l.b16 %v256
  %v792 = vunpack.c.l.b16 %v257
  %v793 = vunpack.c.l.b16 %v258
  %v794 = vunpack.c.l.b16 %v259
  %v795 = vunpack.c.l.b16 %v260
  %v796 = vunpack.c.l.b16 %v261
  %v797 = vunpack.c.l.b16 %v262
  %v798 = vunpack.c.l.b16 %v263
  %v799 = vunpack.c.l.b16 %v264
  %v800 = vunpack.c.l.b16 %v265
  %v801 = vunpack.c.l.b16 %v266
  %v802 = vunpack.c.l.b16 %v267
  %v803 = vunpack.c.l.b16 %v268
  %v804 = vunpack.c.l.b16 %v269
  %v805 = vunpack.c.l.b16 %v270
  %v806 = vunpack.c.l.b16 %v271
  %v807 = vunpack.c.l.b16 %v272
  %v808 = vunpack.c.l.b16 %v273
  %v809 = vpack.c.b16 %v554, %v553
  %v810 = vpack.c.b16 %v556, %v555
  %v811 = vpack.c.b16 %v558, %v557
  %v812 = vpack.c.b16 %v560, %v559
  %v813 = vpack.c.b16 %v562, %v561
  %v814 = vpack.c.b16 %v564, %v563
  %v815 = vpack.c.b16 %v566, %v565
  %v816 = vpack.c.b16 %v568, %v567
  %v817 = vpack.c.b16 %v570, %v569
  %v818 = vpack.c.b16 %v572, %v571
  %v819 = vpack.c.b16 %v574, %v573
  %v820 = vpack.c.b16 %v576, %v575
  %v821 = vpack.c.b16 %v578, %v577
  %v822 = vpack.c.b16 %v580, %v579
  %v823 = vpack.c.b16 %v582, %v581
  %v824 = vpack.c.b16 %v584, %v583
  %v825 = vpack.c.b16 %v586, %v585
  %v826 = vpack.c.b16 %v588, %v587
  %v827 = vpack.c.b16 %v590, %v589
  %v828 = vpack.c.b16 %v592, %v591
  %v829 = vpack.c.b16 %v594, %v593
  %v830 = vpack.c.b16 %v596, %v595
  %v831 = vpack.c.b16 %v598, %v597
  %v832 = vpack.c.b16 %v600, %v599
  %v833 = vpack.c.b16 %v602, %v601
  %v834 = vpack.c.b16 %v604, %v603
  %v835 = vpack.c.b16 %v606, %v605
  %v836 = vpack.c.b16 %v608, %v607
  %v837 = vpack.c.b16 %v610, %v609
  %v838 = vpack.c.b16 %v612, %v611
  %v839 = vpack.c.b16 %v614, %v613
  %v840 = vpack.c.b16 %v616, %v615
  %v841 = vpack.c.b16 %v618, %v617
  %v842 = vpack.c.b16 %v620, %v619
  %v843 = vpack.c.b16 %v622, %v621
  %v844 = vpack.c.b16 %v624, %v623
  %v845 = vpack.c.b16 %v626, %v625
  %v846 = vpack.c.b16 %v628, %v627
  %v847 = vpack.c.b16 %v630, %v629
  %v848 = vpack.c.b16 %v632, %v631
  %v849 = vpack.c.b16 %v634, %v633
  %v850 = vpack.c.b16 %v636, %v635
  %v851 = vpack.c.b16 %v638, %v637
  %v852 = vpack.c.b16 %v640, %v639
  %v853 = vpack.c.b16 %v642, %v641
  %v854 = vpack.c.b16 %v644, %v643
  %v855 = vpack.c.b16 %v646, %v645
  %v856 = vpack.c.b16 %v648, %v647
  %v857 = vpack.c.b16 %v650, %v649
  %v858 = vpack.c.b16 %v652, %v651
  %v859 = vpack.c.b16 %v654, %v653
  %v860 = vpack.c.b16 %v656, %v655
  %v861 = vpack.c.b16 %v658, %v657
  %v862 = vpack.c.b16 %v660, %v659
  %v863 = vpack.c.b16 %v662, %v661
  %v864 = vpack.c.b16 %v664, %v663
  %v865 = vpack.c.b16 %v666, %v665
  %v866 = vpack.c.b16 %v668, %v667
  %v867 = vpack.c.b16 %v670, %v669
  %v868 = vpack.c.b16 %v672, %v671
  %v869 = vpack.c.b16 %v674, %v673
  %v870 = vpack.c.b16 %v676, %v675
  %v871 = vpack.c.b16 %v678, %v677
  %v872 = vpack.c.b16 %v680, %v679
  %v873 = vpack.c.b16 %v682, %v681
  %v874 = vpack.c.b16 %v684, %v683
  %v875 = vpack.c.b16 %v686, %v685
  %v876 = vpack.c.b16 %v688, %v687
  %v877 = vpack.c.b16 %v690, %v689
  %v878 = vpack.c.b16 %v692, %v691
  %v879 = vpack.c.b16 %v694, %v693
  %v880 = vpack.c.b16 %v696, %v695
  %v881 = vpack.c.b16 %v698, %v697
  %v882 = vpack.c.b16 %v700, %v699
  %v883 = vpack.c.b16 %v702, %v701
  %v884 = vpack.c.b16 %v704, %v703
  %v885 = vpack.c.b16 %v706, %v705
  %v886 = vpack.c.b16 %v708, %v707
  %v887 = vpack.c.b16 %v710, %v709
  %v888 = vpack.c.b16 %v712, %v711
  %v889 = vpack.c.b16 %v714, %v713
  %v890 = vpack.c.b16 %v716, %v715
  %v891 = vpack.c.b16 %v718, %v717
  %v892 = vpack.c.b16 %v720, %v719
  %v893 = vpack.c.b16 %v722, %v721
  %v894 = vpack.c.b16 %v724, %v723
  %v895 = vpack.c.b16 %v726, %v725
  %v896 = vpack.c.b16 %v728, %v727
  %v897 = vpack.c.b16 %v730, %v729
  %v898 = vpack.c.b16 %v732, %v731
  %v899 = vpack.c.b16 %v734, %v733
  %v900 = vpack.c.b16 %v736, %v735
  %v901 = vpack.c.b16 %v738, %v737
  %v902 = vpack.c.b16 %v740, %v739
  %v903 = vpack.c.b16 %v742, %v741
  %v904 = vpack.c.b16 %v744, %v743
  %v905 = vpack.c.b16 %v746, %v745
  %v906 = vpack.c.b16 %v748, %v747
  %v907 = vpack.c.b16 %v750, %v749
  %v908 = vpack.c.b16 %v752, %v751
  %v909 = vpack.c.b16 %v754, %v753
  %v910 = vpack.c.b16 %v756, %v755
  %v911 = vpack.c.b16 %v758, %v757
  %v912 = vpack.c.b16 %v760, %v759
  %v913 = vpack.c.b16 %v762, %v761
  %v914 = vpack.c.b16 %v764, %v763
  %v915 = vpack.c.b16 %v766, %v765
  %v916 = vpack.c.b16 %v768, %v767
  %v917 = vpack.c.b16 %v770, %v769
  %v918 = vpack.c.b16 %v772, %v771
  %v919 = vpack.c.b16 %v774, %v773
  %v920 = vpack.c.b16 %v776, %v775
  %v921 = vpack.c.b16 %v778, %v777
  %v922 = vpack.c.b16 %v780, %v779
  %v923 = vpack.c.b16 %v782, %v781
  %v924 = vpack.c.b16 %v784, %v783
  %v925 = vpack.c.b16 %v786, %v785
  %v926 = vpack.c.b16 %v788, %v787
  %v927 = vpack.c.b16 %v790, %v789
  %v928 = vpack.c.b16 %v792, %v791
  %v929 = vpack.c.b16 %v794, %v793
  %v930 = vpack.c.b16 %v796, %v795
  %v931 = vpack.c.b16 %v798, %v797
  %v932 = vpack.c.b16 %v800, %v799
  %v933 = vpack.c.b16 %v802, %v801
  %v934 = vpack.c.b16 %v804, %v803
  %v935 = vpack.c.b16 %v806, %v805
  %v936 = vpack.c.b16 %v808, %v807
  %v1081 = vunpack.c.l.b16 %v274
  %v1082 = vunpack.c.l.b16 %v275
  %v1083 = vunpack.c.l.b16 %v276
  %v1084 = vunpack.c.l.b16 %v277
  %v1085 = vunpack.c.l.b16 %v278
  %v1086 = vunpack.c.l.b16 %v279
  %v1087 = vunpack.c.l.b16 %v280
  %v1088 = vunpack.c.l.b16 %v281
  %v1089 = vunpack.c.l.b16 %v282
  %v1090 = vunpack.c.l.b16 %v283
  %v1091 = vunpack.c.l.b16 %v284
  %v1092 = vunpack.c.l.b16 %v285
  %v1093 = vunpack.c.l.b16 %v286
  %v1094 = vunpack.c.l.b16 %v287
  %v1095 = vunpack.c.l.b16 %v288
  %v1096 = vunpack.c.l.b16 %v289
  %v1097 = vpack.c.b16 %v1082, %v1081
  %v1098 = vpack.c.b16 %v1084, %v1083
  %v1099 = vpack.c.b16 %v1086, %v1085
  %v1100 = vpack.c.b16 %v1088, %v1087
  %v1101 = vpack.c.b16 %v1090, %v1089
  %v1102 = vpack.c.b16 %v1092, %v1091
  %v1103 = vpack.c.b16 %v1094, %v1093
  %v1104 = vpack.c.b16 %v1096, %v1095
  %1113 = vmatprep.subr.bf16.mxu0 0
  %1114 = vmatpush1.bf16.msra.mxu0 %v1097
  %1115 = vmatprep.subr.bf16.mxu0 0
  %1116 = vmatpush1.bf16.msra.mxu0 %v1098
  %1117 = vmatprep.subr.bf16.mxu0 0
  %1118 = vmatpush1.bf16.msra.mxu0 %v1099
  %1119 = vmatprep.subr.bf16.mxu0 0
  %1120 = vmatpush1.bf16.msra.mxu0 %v1100
  %1121 = vmatprep.subr.bf16.mxu0 0
  %1122 = vmatpush1.bf16.msra.mxu0 %v1101
  %1123 = vmatprep.subr.bf16.mxu0 0
  %1124 = vmatpush1.bf16.msra.mxu0 %v1102
  %1125 = vmatprep.subr.bf16.mxu0 0
  %1126 = vmatpush1.bf16.msra.mxu0 %v1103
  %1127 = vmatprep.subr.bf16.mxu0 0
  %1128 = vmatpush1.bf16.msra.mxu0 %v1104
  %1129 = vmatprep.subr.bf16.mxu0 0
  %1130 = vmatpush1.bf16.msra.mxu0 0
  %1131 = vmatprep.subr.bf16.mxu0 0
  %1132 = vmatpush1.bf16.msra.mxu0 0
  %1133 = vmatprep.subr.bf16.mxu0 0
  %1134 = vmatpush1.bf16.msra.mxu0 0
  %1135 = vmatprep.subr.bf16.mxu0 0
  %1136 = vmatpush1.bf16.msra.mxu0 0
  %1137 = vmatprep.subr.bf16.mxu0 0
  %1138 = vmatpush1.bf16.msra.mxu0 0
  %1139 = vmatprep.subr.bf16.mxu0 0
  %1140 = vmatpush1.bf16.msra.mxu0 0
  %1141 = vmatprep.subr.bf16.mxu0 0
  %1142 = vmatpush1.bf16.msra.mxu0 0
  %1143 = vmatprep.subr.bf16.mxu0 0
  %1144 = vmatpush1.bf16.msra.mxu0 0
  %1145 = vmatprep.mubr.bf16.mxu0 0
  %1146 = vmatmul.mubr.bf16.gmra.mrb[0].mxu0 %v809
  %v1147 = vpop.f32.mrb[0].mxu0
  %v1148 = vadd.f32 %v295, %v1147
  %v1149 = vpop.f32.mrb[0].mxu0
  %v1150 = vpop.f32.mrb[0].mxu0
  %v1151 = vadd.f32 %v295, %v1150
  %v1152 = vpop.f32.mrb[0].mxu0
  %1153 = vmatprep.mubr.bf16.mxu0 0
  %1154 = vmatmul.mubr.bf16.gmra.mrb[0].mxu0 %v810
  %v1155 = vpop.f32.mrb[0].mxu0
  %v1156 = vadd.f32 %v295, %v1155
  %v1157 = vpop.f32.mrb[0].mxu0
  %v1158 = vpop.f32.mrb[0].mxu0
  %v1159 = vadd.f32 %v295, %v1158
  %v1160 = vpop.f32.mrb[0].mxu0
  %1161 = vmatprep.mubr.bf16.mxu0 0
  %1162 = vmatmul.mubr.bf16.gmra.mrb[0].mxu0 %v811
  %v1163 = vpop.f32.mrb[0].mxu0
  %v1164 = vadd.f32 %v295, %v1163
  %v1165 = vpop.f32.mrb[0].mxu0
  %v1166 = vpop.f32.mrb[0].mxu0
  %v1167 = vadd.f32 %v295, %v1166
  %v1168 = vpop.f32.mrb[0].mxu0
  %1169 = vmatprep.mubr.bf16.mxu0 0
  %1170 = vmatmul.mubr.bf16.gmra.mrb[0].mxu0 %v812
  %v1171 = vpop.f32.mrb[0].mxu0
  %v1172 = vadd.f32 %v295, %v1171
  %v1173 = vpop.f32.mrb[0].mxu0
  %v1174 = vpop.f32.mrb[0].mxu0
  %v1175 = vadd.f32 %v295, %v1174
  %v1176 = vpop.f32.mrb[0].mxu0
  %1177 = vmatprep.mubr.bf16.mxu0 0
  %1178 = vmatmul.mubr.bf16.gmra.mrb[0].mxu0 %v813
  %v1179 = vpop.f32.mrb[0].mxu0
  %v1180 = vadd.f32 %v295, %v1179
  %v1181 = vpop.f32.mrb[0].mxu0
  %v1182 = vpop.f32.mrb[0].mxu0
  %v1183 = vadd.f32 %v295, %v1182
  %v1184 = vpop.f32.mrb[0].mxu0
  %1185 = vmatprep.mubr.bf16.mxu0 0
  %1186 = vmatmul.mubr.bf16.gmra.mrb[0].mxu0 %v814
  %v1187 = vpop.f32.mrb[0].mxu0
  %v1188 = vadd.f32 %v295, %v1187
  %v1189 = vpop.f32.mrb[0].mxu0
  %v1190 = vpop.f32.mrb[0].mxu0
  %v1191 = vadd.f32 %v295, %v1190
  %v1192 = vpop.f32.mrb[0].mxu0
  %1193 = vmatprep.mubr.bf16.mxu0 0
  %1194 = vmatmul.mubr.bf16.gmra.mrb[0].mxu0 %v815
  %v1195 = vpop.f32.mrb[0].mxu0
  %v1196 = vadd.f32 %v295, %v1195
  %v1197 = vpop.f32.mrb[0].mxu0
  %v1198 = vpop.f32.mrb[0].mxu0
  %v1199 = vadd.f32 %v295, %v1198
  %v1200 = vpop.f32.mrb[0].mxu0
  %1201 = vmatprep.mubr.bf16.mxu0 0
  %1202 = vmatmul.mubr.bf16.gmra.mrb[0].mxu0 %v816
  %v1203 = vpop.f32.mrb[0].mxu0
  %v1204 = vadd.f32 %v295, %v1203
  %v1205 = vpop.f32.mrb[0].mxu0
  %v1206 = vpop.f32.mrb[0].mxu0
  %v1207 = vadd.f32 %v295, %v1206
  %v1208 = vpop.f32.mrb[0].mxu0
  %1209 = vmatprep.mubr.bf16.mxu0 0
  %1210 = vmatmul.mubr.bf16.gmra.mrb[0].mxu0 %v817
  %v1211 = vpop.f32.mrb[0].mxu0
  %v1212 = vadd.f32 %v295, %v1211
  %v1213 = vpop.f32.mrb[0].mxu0
  %v1214 = vpop.f32.mrb[0].mxu0
  %v1215 = vadd.f32 %v295, %v1214
  %v1216 = vpop.f32.mrb[0].mxu0
  %1217 = vmatprep.mubr.bf16.mxu0 0
  %1218 = vmatmul.mubr.bf16.gmra.mrb[0].mxu0 %v818
  %v1219 = vpop.f32.mrb[0].mxu0
  %v1220 = vadd.f32 %v295, %v1219
  %v1221 = vpop.f32.mrb[0].mxu0
  %v1222 = vpop.f32.mrb[0].mxu0
  %v1223 = vadd.f32 %v295, %v1222
  %v1224 = vpop.f32.mrb[0].mxu0
  %1225 = vmatprep.mubr.bf16.mxu0 0
  %1226 = vmatmul.mubr.bf16.gmra.mrb[0].mxu0 %v819
  %v1227 = vpop.f32.mrb[0].mxu0
  %v1228 = vadd.f32 %v295, %v1227
  %v1229 = vpop.f32.mrb[0].mxu0
  %v1230 = vpop.f32.mrb[0].mxu0
  %v1231 = vadd.f32 %v295, %v1230
  %v1232 = vpop.f32.mrb[0].mxu0
  %1233 = vmatprep.mubr.bf16.mxu0 0
  %1234 = vmatmul.mubr.bf16.gmra.mrb[0].mxu0 %v820
  %v1235 = vpop.f32.mrb[0].mxu0
  %v1236 = vadd.f32 %v295, %v1235
  %v1237 = vpop.f32.mrb[0].mxu0
  %v1238 = vpop.f32.mrb[0].mxu0
  %v1239 = vadd.f32 %v295, %v1238
  %v1240 = vpop.f32.mrb[0].mxu0
  %1241 = vmatprep.mubr.bf16.mxu0 0
  %1242 = vmatmul.mubr.bf16.gmra.mrb[0].mxu0 %v821
  %v1243 = vpop.f32.mrb[0].mxu0
  %v1244 = vadd.f32 %v295, %v1243
  %v1245 = vpop.f32.mrb[0].mxu0
  %v1246 = vpop.f32.mrb[0].mxu0
  %v1247 = vadd.f32 %v295, %v1246
  %v1248 = vpop.f32.mrb[0].mxu0
  %1249 = vmatprep.mubr.bf16.mxu0 0
  %1250 = vmatmul.mubr.bf16.gmra.mrb[0].mxu0 %v822
  %v1251 = vpop.f32.mrb[0].mxu0
  %v1252 = vadd.f32 %v295, %v1251
  %v1253 = vpop.f32.mrb[0].mxu0
  %v1254 = vpop.f32.mrb[0].mxu0
  %v1255 = vadd.f32 %v295, %v1254
  %v1256 = vpop.f32.mrb[0].mxu0
  %1257 = vmatprep.mubr.bf16.mxu0 0
  %1258 = vmatmul.mubr.bf16.gmra.mrb[0].mxu0 %v823
  %v1259 = vpop.f32.mrb[0].mxu0
  %v1260 = vadd.f32 %v295, %v1259
  %v1261 = vpop.f32.mrb[0].mxu0
  %v1262 = vpop.f32.mrb[0].mxu0
  %v1263 = vadd.f32 %v295, %v1262
  %v1264 = vpop.f32.mrb[0].mxu0
  %1265 = vmatprep.mubr.bf16.mxu0 0
  %1266 = vmatmul.mubr.bf16.gmra.mrb[0].mxu0 %v824
  %v1267 = vpop.f32.mrb[0].mxu0
  %v1268 = vadd.f32 %v295, %v1267
  %v1269 = vpop.f32.mrb[0].mxu0
  %v1270 = vpop.f32.mrb[0].mxu0
  %v1271 = vadd.f32 %v295, %v1270
  %v1272 = vpop.f32.mrb[0].mxu0
  %1273 = vmatprep.mubr.bf16.mxu0 0
  %1274 = vmatmul.mubr.bf16.gmra.mrb[0].mxu0 %v825
  %v1275 = vpop.f32.mrb[0].mxu0
  %v1276 = vadd.f32 %v295, %v1275
  %v1277 = vpop.f32.mrb[0].mxu0
  %v1278 = vpop.f32.mrb[0].mxu0
  %v1279 = vadd.f32 %v295, %v1278
  %v1280 = vpop.f32.mrb[0].mxu0
  %1281 = vmatprep.mubr.bf16.mxu0 0
  %1282 = vmatmul.mubr.bf16.gmra.mrb[0].mxu0 %v826
  %v1283 = vpop.f32.mrb[0].mxu0
  %v1284 = vadd.f32 %v295, %v1283
  %v1285 = vpop.f32.mrb[0].mxu0
  %v1286 = vpop.f32.mrb[0].mxu0
  %v1287 = vadd.f32 %v295, %v1286
  %v1288 = vpop.f32.mrb[0].mxu0
  %1289 = vmatprep.mubr.bf16.mxu0 0
  %1290 = vmatmul.mubr.bf16.gmra.mrb[0].mxu0 %v827
  %v1291 = vpop.f32.mrb[0].mxu0
  %v1292 = vadd.f32 %v295, %v1291
  %v1293 = vpop.f32.mrb[0].mxu0
  %v1294 = vpop.f32.mrb[0].mxu0
  %v1295 = vadd.f32 %v295, %v1294
  %v1296 = vpop.f32.mrb[0].mxu0
  %1297 = vmatprep.mubr.bf16.mxu0 0
  %1298 = vmatmul.mubr.bf16.gmra.mrb[0].mxu0 %v828
  %v1299 = vpop.f32.mrb[0].mxu0
  %v1300 = vadd.f32 %v295, %v1299
  %v1301 = vpop.f32.mrb[0].mxu0
  %v1302 = vpop.f32.mrb[0].mxu0
  %v1303 = vadd.f32 %v295, %v1302
  %v1304 = vpop.f32.mrb[0].mxu0
  %1305 = vmatprep.mubr.bf16.mxu0 0
  %1306 = vmatmul.mubr.bf16.gmra.mrb[0].mxu0 %v829
  %v1307 = vpop.f32.mrb[0].mxu0
  %v1308 = vadd.f32 %v295, %v1307
  %v1309 = vpop.f32.mrb[0].mxu0
  %v1310 = vpop.f32.mrb[0].mxu0
  %v1311 = vadd.f32 %v295, %v1310
  %v1312 = vpop.f32.mrb[0].mxu0
  %1313 = vmatprep.mubr.bf16.mxu0 0
  %1314 = vmatmul.mubr.bf16.gmra.mrb[0].mxu0 %v830
  %v1315 = vpop.f32.mrb[0].mxu0
  %v1316 = vadd.f32 %v295, %v1315
  %v1317 = vpop.f32.mrb[0].mxu0
  %v1318 = vpop.f32.mrb[0].mxu0
  %v1319 = vadd.f32 %v295, %v1318
  %v1320 = vpop.f32.mrb[0].mxu0
  %1321 = vmatprep.mubr.bf16.mxu0 0
  %1322 = vmatmul.mubr.bf16.gmra.mrb[0].mxu0 %v831
  %v1323 = vpop.f32.mrb[0].mxu0
  %v1324 = vadd.f32 %v295, %v1323
  %v1325 = vpop.f32.mrb[0].mxu0
  %v1326 = vpop.f32.mrb[0].mxu0
  %v1327 = vadd.f32 %v295, %v1326
  %v1328 = vpop.f32.mrb[0].mxu0
  %1329 = vmatprep.mubr.bf16.mxu0 0
  %1330 = vmatmul.mubr.bf16.gmra.mrb[0].mxu0 %v832
  %v1331 = vpop.f32.mrb[0].mxu0
  %v1332 = vadd.f32 %v295, %v1331
  %v1333 = vpop.f32.mrb[0].mxu0
  %v1334 = vpop.f32.mrb[0].mxu0
  %v1335 = vadd.f32 %v295, %v1334
  %v1336 = vpop.f32.mrb[0].mxu0
  %1337 = vmatprep.mubr.bf16.mxu0 0
  %1338 = vmatmul.mubr.bf16.gmra.mrb[0].mxu0 %v833
  %v1339 = vpop.f32.mrb[0].mxu0
  %v1340 = vadd.f32 %v295, %v1339
  %v1341 = vpop.f32.mrb[0].mxu0
  %v1342 = vpop.f32.mrb[0].mxu0
  %v1343 = vadd.f32 %v295, %v1342
  %v1344 = vpop.f32.mrb[0].mxu0
  %1345 = vmatprep.mubr.bf16.mxu0 0
  %1346 = vmatmul.mubr.bf16.gmra.mrb[0].mxu0 %v834
  %v1347 = vpop.f32.mrb[0].mxu0
  %v1348 = vadd.f32 %v295, %v1347
  %v1349 = vpop.f32.mrb[0].mxu0
  %v1350 = vpop.f32.mrb[0].mxu0
  %v1351 = vadd.f32 %v295, %v1350
  %v1352 = vpop.f32.mrb[0].mxu0
  %1353 = vmatprep.mubr.bf16.mxu0 0
  %1354 = vmatmul.mubr.bf16.gmra.mrb[0].mxu0 %v835
  %v1355 = vpop.f32.mrb[0].mxu0
  %v1356 = vadd.f32 %v295, %v1355
  %v1357 = vpop.f32.mrb[0].mxu0
  %v1358 = vpop.f32.mrb[0].mxu0
  %v1359 = vadd.f32 %v295, %v1358
  %v1360 = vpop.f32.mrb[0].mxu0
  %1361 = vmatprep.mubr.bf16.mxu0 0
  %1362 = vmatmul.mubr.bf16.gmra.mrb[0].mxu0 %v836
  %v1363 = vpop.f32.mrb[0].mxu0
  %v1364 = vadd.f32 %v295, %v1363
  %v1365 = vpop.f32.mrb[0].mxu0
  %v1366 = vpop.f32.mrb[0].mxu0
  %v1367 = vadd.f32 %v295, %v1366
  %v1368 = vpop.f32.mrb[0].mxu0
  %1369 = vmatprep.mubr.bf16.mxu0 0
  %1370 = vmatmul.mubr.bf16.gmra.mrb[0].mxu0 %v837
  %v1371 = vpop.f32.mrb[0].mxu0
  %v1372 = vadd.f32 %v295, %v1371
  %v1373 = vpop.f32.mrb[0].mxu0
  %v1374 = vpop.f32.mrb[0].mxu0
  %v1375 = vadd.f32 %v295, %v1374
  %v1376 = vpop.f32.mrb[0].mxu0
  %1377 = vmatprep.mubr.bf16.mxu0 0
  %1378 = vmatmul.mubr.bf16.gmra.mrb[0].mxu0 %v838
  %v1379 = vpop.f32.mrb[0].mxu0
  %v1380 = vadd.f32 %v295, %v1379
  %v1381 = vpop.f32.mrb[0].mxu0
  %v1382 = vpop.f32.mrb[0].mxu0
  %v1383 = vadd.f32 %v295, %v1382
  %v1384 = vpop.f32.mrb[0].mxu0
  %1385 = vmatprep.mubr.bf16.mxu0 0
  %1386 = vmatmul.mubr.bf16.gmra.mrb[0].mxu0 %v839
  %v1387 = vpop.f32.mrb[0].mxu0
  %v1388 = vadd.f32 %v295, %v1387
  %v1389 = vpop.f32.mrb[0].mxu0
  %v1390 = vpop.f32.mrb[0].mxu0
  %v1391 = vadd.f32 %v295, %v1390
  %v1392 = vpop.f32.mrb[0].mxu0
  %1393 = vmatprep.mubr.bf16.mxu0 0
  %1394 = vmatmul.mubr.bf16.gmra.mrb[0].mxu0 %v840
  %v1395 = vpop.f32.mrb[0].mxu0
  %v1396 = vadd.f32 %v295, %v1395
  %v1397 = vpop.f32.mrb[0].mxu0
  %v1398 = vpop.f32.mrb[0].mxu0
  %v1399 = vadd.f32 %v295, %v1398
  %v1400 = vpop.f32.mrb[0].mxu0
  %1401 = vmatprep.mubr.bf16.mxu0 0
  %1402 = vmatmul.mubr.bf16.gmra.mrb[0].mxu0 %v841
  %v1403 = vpop.f32.mrb[0].mxu0
  %v1404 = vadd.f32 %v295, %v1403
  %v1405 = vpop.f32.mrb[0].mxu0
  %v1406 = vpop.f32.mrb[0].mxu0
  %v1407 = vadd.f32 %v295, %v1406
  %v1408 = vpop.f32.mrb[0].mxu0
  %1409 = vmatprep.mubr.bf16.mxu0 0
  %1410 = vmatmul.mubr.bf16.gmra.mrb[0].mxu0 %v842
  %v1411 = vpop.f32.mrb[0].mxu0
  %v1412 = vadd.f32 %v295, %v1411
  %v1413 = vpop.f32.mrb[0].mxu0
  %v1414 = vpop.f32.mrb[0].mxu0
  %v1415 = vadd.f32 %v295, %v1414
  %v1416 = vpop.f32.mrb[0].mxu0
  %1417 = vmatprep.mubr.bf16.mxu0 0
  %1418 = vmatmul.mubr.bf16.gmra.mrb[0].mxu0 %v843
  %v1419 = vpop.f32.mrb[0].mxu0
  %v1420 = vadd.f32 %v295, %v1419
  %v1421 = vpop.f32.mrb[0].mxu0
  %v1422 = vpop.f32.mrb[0].mxu0
  %v1423 = vadd.f32 %v295, %v1422
  %v1424 = vpop.f32.mrb[0].mxu0
  %1425 = vmatprep.mubr.bf16.mxu0 0
  %1426 = vmatmul.mubr.bf16.gmra.mrb[0].mxu0 %v844
  %v1427 = vpop.f32.mrb[0].mxu0
  %v1428 = vadd.f32 %v295, %v1427
  %v1429 = vpop.f32.mrb[0].mxu0
  %v1430 = vpop.f32.mrb[0].mxu0
  %v1431 = vadd.f32 %v295, %v1430
  %v1432 = vpop.f32.mrb[0].mxu0
  %1433 = vmatprep.mubr.bf16.mxu0 0
  %1434 = vmatmul.mubr.bf16.gmra.mrb[0].mxu0 %v845
  %v1435 = vpop.f32.mrb[0].mxu0
  %v1436 = vadd.f32 %v295, %v1435
  %v1437 = vpop.f32.mrb[0].mxu0
  %v1438 = vpop.f32.mrb[0].mxu0
  %v1439 = vadd.f32 %v295, %v1438
  %v1440 = vpop.f32.mrb[0].mxu0
  %1441 = vmatprep.mubr.bf16.mxu0 0
  %1442 = vmatmul.mubr.bf16.gmra.mrb[0].mxu0 %v846
  %v1443 = vpop.f32.mrb[0].mxu0
  %v1444 = vadd.f32 %v295, %v1443
  %v1445 = vpop.f32.mrb[0].mxu0
  %v1446 = vpop.f32.mrb[0].mxu0
  %v1447 = vadd.f32 %v295, %v1446
  %v1448 = vpop.f32.mrb[0].mxu0
  %1449 = vmatprep.mubr.bf16.mxu0 0
  %1450 = vmatmul.mubr.bf16.gmra.mrb[0].mxu0 %v847
  %v1451 = vpop.f32.mrb[0].mxu0
  %v1452 = vadd.f32 %v295, %v1451
  %v1453 = vpop.f32.mrb[0].mxu0
  %v1454 = vpop.f32.mrb[0].mxu0
  %v1455 = vadd.f32 %v295, %v1454
  %v1456 = vpop.f32.mrb[0].mxu0
  %1457 = vmatprep.mubr.bf16.mxu0 0
  %1458 = vmatmul.mubr.bf16.gmra.mrb[0].mxu0 %v848
  %v1459 = vpop.f32.mrb[0].mxu0
  %v1460 = vadd.f32 %v295, %v1459
  %v1461 = vpop.f32.mrb[0].mxu0
  %v1462 = vpop.f32.mrb[0].mxu0
  %v1463 = vadd.f32 %v295, %v1462
  %v1464 = vpop.f32.mrb[0].mxu0
  %1465 = vmatprep.mubr.bf16.mxu0 0
  %1466 = vmatmul.mubr.bf16.gmra.mrb[0].mxu0 %v849
  %v1467 = vpop.f32.mrb[0].mxu0
  %v1468 = vadd.f32 %v295, %v1467
  %v1469 = vpop.f32.mrb[0].mxu0
  %v1470 = vpop.f32.mrb[0].mxu0
  %v1471 = vadd.f32 %v295, %v1470
  %v1472 = vpop.f32.mrb[0].mxu0
  %1473 = vmatprep.mubr.bf16.mxu0 0
  %1474 = vmatmul.mubr.bf16.gmra.mrb[0].mxu0 %v850
  %v1475 = vpop.f32.mrb[0].mxu0
  %v1476 = vadd.f32 %v295, %v1475
  %v1477 = vpop.f32.mrb[0].mxu0
  %v1478 = vpop.f32.mrb[0].mxu0
  %v1479 = vadd.f32 %v295, %v1478
  %v1480 = vpop.f32.mrb[0].mxu0
  %1481 = vmatprep.mubr.bf16.mxu0 0
  %1482 = vmatmul.mubr.bf16.gmra.mrb[0].mxu0 %v851
  %v1483 = vpop.f32.mrb[0].mxu0
  %v1484 = vadd.f32 %v295, %v1483
  %v1485 = vpop.f32.mrb[0].mxu0
  %v1486 = vpop.f32.mrb[0].mxu0
  %v1487 = vadd.f32 %v295, %v1486
  %v1488 = vpop.f32.mrb[0].mxu0
  %1489 = vmatprep.mubr.bf16.mxu0 0
  %1490 = vmatmul.mubr.bf16.gmra.mrb[0].mxu0 %v852
  %v1491 = vpop.f32.mrb[0].mxu0
  %v1492 = vadd.f32 %v295, %v1491
  %v1493 = vpop.f32.mrb[0].mxu0
  %v1494 = vpop.f32.mrb[0].mxu0
  %v1495 = vadd.f32 %v295, %v1494
  %v1496 = vpop.f32.mrb[0].mxu0
  %1497 = vmatprep.mubr.bf16.mxu0 0
  %1498 = vmatmul.mubr.bf16.gmra.mrb[0].mxu0 %v853
  %v1499 = vpop.f32.mrb[0].mxu0
  %v1500 = vadd.f32 %v295, %v1499
  %v1501 = vpop.f32.mrb[0].mxu0
  %v1502 = vpop.f32.mrb[0].mxu0
  %v1503 = vadd.f32 %v295, %v1502
  %v1504 = vpop.f32.mrb[0].mxu0
  %1505 = vmatprep.mubr.bf16.mxu0 0
  %1506 = vmatmul.mubr.bf16.gmra.mrb[0].mxu0 %v854
  %v1507 = vpop.f32.mrb[0].mxu0
  %v1508 = vadd.f32 %v295, %v1507
  %v1509 = vpop.f32.mrb[0].mxu0
  %v1510 = vpop.f32.mrb[0].mxu0
  %v1511 = vadd.f32 %v295, %v1510
  %v1512 = vpop.f32.mrb[0].mxu0
  %1513 = vmatprep.mubr.bf16.mxu0 0
  %1514 = vmatmul.mubr.bf16.gmra.mrb[0].mxu0 %v855
  %v1515 = vpop.f32.mrb[0].mxu0
  %v1516 = vadd.f32 %v295, %v1515
  %v1517 = vpop.f32.mrb[0].mxu0
  %v1518 = vpop.f32.mrb[0].mxu0
  %v1519 = vadd.f32 %v295, %v1518
  %v1520 = vpop.f32.mrb[0].mxu0
  %1521 = vmatprep.mubr.bf16.mxu0 0
  %1522 = vmatmul.mubr.bf16.gmra.mrb[0].mxu0 %v856
  %v1523 = vpop.f32.mrb[0].mxu0
  %v1524 = vadd.f32 %v295, %v1523
  %v1525 = vpop.f32.mrb[0].mxu0
  %v1526 = vpop.f32.mrb[0].mxu0
  %v1527 = vadd.f32 %v295, %v1526
  %v1528 = vpop.f32.mrb[0].mxu0
  %1529 = vmatprep.mubr.bf16.mxu0 0
  %1530 = vmatmul.mubr.bf16.gmra.mrb[0].mxu0 %v857
  %v1531 = vpop.f32.mrb[0].mxu0
  %v1532 = vadd.f32 %v295, %v1531
  %v1533 = vpop.f32.mrb[0].mxu0
  %v1534 = vpop.f32.mrb[0].mxu0
  %v1535 = vadd.f32 %v295, %v1534
  %v1536 = vpop.f32.mrb[0].mxu0
  %1537 = vmatprep.mubr.bf16.mxu0 0
  %1538 = vmatmul.mubr.bf16.gmra.mrb[0].mxu0 %v858
  %v1539 = vpop.f32.mrb[0].mxu0
  %v1540 = vadd.f32 %v295, %v1539
  %v1541 = vpop.f32.mrb[0].mxu0
  %v1542 = vpop.f32.mrb[0].mxu0
  %v1543 = vadd.f32 %v295, %v1542
  %v1544 = vpop.f32.mrb[0].mxu0
  %1545 = vmatprep.mubr.bf16.mxu0 0
  %1546 = vmatmul.mubr.bf16.gmra.mrb[0].mxu0 %v859
  %v1547 = vpop.f32.mrb[0].mxu0
  %v1548 = vadd.f32 %v295, %v1547
  %v1549 = vpop.f32.mrb[0].mxu0
  %v1550 = vpop.f32.mrb[0].mxu0
  %v1551 = vadd.f32 %v295, %v1550
  %v1552 = vpop.f32.mrb[0].mxu0
  %1553 = vmatprep.mubr.bf16.mxu0 0
  %1554 = vmatmul.mubr.bf16.gmra.mrb[0].mxu0 %v860
  %v1555 = vpop.f32.mrb[0].mxu0
  %v1556 = vadd.f32 %v295, %v1555
  %v1557 = vpop.f32.mrb[0].mxu0
  %v1558 = vpop.f32.mrb[0].mxu0
  %v1559 = vadd.f32 %v295, %v1558
  %v1560 = vpop.f32.mrb[0].mxu0
  %1561 = vmatprep.mubr.bf16.mxu0 0
  %1562 = vmatmul.mubr.bf16.gmra.mrb[0].mxu0 %v861
  %v1563 = vpop.f32.mrb[0].mxu0
  %v1564 = vadd.f32 %v295, %v1563
  %v1565 = vpop.f32.mrb[0].mxu0
  %v1566 = vpop.f32.mrb[0].mxu0
  %v1567 = vadd.f32 %v295, %v1566
  %v1568 = vpop.f32.mrb[0].mxu0
  %1569 = vmatprep.mubr.bf16.mxu0 0
  %1570 = vmatmul.mubr.bf16.gmra.mrb[0].mxu0 %v862
  %v1571 = vpop.f32.mrb[0].mxu0
  %v1572 = vadd.f32 %v295, %v1571
  %v1573 = vpop.f32.mrb[0].mxu0
  %v1574 = vpop.f32.mrb[0].mxu0
  %v1575 = vadd.f32 %v295, %v1574
  %v1576 = vpop.f32.mrb[0].mxu0
  %1577 = vmatprep.mubr.bf16.mxu0 0
  %1578 = vmatmul.mubr.bf16.gmra.mrb[0].mxu0 %v863
  %v1579 = vpop.f32.mrb[0].mxu0
  %v1580 = vadd.f32 %v295, %v1579
  %v1581 = vpop.f32.mrb[0].mxu0
  %v1582 = vpop.f32.mrb[0].mxu0
  %v1583 = vadd.f32 %v295, %v1582
  %v1584 = vpop.f32.mrb[0].mxu0
  %1585 = vmatprep.mubr.bf16.mxu0 0
  %1586 = vmatmul.mubr.bf16.gmra.mrb[0].mxu0 %v864
  %v1587 = vpop.f32.mrb[0].mxu0
  %v1588 = vadd.f32 %v295, %v1587
  %v1589 = vpop.f32.mrb[0].mxu0
  %v1590 = vpop.f32.mrb[0].mxu0
  %v1591 = vadd.f32 %v295, %v1590
  %v1592 = vpop.f32.mrb[0].mxu0
  %1593 = vmatprep.mubr.bf16.mxu0 0
  %1594 = vmatmul.mubr.bf16.gmra.mrb[0].mxu0 %v865
  %v1595 = vpop.f32.mrb[0].mxu0
  %v1596 = vadd.f32 %v295, %v1595
  %v1597 = vpop.f32.mrb[0].mxu0
  %v1598 = vpop.f32.mrb[0].mxu0
  %v1599 = vadd.f32 %v295, %v1598
  %v1600 = vpop.f32.mrb[0].mxu0
  %1601 = vmatprep.mubr.bf16.mxu0 0
  %1602 = vmatmul.mubr.bf16.gmra.mrb[0].mxu0 %v866
  %v1603 = vpop.f32.mrb[0].mxu0
  %v1604 = vadd.f32 %v295, %v1603
  %v1605 = vpop.f32.mrb[0].mxu0
  %v1606 = vpop.f32.mrb[0].mxu0
  %v1607 = vadd.f32 %v295, %v1606
  %v1608 = vpop.f32.mrb[0].mxu0
  %1609 = vmatprep.mubr.bf16.mxu0 0
  %1610 = vmatmul.mubr.bf16.gmra.mrb[0].mxu0 %v867
  %v1611 = vpop.f32.mrb[0].mxu0
  %v1612 = vadd.f32 %v295, %v1611
  %v1613 = vpop.f32.mrb[0].mxu0
  %v1614 = vpop.f32.mrb[0].mxu0
  %v1615 = vadd.f32 %v295, %v1614
  %v1616 = vpop.f32.mrb[0].mxu0
  %1617 = vmatprep.mubr.bf16.mxu0 0
  %1618 = vmatmul.mubr.bf16.gmra.mrb[0].mxu0 %v868
  %v1619 = vpop.f32.mrb[0].mxu0
  %v1620 = vadd.f32 %v295, %v1619
  %v1621 = vpop.f32.mrb[0].mxu0
  %v1622 = vpop.f32.mrb[0].mxu0
  %v1623 = vadd.f32 %v295, %v1622
  %v1624 = vpop.f32.mrb[0].mxu0
  %1625 = vmatprep.mubr.bf16.mxu0 0
  %1626 = vmatmul.mubr.bf16.gmra.mrb[0].mxu0 %v869
  %v1627 = vpop.f32.mrb[0].mxu0
  %v1628 = vadd.f32 %v295, %v1627
  %v1629 = vpop.f32.mrb[0].mxu0
  %v1630 = vpop.f32.mrb[0].mxu0
  %v1631 = vadd.f32 %v295, %v1630
  %v1632 = vpop.f32.mrb[0].mxu0
  %1633 = vmatprep.mubr.bf16.mxu0 0
  %1634 = vmatmul.mubr.bf16.gmra.mrb[0].mxu0 %v870
  %v1635 = vpop.f32.mrb[0].mxu0
  %v1636 = vadd.f32 %v295, %v1635
  %v1637 = vpop.f32.mrb[0].mxu0
  %v1638 = vpop.f32.mrb[0].mxu0
  %v1639 = vadd.f32 %v295, %v1638
  %v1640 = vpop.f32.mrb[0].mxu0
  %1641 = vmatprep.mubr.bf16.mxu0 0
  %1642 = vmatmul.mubr.bf16.gmra.mrb[0].mxu0 %v871
  %v1643 = vpop.f32.mrb[0].mxu0
  %v1644 = vadd.f32 %v295, %v1643
  %v1645 = vpop.f32.mrb[0].mxu0
  %v1646 = vpop.f32.mrb[0].mxu0
  %v1647 = vadd.f32 %v295, %v1646
  %v1648 = vpop.f32.mrb[0].mxu0
  %1649 = vmatprep.mubr.bf16.mxu0 0
  %1650 = vmatmul.mubr.bf16.gmra.mrb[0].mxu0 %v872
  %v1651 = vpop.f32.mrb[0].mxu0
  %v1652 = vadd.f32 %v295, %v1651
  %v1653 = vpop.f32.mrb[0].mxu0
  %v1654 = vpop.f32.mrb[0].mxu0
  %v1655 = vadd.f32 %v295, %v1654
  %v1656 = vpop.f32.mrb[0].mxu0
  %1657 = vmatprep.mubr.bf16.mxu0 0
  %1658 = vmatmul.mubr.bf16.gmra.mrb[0].mxu0 %v873
  %v1659 = vpop.f32.mrb[0].mxu0
  %v1660 = vadd.f32 %v295, %v1659
  %v1661 = vpop.f32.mrb[0].mxu0
  %v1662 = vpop.f32.mrb[0].mxu0
  %v1663 = vadd.f32 %v295, %v1662
  %v1664 = vpop.f32.mrb[0].mxu0
  %1665 = vmatprep.mubr.bf16.mxu0 0
  %1666 = vmatmul.mubr.bf16.gmra.mrb[0].mxu0 %v874
  %v1667 = vpop.f32.mrb[0].mxu0
  %v1668 = vadd.f32 %v295, %v1667
  %v1669 = vpop.f32.mrb[0].mxu0
  %v1670 = vpop.f32.mrb[0].mxu0
  %v1671 = vadd.f32 %v295, %v1670
  %v1672 = vpop.f32.mrb[0].mxu0
  %1673 = vmatprep.mubr.bf16.mxu0 0
  %1674 = vmatmul.mubr.bf16.gmra.mrb[0].mxu0 %v875
  %v1675 = vpop.f32.mrb[0].mxu0
  %v1676 = vadd.f32 %v295, %v1675
  %v1677 = vpop.f32.mrb[0].mxu0
  %v1678 = vpop.f32.mrb[0].mxu0
  %v1679 = vadd.f32 %v295, %v1678
  %v1680 = vpop.f32.mrb[0].mxu0
  %1681 = vmatprep.mubr.bf16.mxu0 0
  %1682 = vmatmul.mubr.bf16.gmra.mrb[0].mxu0 %v876
  %v1683 = vpop.f32.mrb[0].mxu0
  %v1684 = vadd.f32 %v295, %v1683
  %v1685 = vpop.f32.mrb[0].mxu0
  %v1686 = vpop.f32.mrb[0].mxu0
  %v1687 = vadd.f32 %v295, %v1686
  %v1688 = vpop.f32.mrb[0].mxu0
  %1689 = vmatprep.mubr.bf16.mxu0 0
  %1690 = vmatmul.mubr.bf16.gmra.mrb[0].mxu0 %v877
  %v1691 = vpop.f32.mrb[0].mxu0
  %v1692 = vadd.f32 %v295, %v1691
  %v1693 = vpop.f32.mrb[0].mxu0
  %v1694 = vpop.f32.mrb[0].mxu0
  %v1695 = vadd.f32 %v295, %v1694
  %v1696 = vpop.f32.mrb[0].mxu0
  %1697 = vmatprep.mubr.bf16.mxu0 0
  %1698 = vmatmul.mubr.bf16.gmra.mrb[0].mxu0 %v878
  %v1699 = vpop.f32.mrb[0].mxu0
  %v1700 = vadd.f32 %v295, %v1699
  %v1701 = vpop.f32.mrb[0].mxu0
  %v1702 = vpop.f32.mrb[0].mxu0
  %v1703 = vadd.f32 %v295, %v1702
  %v1704 = vpop.f32.mrb[0].mxu0
  %1705 = vmatprep.mubr.bf16.mxu0 0
  %1706 = vmatmul.mubr.bf16.gmra.mrb[0].mxu0 %v879
  %v1707 = vpop.f32.mrb[0].mxu0
  %v1708 = vadd.f32 %v295, %v1707
  %v1709 = vpop.f32.mrb[0].mxu0
  %v1710 = vpop.f32.mrb[0].mxu0
  %v1711 = vadd.f32 %v295, %v1710
  %v1712 = vpop.f32.mrb[0].mxu0
  %1713 = vmatprep.mubr.bf16.mxu0 0
  %1714 = vmatmul.mubr.bf16.gmra.mrb[0].mxu0 %v880
  %v1715 = vpop.f32.mrb[0].mxu0
  %v1716 = vadd.f32 %v295, %v1715
  %v1717 = vpop.f32.mrb[0].mxu0
  %v1718 = vpop.f32.mrb[0].mxu0
  %v1719 = vadd.f32 %v295, %v1718
  %v1720 = vpop.f32.mrb[0].mxu0
  %1721 = vmatprep.mubr.bf16.mxu0 0
  %1722 = vmatmul.mubr.bf16.gmra.mrb[0].mxu0 %v881
  %v1723 = vpop.f32.mrb[0].mxu0
  %v1724 = vadd.f32 %v295, %v1723
  %v1725 = vpop.f32.mrb[0].mxu0
  %v1726 = vpop.f32.mrb[0].mxu0
  %v1727 = vadd.f32 %v295, %v1726
  %v1728 = vpop.f32.mrb[0].mxu0
  %1729 = vmatprep.mubr.bf16.mxu0 0
  %1730 = vmatmul.mubr.bf16.gmra.mrb[0].mxu0 %v882
  %v1731 = vpop.f32.mrb[0].mxu0
  %v1732 = vadd.f32 %v295, %v1731
  %v1733 = vpop.f32.mrb[0].mxu0
  %v1734 = vpop.f32.mrb[0].mxu0
  %v1735 = vadd.f32 %v295, %v1734
  %v1736 = vpop.f32.mrb[0].mxu0
  %1737 = vmatprep.mubr.bf16.mxu0 0
  %1738 = vmatmul.mubr.bf16.gmra.mrb[0].mxu0 %v883
  %v1739 = vpop.f32.mrb[0].mxu0
  %v1740 = vadd.f32 %v295, %v1739
  %v1741 = vpop.f32.mrb[0].mxu0
  %v1742 = vpop.f32.mrb[0].mxu0
  %v1743 = vadd.f32 %v295, %v1742
  %v1744 = vpop.f32.mrb[0].mxu0
  %1745 = vmatprep.mubr.bf16.mxu0 0
  %1746 = vmatmul.mubr.bf16.gmra.mrb[0].mxu0 %v884
  %v1747 = vpop.f32.mrb[0].mxu0
  %v1748 = vadd.f32 %v295, %v1747
  %v1749 = vpop.f32.mrb[0].mxu0
  %v1750 = vpop.f32.mrb[0].mxu0
  %v1751 = vadd.f32 %v295, %v1750
  %v1752 = vpop.f32.mrb[0].mxu0
  %1753 = vmatprep.mubr.bf16.mxu0 0
  %1754 = vmatmul.mubr.bf16.gmra.mrb[0].mxu0 %v885
  %v1755 = vpop.f32.mrb[0].mxu0
  %v1756 = vadd.f32 %v295, %v1755
  %v1757 = vpop.f32.mrb[0].mxu0
  %v1758 = vpop.f32.mrb[0].mxu0
  %v1759 = vadd.f32 %v295, %v1758
  %v1760 = vpop.f32.mrb[0].mxu0
  %1761 = vmatprep.mubr.bf16.mxu0 0
  %1762 = vmatmul.mubr.bf16.gmra.mrb[0].mxu0 %v886
  %v1763 = vpop.f32.mrb[0].mxu0
  %v1764 = vadd.f32 %v295, %v1763
  %v1765 = vpop.f32.mrb[0].mxu0
  %v1766 = vpop.f32.mrb[0].mxu0
  %v1767 = vadd.f32 %v295, %v1766
  %v1768 = vpop.f32.mrb[0].mxu0
  %1769 = vmatprep.mubr.bf16.mxu0 0
  %1770 = vmatmul.mubr.bf16.gmra.mrb[0].mxu0 %v887
  %v1771 = vpop.f32.mrb[0].mxu0
  %v1772 = vadd.f32 %v295, %v1771
  %v1773 = vpop.f32.mrb[0].mxu0
  %v1774 = vpop.f32.mrb[0].mxu0
  %v1775 = vadd.f32 %v295, %v1774
  %v1776 = vpop.f32.mrb[0].mxu0
  %1777 = vmatprep.mubr.bf16.mxu0 0
  %1778 = vmatmul.mubr.bf16.gmra.mrb[0].mxu0 %v888
  %v1779 = vpop.f32.mrb[0].mxu0
  %v1780 = vadd.f32 %v295, %v1779
  %v1781 = vpop.f32.mrb[0].mxu0
  %v1782 = vpop.f32.mrb[0].mxu0
  %v1783 = vadd.f32 %v295, %v1782
  %v1784 = vpop.f32.mrb[0].mxu0
  %1785 = vmatprep.mubr.bf16.mxu0 0
  %1786 = vmatmul.mubr.bf16.gmra.mrb[0].mxu0 %v889
  %v1787 = vpop.f32.mrb[0].mxu0
  %v1788 = vadd.f32 %v295, %v1787
  %v1789 = vpop.f32.mrb[0].mxu0
  %v1790 = vpop.f32.mrb[0].mxu0
  %v1791 = vadd.f32 %v295, %v1790
  %v1792 = vpop.f32.mrb[0].mxu0
  %1793 = vmatprep.mubr.bf16.mxu0 0
  %1794 = vmatmul.mubr.bf16.gmra.mrb[0].mxu0 %v890
  %v1795 = vpop.f32.mrb[0].mxu0
  %v1796 = vadd.f32 %v295, %v1795
  %v1797 = vpop.f32.mrb[0].mxu0
  %v1798 = vpop.f32.mrb[0].mxu0
  %v1799 = vadd.f32 %v295, %v1798
  %v1800 = vpop.f32.mrb[0].mxu0
  %1801 = vmatprep.mubr.bf16.mxu0 0
  %1802 = vmatmul.mubr.bf16.gmra.mrb[0].mxu0 %v891
  %v1803 = vpop.f32.mrb[0].mxu0
  %v1804 = vadd.f32 %v295, %v1803
  %v1805 = vpop.f32.mrb[0].mxu0
  %v1806 = vpop.f32.mrb[0].mxu0
  %v1807 = vadd.f32 %v295, %v1806
  %v1808 = vpop.f32.mrb[0].mxu0
  %1809 = vmatprep.mubr.bf16.mxu0 0
  %1810 = vmatmul.mubr.bf16.gmra.mrb[0].mxu0 %v892
  %v1811 = vpop.f32.mrb[0].mxu0
  %v1812 = vadd.f32 %v295, %v1811
  %v1813 = vpop.f32.mrb[0].mxu0
  %v1814 = vpop.f32.mrb[0].mxu0
  %v1815 = vadd.f32 %v295, %v1814
  %v1816 = vpop.f32.mrb[0].mxu0
  %1817 = vmatprep.mubr.bf16.mxu0 0
  %1818 = vmatmul.mubr.bf16.gmra.mrb[0].mxu0 %v893
  %v1819 = vpop.f32.mrb[0].mxu0
  %v1820 = vadd.f32 %v295, %v1819
  %v1821 = vpop.f32.mrb[0].mxu0
  %v1822 = vpop.f32.mrb[0].mxu0
  %v1823 = vadd.f32 %v295, %v1822
  %v1824 = vpop.f32.mrb[0].mxu0
  %1825 = vmatprep.mubr.bf16.mxu0 0
  %1826 = vmatmul.mubr.bf16.gmra.mrb[0].mxu0 %v894
  %v1827 = vpop.f32.mrb[0].mxu0
  %v1828 = vadd.f32 %v295, %v1827
  %v1829 = vpop.f32.mrb[0].mxu0
  %v1830 = vpop.f32.mrb[0].mxu0
  %v1831 = vadd.f32 %v295, %v1830
  %v1832 = vpop.f32.mrb[0].mxu0
  %1833 = vmatprep.mubr.bf16.mxu0 0
  %1834 = vmatmul.mubr.bf16.gmra.mrb[0].mxu0 %v895
  %v1835 = vpop.f32.mrb[0].mxu0
  %v1836 = vadd.f32 %v295, %v1835
  %v1837 = vpop.f32.mrb[0].mxu0
  %v1838 = vpop.f32.mrb[0].mxu0
  %v1839 = vadd.f32 %v295, %v1838
  %v1840 = vpop.f32.mrb[0].mxu0
  %1841 = vmatprep.mubr.bf16.mxu0 0
  %1842 = vmatmul.mubr.bf16.gmra.mrb[0].mxu0 %v896
  %v1843 = vpop.f32.mrb[0].mxu0
  %v1844 = vadd.f32 %v295, %v1843
  %v1845 = vpop.f32.mrb[0].mxu0
  %v1846 = vpop.f32.mrb[0].mxu0
  %v1847 = vadd.f32 %v295, %v1846
  %v1848 = vpop.f32.mrb[0].mxu0
  %1849 = vmatprep.mubr.bf16.mxu0 0
  %1850 = vmatmul.mubr.bf16.gmra.mrb[0].mxu0 %v897
  %v1851 = vpop.f32.mrb[0].mxu0
  %v1852 = vadd.f32 %v295, %v1851
  %v1853 = vpop.f32.mrb[0].mxu0
  %v1854 = vpop.f32.mrb[0].mxu0
  %v1855 = vadd.f32 %v295, %v1854
  %v1856 = vpop.f32.mrb[0].mxu0
  %1857 = vmatprep.mubr.bf16.mxu0 0
  %1858 = vmatmul.mubr.bf16.gmra.mrb[0].mxu0 %v898
  %v1859 = vpop.f32.mrb[0].mxu0
  %v1860 = vadd.f32 %v295, %v1859
  %v1861 = vpop.f32.mrb[0].mxu0
  %v1862 = vpop.f32.mrb[0].mxu0
  %v1863 = vadd.f32 %v295, %v1862
  %v1864 = vpop.f32.mrb[0].mxu0
  %1865 = vmatprep.mubr.bf16.mxu0 0
  %1866 = vmatmul.mubr.bf16.gmra.mrb[0].mxu0 %v899
  %v1867 = vpop.f32.mrb[0].mxu0
  %v1868 = vadd.f32 %v295, %v1867
  %v1869 = vpop.f32.mrb[0].mxu0
  %v1870 = vpop.f32.mrb[0].mxu0
  %v1871 = vadd.f32 %v295, %v1870
  %v1872 = vpop.f32.mrb[0].mxu0
  %1873 = vmatprep.mubr.bf16.mxu0 0
  %1874 = vmatmul.mubr.bf16.gmra.mrb[0].mxu0 %v900
  %v1875 = vpop.f32.mrb[0].mxu0
  %v1876 = vadd.f32 %v295, %v1875
  %v1877 = vpop.f32.mrb[0].mxu0
  %v1878 = vpop.f32.mrb[0].mxu0
  %v1879 = vadd.f32 %v295, %v1878
  %v1880 = vpop.f32.mrb[0].mxu0
  %1881 = vmatprep.mubr.bf16.mxu0 0
  %1882 = vmatmul.mubr.bf16.gmra.mrb[0].mxu0 %v901
  %v1883 = vpop.f32.mrb[0].mxu0
  %v1884 = vadd.f32 %v295, %v1883
  %v1885 = vpop.f32.mrb[0].mxu0
  %v1886 = vpop.f32.mrb[0].mxu0
  %v1887 = vadd.f32 %v295, %v1886
  %v1888 = vpop.f32.mrb[0].mxu0
  %1889 = vmatprep.mubr.bf16.mxu0 0
  %1890 = vmatmul.mubr.bf16.gmra.mrb[0].mxu0 %v902
  %v1891 = vpop.f32.mrb[0].mxu0
  %v1892 = vadd.f32 %v295, %v1891
  %v1893 = vpop.f32.mrb[0].mxu0
  %v1894 = vpop.f32.mrb[0].mxu0
  %v1895 = vadd.f32 %v295, %v1894
  %v1896 = vpop.f32.mrb[0].mxu0
  %1897 = vmatprep.mubr.bf16.mxu0 0
  %1898 = vmatmul.mubr.bf16.gmra.mrb[0].mxu0 %v903
  %v1899 = vpop.f32.mrb[0].mxu0
  %v1900 = vadd.f32 %v295, %v1899
  %v1901 = vpop.f32.mrb[0].mxu0
  %v1902 = vpop.f32.mrb[0].mxu0
  %v1903 = vadd.f32 %v295, %v1902
  %v1904 = vpop.f32.mrb[0].mxu0
  %1905 = vmatprep.mubr.bf16.mxu0 0
  %1906 = vmatmul.mubr.bf16.gmra.mrb[0].mxu0 %v904
  %v1907 = vpop.f32.mrb[0].mxu0
  %v1908 = vadd.f32 %v295, %v1907
  %v1909 = vpop.f32.mrb[0].mxu0
  %v1910 = vpop.f32.mrb[0].mxu0
  %v1911 = vadd.f32 %v295, %v1910
  %v1912 = vpop.f32.mrb[0].mxu0
  %1913 = vmatprep.mubr.bf16.mxu0 0
  %1914 = vmatmul.mubr.bf16.gmra.mrb[0].mxu0 %v905
  %v1915 = vpop.f32.mrb[0].mxu0
  %v1916 = vadd.f32 %v295, %v1915
  %v1917 = vpop.f32.mrb[0].mxu0
  %v1918 = vpop.f32.mrb[0].mxu0
  %v1919 = vadd.f32 %v295, %v1918
  %v1920 = vpop.f32.mrb[0].mxu0
  %1921 = vmatprep.mubr.bf16.mxu0 0
  %1922 = vmatmul.mubr.bf16.gmra.mrb[0].mxu0 %v906
  %v1923 = vpop.f32.mrb[0].mxu0
  %v1924 = vadd.f32 %v295, %v1923
  %v1925 = vpop.f32.mrb[0].mxu0
  %v1926 = vpop.f32.mrb[0].mxu0
  %v1927 = vadd.f32 %v295, %v1926
  %v1928 = vpop.f32.mrb[0].mxu0
  %1929 = vmatprep.mubr.bf16.mxu0 0
  %1930 = vmatmul.mubr.bf16.gmra.mrb[0].mxu0 %v907
  %v1931 = vpop.f32.mrb[0].mxu0
  %v1932 = vadd.f32 %v295, %v1931
  %v1933 = vpop.f32.mrb[0].mxu0
  %v1934 = vpop.f32.mrb[0].mxu0
  %v1935 = vadd.f32 %v295, %v1934
  %v1936 = vpop.f32.mrb[0].mxu0
  %1937 = vmatprep.mubr.bf16.mxu0 0
  %1938 = vmatmul.mubr.bf16.gmra.mrb[0].mxu0 %v908
  %v1939 = vpop.f32.mrb[0].mxu0
  %v1940 = vadd.f32 %v295, %v1939
  %v1941 = vpop.f32.mrb[0].mxu0
  %v1942 = vpop.f32.mrb[0].mxu0
  %v1943 = vadd.f32 %v295, %v1942
  %v1944 = vpop.f32.mrb[0].mxu0
  %1945 = vmatprep.mubr.bf16.mxu0 0
  %1946 = vmatmul.mubr.bf16.gmra.mrb[0].mxu0 %v909
  %v1947 = vpop.f32.mrb[0].mxu0
  %v1948 = vadd.f32 %v295, %v1947
  %v1949 = vpop.f32.mrb[0].mxu0
  %v1950 = vpop.f32.mrb[0].mxu0
  %v1951 = vadd.f32 %v295, %v1950
  %v1952 = vpop.f32.mrb[0].mxu0
  %1953 = vmatprep.mubr.bf16.mxu0 0
  %1954 = vmatmul.mubr.bf16.gmra.mrb[0].mxu0 %v910
  %v1955 = vpop.f32.mrb[0].mxu0
  %v1956 = vadd.f32 %v295, %v1955
  %v1957 = vpop.f32.mrb[0].mxu0
  %v1958 = vpop.f32.mrb[0].mxu0
  %v1959 = vadd.f32 %v295, %v1958
  %v1960 = vpop.f32.mrb[0].mxu0
  %1961 = vmatprep.mubr.bf16.mxu0 0
  %1962 = vmatmul.mubr.bf16.gmra.mrb[0].mxu0 %v911
  %v1963 = vpop.f32.mrb[0].mxu0
  %v1964 = vadd.f32 %v295, %v1963
  %v1965 = vpop.f32.mrb[0].mxu0
  %v1966 = vpop.f32.mrb[0].mxu0
  %v1967 = vadd.f32 %v295, %v1966
  %v1968 = vpop.f32.mrb[0].mxu0
  %1969 = vmatprep.mubr.bf16.mxu0 0
  %1970 = vmatmul.mubr.bf16.gmra.mrb[0].mxu0 %v912
  %v1971 = vpop.f32.mrb[0].mxu0
  %v1972 = vadd.f32 %v295, %v1971
  %v1973 = vpop.f32.mrb[0].mxu0
  %v1974 = vpop.f32.mrb[0].mxu0
  %v1975 = vadd.f32 %v295, %v1974
  %v1976 = vpop.f32.mrb[0].mxu0
  %1977 = vmatprep.mubr.bf16.mxu0 0
  %1978 = vmatmul.mubr.bf16.gmra.mrb[0].mxu0 %v913
  %v1979 = vpop.f32.mrb[0].mxu0
  %v1980 = vadd.f32 %v295, %v1979
  %v1981 = vpop.f32.mrb[0].mxu0
  %v1982 = vpop.f32.mrb[0].mxu0
  %v1983 = vadd.f32 %v295, %v1982
  %v1984 = vpop.f32.mrb[0].mxu0
  %1985 = vmatprep.mubr.bf16.mxu0 0
  %1986 = vmatmul.mubr.bf16.gmra.mrb[0].mxu0 %v914
  %v1987 = vpop.f32.mrb[0].mxu0
  %v1988 = vadd.f32 %v295, %v1987
  %v1989 = vpop.f32.mrb[0].mxu0
  %v1990 = vpop.f32.mrb[0].mxu0
  %v1991 = vadd.f32 %v295, %v1990
  %v1992 = vpop.f32.mrb[0].mxu0
  %1993 = vmatprep.mubr.bf16.mxu0 0
  %1994 = vmatmul.mubr.bf16.gmra.mrb[0].mxu0 %v915
  %v1995 = vpop.f32.mrb[0].mxu0
  %v1996 = vadd.f32 %v295, %v1995
  %v1997 = vpop.f32.mrb[0].mxu0
  %v1998 = vpop.f32.mrb[0].mxu0
  %v1999 = vadd.f32 %v295, %v1998
  %v2000 = vpop.f32.mrb[0].mxu0
  %2001 = vmatprep.mubr.bf16.mxu0 0
  %2002 = vmatmul.mubr.bf16.gmra.mrb[0].mxu0 %v916
  %v2003 = vpop.f32.mrb[0].mxu0
  %v2004 = vadd.f32 %v295, %v2003
  %v2005 = vpop.f32.mrb[0].mxu0
  %v2006 = vpop.f32.mrb[0].mxu0
  %v2007 = vadd.f32 %v295, %v2006
  %v2008 = vpop.f32.mrb[0].mxu0
  %2009 = vmatprep.mubr.bf16.mxu0 0
  %2010 = vmatmul.mubr.bf16.gmra.mrb[0].mxu0 %v917
  %v2011 = vpop.f32.mrb[0].mxu0
  %v2012 = vadd.f32 %v295, %v2011
  %v2013 = vpop.f32.mrb[0].mxu0
  %v2014 = vpop.f32.mrb[0].mxu0
  %v2015 = vadd.f32 %v295, %v2014
  %v2016 = vpop.f32.mrb[0].mxu0
  %2017 = vmatprep.mubr.bf16.mxu0 0
  %2018 = vmatmul.mubr.bf16.gmra.mrb[0].mxu0 %v918
  %v2019 = vpop.f32.mrb[0].mxu0
  %v2020 = vadd.f32 %v295, %v2019
  %v2021 = vpop.f32.mrb[0].mxu0
  %v2022 = vpop.f32.mrb[0].mxu0
  %v2023 = vadd.f32 %v295, %v2022
  %v2024 = vpop.f32.mrb[0].mxu0
  %2025 = vmatprep.mubr.bf16.mxu0 0
  %2026 = vmatmul.mubr.bf16.gmra.mrb[0].mxu0 %v919
  %v2027 = vpop.f32.mrb[0].mxu0
  %v2028 = vadd.f32 %v295, %v2027
  %v2029 = vpop.f32.mrb[0].mxu0
  %v2030 = vpop.f32.mrb[0].mxu0
  %v2031 = vadd.f32 %v295, %v2030
  %v2032 = vpop.f32.mrb[0].mxu0
  %2033 = vmatprep.mubr.bf16.mxu0 0
  %2034 = vmatmul.mubr.bf16.gmra.mrb[0].mxu0 %v920
  %v2035 = vpop.f32.mrb[0].mxu0
  %v2036 = vadd.f32 %v295, %v2035
  %v2037 = vpop.f32.mrb[0].mxu0
  %v2038 = vpop.f32.mrb[0].mxu0
  %v2039 = vadd.f32 %v295, %v2038
  %v2040 = vpop.f32.mrb[0].mxu0
  %2041 = vmatprep.mubr.bf16.mxu0 0
  %2042 = vmatmul.mubr.bf16.gmra.mrb[0].mxu0 %v921
  %v2043 = vpop.f32.mrb[0].mxu0
  %v2044 = vadd.f32 %v295, %v2043
  %v2045 = vpop.f32.mrb[0].mxu0
  %v2046 = vpop.f32.mrb[0].mxu0
  %v2047 = vadd.f32 %v295, %v2046
  %v2048 = vpop.f32.mrb[0].mxu0
  %2049 = vmatprep.mubr.bf16.mxu0 0
  %2050 = vmatmul.mubr.bf16.gmra.mrb[0].mxu0 %v922
  %v2051 = vpop.f32.mrb[0].mxu0
  %v2052 = vadd.f32 %v295, %v2051
  %v2053 = vpop.f32.mrb[0].mxu0
  %v2054 = vpop.f32.mrb[0].mxu0
  %v2055 = vadd.f32 %v295, %v2054
  %v2056 = vpop.f32.mrb[0].mxu0
  %2057 = vmatprep.mubr.bf16.mxu0 0
  %2058 = vmatmul.mubr.bf16.gmra.mrb[0].mxu0 %v923
  %v2059 = vpop.f32.mrb[0].mxu0
  %v2060 = vadd.f32 %v295, %v2059
  %v2061 = vpop.f32.mrb[0].mxu0
  %v2062 = vpop.f32.mrb[0].mxu0
  %v2063 = vadd.f32 %v295, %v2062
  %v2064 = vpop.f32.mrb[0].mxu0
  %2065 = vmatprep.mubr.bf16.mxu0 0
  %2066 = vmatmul.mubr.bf16.gmra.mrb[0].mxu0 %v924
  %v2067 = vpop.f32.mrb[0].mxu0
  %v2068 = vadd.f32 %v295, %v2067
  %v2069 = vpop.f32.mrb[0].mxu0
  %v2070 = vpop.f32.mrb[0].mxu0
  %v2071 = vadd.f32 %v295, %v2070
  %v2072 = vpop.f32.mrb[0].mxu0
  %2073 = vmatprep.mubr.bf16.mxu0 0
  %2074 = vmatmul.mubr.bf16.gmra.mrb[0].mxu0 %v925
  %v2075 = vpop.f32.mrb[0].mxu0
  %v2076 = vadd.f32 %v295, %v2075
  %v2077 = vpop.f32.mrb[0].mxu0
  %v2078 = vpop.f32.mrb[0].mxu0
  %v2079 = vadd.f32 %v295, %v2078
  %v2080 = vpop.f32.mrb[0].mxu0
  %2081 = vmatprep.mubr.bf16.mxu0 0
  %2082 = vmatmul.mubr.bf16.gmra.mrb[0].mxu0 %v926
  %v2083 = vpop.f32.mrb[0].mxu0
  %v2084 = vadd.f32 %v295, %v2083
  %v2085 = vpop.f32.mrb[0].mxu0
  %v2086 = vpop.f32.mrb[0].mxu0
  %v2087 = vadd.f32 %v295, %v2086
  %v2088 = vpop.f32.mrb[0].mxu0
  %2089 = vmatprep.mubr.bf16.mxu0 0
  %2090 = vmatmul.mubr.bf16.gmra.mrb[0].mxu0 %v927
  %v2091 = vpop.f32.mrb[0].mxu0
  %v2092 = vadd.f32 %v295, %v2091
  %v2093 = vpop.f32.mrb[0].mxu0
  %v2094 = vpop.f32.mrb[0].mxu0
  %v2095 = vadd.f32 %v295, %v2094
  %v2096 = vpop.f32.mrb[0].mxu0
  %2097 = vmatprep.mubr.bf16.mxu0 0
  %2098 = vmatmul.mubr.bf16.gmra.mrb[0].mxu0 %v928
  %v2099 = vpop.f32.mrb[0].mxu0
  %v2100 = vadd.f32 %v295, %v2099
  %v2101 = vpop.f32.mrb[0].mxu0
  %v2102 = vpop.f32.mrb[0].mxu0
  %v2103 = vadd.f32 %v295, %v2102
  %v2104 = vpop.f32.mrb[0].mxu0
  %2105 = vmatprep.mubr.bf16.mxu0 0
  %2106 = vmatmul.mubr.bf16.gmra.mrb[0].mxu0 %v929
  %v2107 = vpop.f32.mrb[0].mxu0
  %v2108 = vadd.f32 %v295, %v2107
  %v2109 = vpop.f32.mrb[0].mxu0
  %v2110 = vpop.f32.mrb[0].mxu0
  %v2111 = vadd.f32 %v295, %v2110
  %v2112 = vpop.f32.mrb[0].mxu0
  %2113 = vmatprep.mubr.bf16.mxu0 0
  %2114 = vmatmul.mubr.bf16.gmra.mrb[0].mxu0 %v930
  %v2115 = vpop.f32.mrb[0].mxu0
  %v2116 = vadd.f32 %v295, %v2115
  %v2117 = vpop.f32.mrb[0].mxu0
  %v2118 = vpop.f32.mrb[0].mxu0
  %v2119 = vadd.f32 %v295, %v2118
  %v2120 = vpop.f32.mrb[0].mxu0
  %2121 = vmatprep.mubr.bf16.mxu0 0
  %2122 = vmatmul.mubr.bf16.gmra.mrb[0].mxu0 %v931
  %v2123 = vpop.f32.mrb[0].mxu0
  %v2124 = vadd.f32 %v295, %v2123
  %v2125 = vpop.f32.mrb[0].mxu0
  %v2126 = vpop.f32.mrb[0].mxu0
  %v2127 = vadd.f32 %v295, %v2126
  %v2128 = vpop.f32.mrb[0].mxu0
  %2129 = vmatprep.mubr.bf16.mxu0 0
  %2130 = vmatmul.mubr.bf16.gmra.mrb[0].mxu0 %v932
  %v2131 = vpop.f32.mrb[0].mxu0
  %v2132 = vadd.f32 %v295, %v2131
  %v2133 = vpop.f32.mrb[0].mxu0
  %v2134 = vpop.f32.mrb[0].mxu0
  %v2135 = vadd.f32 %v295, %v2134
  %v2136 = vpop.f32.mrb[0].mxu0
  %2137 = vmatprep.mubr.bf16.mxu0 0
  %2138 = vmatmul.mubr.bf16.gmra.mrb[0].mxu0 %v933
  %v2139 = vpop.f32.mrb[0].mxu0
  %v2140 = vadd.f32 %v295, %v2139
  %v2141 = vpop.f32.mrb[0].mxu0
  %v2142 = vpop.f32.mrb[0].mxu0
  %v2143 = vadd.f32 %v295, %v2142
  %v2144 = vpop.f32.mrb[0].mxu0
  %2145 = vmatprep.mubr.bf16.mxu0 0
  %2146 = vmatmul.mubr.bf16.gmra.mrb[0].mxu0 %v934
  %v2147 = vpop.f32.mrb[0].mxu0
  %v2148 = vadd.f32 %v295, %v2147
  %v2149 = vpop.f32.mrb[0].mxu0
  %v2150 = vpop.f32.mrb[0].mxu0
  %v2151 = vadd.f32 %v295, %v2150
  %v2152 = vpop.f32.mrb[0].mxu0
  %2153 = vmatprep.mubr.bf16.mxu0 0
  %2154 = vmatmul.mubr.bf16.gmra.mrb[0].mxu0 %v935
  %v2155 = vpop.f32.mrb[0].mxu0
  %v2156 = vadd.f32 %v295, %v2155
  %v2157 = vpop.f32.mrb[0].mxu0
  %v2158 = vpop.f32.mrb[0].mxu0
  %v2159 = vadd.f32 %v295, %v2158
  %v2160 = vpop.f32.mrb[0].mxu0
  %2161 = vmatprep.mubr.bf16.mxu0 0
  %2162 = vmatmul.mubr.bf16.gmra.mrb[0].mxu0 %v936
  %v2163 = vpop.f32.mrb[0].mxu0
  %v2164 = vadd.f32 %v295, %v2163
  %v2165 = vpop.f32.mrb[0].mxu0
  %v2166 = vpop.f32.mrb[0].mxu0
  %v2167 = vadd.f32 %v295, %v2166
  %v2168 = vpop.f32.mrb[0].mxu0
  %2169 = vdwg.mxu0
  %2170 = vst [vmem:[%s3] sm:$0xff] %v1148
  %2171 = vst [vmem:[%s3 + $0x8] sm:$0xff] %v1151
  %2172 = vst [vmem:[%s3 + $0x10] sm:$0xff] %v1156
  %2173 = vst [vmem:[%s3 + $0x18] sm:$0xff] %v1159
  %2174 = vst [vmem:[%s3 + $0x20] sm:$0xff] %v1164
  %2175 = vst [vmem:[%s3 + $0x28] sm:$0xff] %v1167
  %2176 = vst [vmem:[%s3 + $0x30] sm:$0xff] %v1172
  %2177 = vst [vmem:[%s3 + $0x38] sm:$0xff] %v1175
  %2178 = vst [vmem:[%s3 + $0x40] sm:$0xff] %v1180
  %2179 = vst [vmem:[%s3 + $0x48] sm:$0xff] %v1183
  %2180 = vst [vmem:[%s3 + $0x50] sm:$0xff] %v1188
  %2181 = vst [vmem:[%s3 + $0x58] sm:$0xff] %v1191
  %2182 = vst [vmem:[%s3 + $0x60] sm:$0xff] %v1196
  %2183 = vst [vmem:[%s3 + $0x68] sm:$0xff] %v1199
  %2184 = vst [vmem:[%s3 + $0x70] sm:$0xff] %v1204
  %2185 = vst [vmem:[%s3 + $0x78] sm:$0xff] %v1207
  %2186 = vst [vmem:[%s3 + $0x80] sm:$0xff] %v1212
  %2187 = vst [vmem:[%s3 + $0x88] sm:$0xff] %v1215
  %2188 = vst [vmem:[%s3 + $0x90] sm:$0xff] %v1220
  %2189 = vst [vmem:[%s3 + $0x98] sm:$0xff] %v1223
  %2190 = vst [vmem:[%s3 + $0xa0] sm:$0xff] %v1228
  %2191 = vst [vmem:[%s3 + $0xa8] sm:$0xff] %v1231
  %2192 = vst [vmem:[%s3 + $0xb0] sm:$0xff] %v1236
  %2193 = vst [vmem:[%s3 + $0xb8] sm:$0xff] %v1239
  %2194 = vst [vmem:[%s3 + $0xc0] sm:$0xff] %v1244
  %2195 = vst [vmem:[%s3 + $0xc8] sm:$0xff] %v1247
  %2196 = vst [vmem:[%s3 + $0xd0] sm:$0xff] %v1252
  %2197 = vst [vmem:[%s3 + $0xd8] sm:$0xff] %v1255
  %2198 = vst [vmem:[%s3 + $0xe0] sm:$0xff] %v1260
  %2199 = vst [vmem:[%s3 + $0xe8] sm:$0xff] %v1263
  %2200 = vst [vmem:[%s3 + $0xf0] sm:$0xff] %v1268
  %2201 = vst [vmem:[%s3 + $0xf8] sm:$0xff] %v1271
  %2202 = vst [vmem:[%s3 + $0x100] sm:$0xff] %v1276
  %2203 = vst [vmem:[%s3 + $0x108] sm:$0xff] %v1279
  %2204 = vst [vmem:[%s3 + $0x110] sm:$0xff] %v1284
  %2205 = vst [vmem:[%s3 + $0x118] sm:$0xff] %v1287
  %2206 = vst [vmem:[%s3 + $0x120] sm:$0xff] %v1292
  %2207 = vst [vmem:[%s3 + $0x128] sm:$0xff] %v1295
  %2208 = vst [vmem:[%s3 + $0x130] sm:$0xff] %v1300
  %2209 = vst [vmem:[%s3 + $0x138] sm:$0xff] %v1303
  %2210 = vst [vmem:[%s3 + $0x140] sm:$0xff] %v1308
  %2211 = vst [vmem:[%s3 + $0x148] sm:$0xff] %v1311
  %2212 = vst [vmem:[%s3 + $0x150] sm:$0xff] %v1316
  %2213 = vst [vmem:[%s3 + $0x158] sm:$0xff] %v1319
  %2214 = vst [vmem:[%s3 + $0x160] sm:$0xff] %v1324
  %2215 = vst [vmem:[%s3 + $0x168] sm:$0xff] %v1327
  %2216 = vst [vmem:[%s3 + $0x170] sm:$0xff] %v1332
  %2217 = vst [vmem:[%s3 + $0x178] sm:$0xff] %v1335
  %2218 = vst [vmem:[%s3 + $0x180] sm:$0xff] %v1340
  %2219 = vst [vmem:[%s3 + $0x188] sm:$0xff] %v1343
  %2220 = vst [vmem:[%s3 + $0x190] sm:$0xff] %v1348
  %2221 = vst [vmem:[%s3 + $0x198] sm:$0xff] %v1351
  %2222 = vst [vmem:[%s3 + $0x1a0] sm:$0xff] %v1356
  %2223 = vst [vmem:[%s3 + $0x1a8] sm:$0xff] %v1359
  %2224 = vst [vmem:[%s3 + $0x1b0] sm:$0xff] %v1364
  %2225 = vst [vmem:[%s3 + $0x1b8] sm:$0xff] %v1367
  %2226 = vst [vmem:[%s3 + $0x1c0] sm:$0xff] %v1372
  %2227 = vst [vmem:[%s3 + $0x1c8] sm:$0xff] %v1375
  %2228 = vst [vmem:[%s3 + $0x1d0] sm:$0xff] %v1380
  %2229 = vst [vmem:[%s3 + $0x1d8] sm:$0xff] %v1383
  %2230 = vst [vmem:[%s3 + $0x1e0] sm:$0xff] %v1388
  %2231 = vst [vmem:[%s3 + $0x1e8] sm:$0xff] %v1391
  %2232 = vst [vmem:[%s3 + $0x1f0] sm:$0xff] %v1396
  %2233 = vst [vmem:[%s3 + $0x1f8] sm:$0xff] %v1399
  %2234 = vst [vmem:[%s3 + $0x200] sm:$0xff] %v1404
  %2235 = vst [vmem:[%s3 + $0x208] sm:$0xff] %v1407
  %2236 = vst [vmem:[%s3 + $0x210] sm:$0xff] %v1412
  %2237 = vst [vmem:[%s3 + $0x218] sm:$0xff] %v1415
  %2238 = vst [vmem:[%s3 + $0x220] sm:$0xff] %v1420
  %2239 = vst [vmem:[%s3 + $0x228] sm:$0xff] %v1423
  %2240 = vst [vmem:[%s3 + $0x230] sm:$0xff] %v1428
  %2241 = vst [vmem:[%s3 + $0x238] sm:$0xff] %v1431
  %2242 = vst [vmem:[%s3 + $0x240] sm:$0xff] %v1436
  %2243 = vst [vmem:[%s3 + $0x248] sm:$0xff] %v1439
  %2244 = vst [vmem:[%s3 + $0x250] sm:$0xff] %v1444
  %2245 = vst [vmem:[%s3 + $0x258] sm:$0xff] %v1447
  %2246 = vst [vmem:[%s3 + $0x260] sm:$0xff] %v1452
  %2247 = vst [vmem:[%s3 + $0x268] sm:$0xff] %v1455
  %2248 = vst [vmem:[%s3 + $0x270] sm:$0xff] %v1460
  %2249 = vst [vmem:[%s3 + $0x278] sm:$0xff] %v1463
  %2250 = vst [vmem:[%s3 + $0x280] sm:$0xff] %v1468
  %2251 = vst [vmem:[%s3 + $0x288] sm:$0xff] %v1471
  %2252 = vst [vmem:[%s3 + $0x290] sm:$0xff] %v1476
  %2253 = vst [vmem:[%s3 + $0x298] sm:$0xff] %v1479
  %2254 = vst [vmem:[%s3 + $0x2a0] sm:$0xff] %v1484
  %2255 = vst [vmem:[%s3 + $0x2a8] sm:$0xff] %v1487
  %2256 = vst [vmem:[%s3 + $0x2b0] sm:$0xff] %v1492
  %2257 = vst [vmem:[%s3 + $0x2b8] sm:$0xff] %v1495
  %2258 = vst [vmem:[%s3 + $0x2c0] sm:$0xff] %v1500
  %2259 = vst [vmem:[%s3 + $0x2c8] sm:$0xff] %v1503
  %2260 = vst [vmem:[%s3 + $0x2d0] sm:$0xff] %v1508
  %2261 = vst [vmem:[%s3 + $0x2d8] sm:$0xff] %v1511
  %2262 = vst [vmem:[%s3 + $0x2e0] sm:$0xff] %v1516
  %2263 = vst [vmem:[%s3 + $0x2e8] sm:$0xff] %v1519
  %2264 = vst [vmem:[%s3 + $0x2f0] sm:$0xff] %v1524
  %2265 = vst [vmem:[%s3 + $0x2f8] sm:$0xff] %v1527
  %2266 = vst [vmem:[%s3 + $0x300] sm:$0xff] %v1532
  %2267 = vst [vmem:[%s3 + $0x308] sm:$0xff] %v1535
  %2268 = vst [vmem:[%s3 + $0x310] sm:$0xff] %v1540
  %2269 = vst [vmem:[%s3 + $0x318] sm:$0xff] %v1543
  %2270 = vst [vmem:[%s3 + $0x320] sm:$0xff] %v1548
  %2271 = vst [vmem:[%s3 + $0x328] sm:$0xff] %v1551
  %2272 = vst [vmem:[%s3 + $0x330] sm:$0xff] %v1556
  %2273 = vst [vmem:[%s3 + $0x338] sm:$0xff] %v1559
  %2274 = vst [vmem:[%s3 + $0x340] sm:$0xff] %v1564
  %2275 = vst [vmem:[%s3 + $0x348] sm:$0xff] %v1567
  %2276 = vst [vmem:[%s3 + $0x350] sm:$0xff] %v1572
  %2277 = vst [vmem:[%s3 + $0x358] sm:$0xff] %v1575
  %2278 = vst [vmem:[%s3 + $0x360] sm:$0xff] %v1580
  %2279 = vst [vmem:[%s3 + $0x368] sm:$0xff] %v1583
  %2280 = vst [vmem:[%s3 + $0x370] sm:$0xff] %v1588
  %2281 = vst [vmem:[%s3 + $0x378] sm:$0xff] %v1591
  %2282 = vst [vmem:[%s3 + $0x380] sm:$0xff] %v1596
  %2283 = vst [vmem:[%s3 + $0x388] sm:$0xff] %v1599
  %2284 = vst [vmem:[%s3 + $0x390] sm:$0xff] %v1604
  %2285 = vst [vmem:[%s3 + $0x398] sm:$0xff] %v1607
  %2286 = vst [vmem:[%s3 + $0x3a0] sm:$0xff] %v1612
  %2287 = vst [vmem:[%s3 + $0x3a8] sm:$0xff] %v1615
  %2288 = vst [vmem:[%s3 + $0x3b0] sm:$0xff] %v1620
  %2289 = vst [vmem:[%s3 + $0x3b8] sm:$0xff] %v1623
  %2290 = vst [vmem:[%s3 + $0x3c0] sm:$0xff] %v1628
  %2291 = vst [vmem:[%s3 + $0x3c8] sm:$0xff] %v1631
  %2292 = vst [vmem:[%s3 + $0x3d0] sm:$0xff] %v1636
  %2293 = vst [vmem:[%s3 + $0x3d8] sm:$0xff] %v1639
  %2294 = vst [vmem:[%s3 + $0x3e0] sm:$0xff] %v1644
  %2295 = vst [vmem:[%s3 + $0x3e8] sm:$0xff] %v1647
  %2296 = vst [vmem:[%s3 + $0x3f0] sm:$0xff] %v1652
  %2297 = vst [vmem:[%s3 + $0x3f8] sm:$0xff] %v1655
  %2298 = vst [vmem:[%s3 + $0x400] sm:$0xff] %v1660
  %2299 = vst [vmem:[%s3 + $0x408] sm:$0xff] %v1663
  %2300 = vst [vmem:[%s3 + $0x410] sm:$0xff] %v1668
  %2301 = vst [vmem:[%s3 + $0x418] sm:$0xff] %v1671
  %2302 = vst [vmem:[%s3 + $0x420] sm:$0xff] %v1676
  %2303 = vst [vmem:[%s3 + $0x428] sm:$0xff] %v1679
  %2304 = vst [vmem:[%s3 + $0x430] sm:$0xff] %v1684
  %2305 = vst [vmem:[%s3 + $0x438] sm:$0xff] %v1687
  %2306 = vst [vmem:[%s3 + $0x440] sm:$0xff] %v1692
  %2307 = vst [vmem:[%s3 + $0x448] sm:$0xff] %v1695
  %2308 = vst [vmem:[%s3 + $0x450] sm:$0xff] %v1700
  %2309 = vst [vmem:[%s3 + $0x458] sm:$0xff] %v1703
  %2310 = vst [vmem:[%s3 + $0x460] sm:$0xff] %v1708
  %2311 = vst [vmem:[%s3 + $0x468] sm:$0xff] %v1711
  %2312 = vst [vmem:[%s3 + $0x470] sm:$0xff] %v1716
  %2313 = vst [vmem:[%s3 + $0x478] sm:$0xff] %v1719
  %2314 = vst [vmem:[%s3 + $0x480] sm:$0xff] %v1724
  %2315 = vst [vmem:[%s3 + $0x488] sm:$0xff] %v1727
  %2316 = vst [vmem:[%s3 + $0x490] sm:$0xff] %v1732
  %2317 = vst [vmem:[%s3 + $0x498] sm:$0xff] %v1735
  %2318 = vst [vmem:[%s3 + $0x4a0] sm:$0xff] %v1740
  %2319 = vst [vmem:[%s3 + $0x4a8] sm:$0xff] %v1743
  %2320 = vst [vmem:[%s3 + $0x4b0] sm:$0xff] %v1748
  %2321 = vst [vmem:[%s3 + $0x4b8] sm:$0xff] %v1751
  %2322 = vst [vmem:[%s3 + $0x4c0] sm:$0xff] %v1756
  %2323 = vst [vmem:[%s3 + $0x4c8] sm:$0xff] %v1759
  %2324 = vst [vmem:[%s3 + $0x4d0] sm:$0xff] %v1764
  %2325 = vst [vmem:[%s3 + $0x4d8] sm:$0xff] %v1767
  %2326 = vst [vmem:[%s3 + $0x4e0] sm:$0xff] %v1772
  %2327 = vst [vmem:[%s3 + $0x4e8] sm:$0xff] %v1775
  %2328 = vst [vmem:[%s3 + $0x4f0] sm:$0xff] %v1780
  %2329 = vst [vmem:[%s3 + $0x4f8] sm:$0xff] %v1783
  %2330 = vst [vmem:[%s3 + $0x500] sm:$0xff] %v1788
  %2331 = vst [vmem:[%s3 + $0x508] sm:$0xff] %v1791
  %2332 = vst [vmem:[%s3 + $0x510] sm:$0xff] %v1796
  %2333 = vst [vmem:[%s3 + $0x518] sm:$0xff] %v1799
  %2334 = vst [vmem:[%s3 + $0x520] sm:$0xff] %v1804
  %2335 = vst [vmem:[%s3 + $0x528] sm:$0xff] %v1807
  %2336 = vst [vmem:[%s3 + $0x530] sm:$0xff] %v1812
  %2337 = vst [vmem:[%s3 + $0x538] sm:$0xff] %v1815
  %2338 = vst [vmem:[%s3 + $0x540] sm:$0xff] %v1820
  %2339 = vst [vmem:[%s3 + $0x548] sm:$0xff] %v1823
  %2340 = vst [vmem:[%s3 + $0x550] sm:$0xff] %v1828
  %2341 = vst [vmem:[%s3 + $0x558] sm:$0xff] %v1831
  %2342 = vst [vmem:[%s3 + $0x560] sm:$0xff] %v1836
  %2343 = vst [vmem:[%s3 + $0x568] sm:$0xff] %v1839
  %2344 = vst [vmem:[%s3 + $0x570] sm:$0xff] %v1844
  %2345 = vst [vmem:[%s3 + $0x578] sm:$0xff] %v1847
  %2346 = vst [vmem:[%s3 + $0x580] sm:$0xff] %v1852
  %2347 = vst [vmem:[%s3 + $0x588] sm:$0xff] %v1855
  %2348 = vst [vmem:[%s3 + $0x590] sm:$0xff] %v1860
  %2349 = vst [vmem:[%s3 + $0x598] sm:$0xff] %v1863
  %2350 = vst [vmem:[%s3 + $0x5a0] sm:$0xff] %v1868
  %2351 = vst [vmem:[%s3 + $0x5a8] sm:$0xff] %v1871
  %2352 = vst [vmem:[%s3 + $0x5b0] sm:$0xff] %v1876
  %2353 = vst [vmem:[%s3 + $0x5b8] sm:$0xff] %v1879
  %2354 = vst [vmem:[%s3 + $0x5c0] sm:$0xff] %v1884
  %2355 = vst [vmem:[%s3 + $0x5c8] sm:$0xff] %v1887
  %2356 = vst [vmem:[%s3 + $0x5d0] sm:$0xff] %v1892
  %2357 = vst [vmem:[%s3 + $0x5d8] sm:$0xff] %v1895
  %2358 = vst [vmem:[%s3 + $0x5e0] sm:$0xff] %v1900
  %2359 = vst [vmem:[%s3 + $0x5e8] sm:$0xff] %v1903
  %2360 = vst [vmem:[%s3 + $0x5f0] sm:$0xff] %v1908
  %2361 = vst [vmem:[%s3 + $0x5f8] sm:$0xff] %v1911
  %2362 = vst [vmem:[%s3 + $0x600] sm:$0xff] %v1916
  %2363 = vst [vmem:[%s3 + $0x608] sm:$0xff] %v1919
  %2364 = vst [vmem:[%s3 + $0x610] sm:$0xff] %v1924
  %2365 = vst [vmem:[%s3 + $0x618] sm:$0xff] %v1927
  %2366 = vst [vmem:[%s3 + $0x620] sm:$0xff] %v1932
  %2367 = vst [vmem:[%s3 + $0x628] sm:$0xff] %v1935
  %2368 = vst [vmem:[%s3 + $0x630] sm:$0xff] %v1940
  %2369 = vst [vmem:[%s3 + $0x638] sm:$0xff] %v1943
  %2370 = vst [vmem:[%s3 + $0x640] sm:$0xff] %v1948
  %2371 = vst [vmem:[%s3 + $0x648] sm:$0xff] %v1951
  %2372 = vst [vmem:[%s3 + $0x650] sm:$0xff] %v1956
  %2373 = vst [vmem:[%s3 + $0x658] sm:$0xff] %v1959
  %2374 = vst [vmem:[%s3 + $0x660] sm:$0xff] %v1964
  %2375 = vst [vmem:[%s3 + $0x668] sm:$0xff] %v1967
  %2376 = vst [vmem:[%s3 + $0x670] sm:$0xff] %v1972
  %2377 = vst [vmem:[%s3 + $0x678] sm:$0xff] %v1975
  %2378 = vst [vmem:[%s3 + $0x680] sm:$0xff] %v1980
  %2379 = vst [vmem:[%s3 + $0x688] sm:$0xff] %v1983
  %2380 = vst [vmem:[%s3 + $0x690] sm:$0xff] %v1988
  %2381 = vst [vmem:[%s3 + $0x698] sm:$0xff] %v1991
  %2382 = vst [vmem:[%s3 + $0x6a0] sm:$0xff] %v1996
  %2383 = vst [vmem:[%s3 + $0x6a8] sm:$0xff] %v1999
  %2384 = vst [vmem:[%s3 + $0x6b0] sm:$0xff] %v2004
  %2385 = vst [vmem:[%s3 + $0x6b8] sm:$0xff] %v2007
  %2386 = vst [vmem:[%s3 + $0x6c0] sm:$0xff] %v2012
  %2387 = vst [vmem:[%s3 + $0x6c8] sm:$0xff] %v2015
  %2388 = vst [vmem:[%s3 + $0x6d0] sm:$0xff] %v2020
  %2389 = vst [vmem:[%s3 + $0x6d8] sm:$0xff] %v2023
  %2390 = vst [vmem:[%s3 + $0x6e0] sm:$0xff] %v2028
  %2391 = vst [vmem:[%s3 + $0x6e8] sm:$0xff] %v2031
  %2392 = vst [vmem:[%s3 + $0x6f0] sm:$0xff] %v2036
  %2393 = vst [vmem:[%s3 + $0x6f8] sm:$0xff] %v2039
  %2394 = vst [vmem:[%s3 + $0x700] sm:$0xff] %v2044
  %2395 = vst [vmem:[%s3 + $0x708] sm:$0xff] %v2047
  %2396 = vst [vmem:[%s3 + $0x710] sm:$0xff] %v2052
  %2397 = vst [vmem:[%s3 + $0x718] sm:$0xff] %v2055
  %2398 = vst [vmem:[%s3 + $0x720] sm:$0xff] %v2060
  %2399 = vst [vmem:[%s3 + $0x728] sm:$0xff] %v2063
  %2400 = vst [vmem:[%s3 + $0x730] sm:$0xff] %v2068
  %2401 = vst [vmem:[%s3 + $0x738] sm:$0xff] %v2071
  %2402 = vst [vmem:[%s3 + $0x740] sm:$0xff] %v2076
  %2403 = vst [vmem:[%s3 + $0x748] sm:$0xff] %v2079
  %2404 = vst [vmem:[%s3 + $0x750] sm:$0xff] %v2084
  %2405 = vst [vmem:[%s3 + $0x758] sm:$0xff] %v2087
  %2406 = vst [vmem:[%s3 + $0x760] sm:$0xff] %v2092
  %2407 = vst [vmem:[%s3 + $0x768] sm:$0xff] %v2095
  %2408 = vst [vmem:[%s3 + $0x770] sm:$0xff] %v2100
  %2409 = vst [vmem:[%s3 + $0x778] sm:$0xff] %v2103
  %2410 = vst [vmem:[%s3 + $0x780] sm:$0xff] %v2108
  %2411 = vst [vmem:[%s3 + $0x788] sm:$0xff] %v2111
  %2412 = vst [vmem:[%s3 + $0x790] sm:$0xff] %v2116
  %2413 = vst [vmem:[%s3 + $0x798] sm:$0xff] %v2119
  %2414 = vst [vmem:[%s3 + $0x7a0] sm:$0xff] %v2124
  %2415 = vst [vmem:[%s3 + $0x7a8] sm:$0xff] %v2127
  %2416 = vst [vmem:[%s3 + $0x7b0] sm:$0xff] %v2132
  %2417 = vst [vmem:[%s3 + $0x7b8] sm:$0xff] %v2135
  %2418 = vst [vmem:[%s3 + $0x7c0] sm:$0xff] %v2140
  %2419 = vst [vmem:[%s3 + $0x7c8] sm:$0xff] %v2143
  %2420 = vst [vmem:[%s3 + $0x7d0] sm:$0xff] %v2148
  %2421 = vst [vmem:[%s3 + $0x7d8] sm:$0xff] %v2151
  %2422 = vst [vmem:[%s3 + $0x7e0] sm:$0xff] %v2156
  %2423 = vst [vmem:[%s3 + $0x7e8] sm:$0xff] %v2159
  %2424 = vst [vmem:[%s3 + $0x7f0] sm:$0xff] %v2164
  %2425 = vst [vmem:[%s3 + $0x7f8] sm:$0xff] %v2167
  %v2426 = vadd.f32 %v1148, %v1151
  %v2427 = vadd.f32 %v2426, %v1156
  %v2428 = vadd.f32 %v2427, %v1159
  %v2429 = vadd.f32 %v2428, %v1164
  %v2430 = vadd.f32 %v2429, %v1167
  %v2431 = vadd.f32 %v2430, %v1172
  %v2432 = vadd.f32 %v2431, %v1175
  %v2433 = vadd.f32 %v2432, %v1180
  %v2434 = vadd.f32 %v2433, %v1183
  %v2435 = vadd.f32 %v2434, %v1188
  %v2436 = vadd.f32 %v2435, %v1191
  %v2437 = vadd.f32 %v2436, %v1196
  %v2438 = vadd.f32 %v2437, %v1199
  %v2439 = vadd.f32 %v2438, %v1204
  %v2440 = vadd.f32 %v2439, %v1207
  %v2441 = vadd.f32 %v2440, %v1212
  %v2442 = vadd.f32 %v2441, %v1215
  %v2443 = vadd.f32 %v2442, %v1220
  %v2444 = vadd.f32 %v2443, %v1223
  %v2445 = vadd.f32 %v2444, %v1228
  %v2446 = vadd.f32 %v2445, %v1231
  %v2447 = vadd.f32 %v2446, %v1236
  %v2448 = vadd.f32 %v2447, %v1239
  %v2449 = vadd.f32 %v2448, %v1244
  %v2450 = vadd.f32 %v2449, %v1247
  %v2451 = vadd.f32 %v2450, %v1252
  %v2452 = vadd.f32 %v2451, %v1255
  %v2453 = vadd.f32 %v2452, %v1260
  %v2454 = vadd.f32 %v2453, %v1263
  %v2455 = vadd.f32 %v2454, %v1268
  %v2456 = vadd.f32 %v2455, %v1271
  %v2457 = vadd.f32 %v2456, %v1276
  %v2458 = vadd.f32 %v2457, %v1279
  %v2459 = vadd.f32 %v2458, %v1284
  %v2460 = vadd.f32 %v2459, %v1287
  %v2461 = vadd.f32 %v2460, %v1292
  %v2462 = vadd.f32 %v2461, %v1295
  %v2463 = vadd.f32 %v2462, %v1300
  %v2464 = vadd.f32 %v2463, %v1303
  %v2465 = vadd.f32 %v2464, %v1308
  %v2466 = vadd.f32 %v2465, %v1311
  %v2467 = vadd.f32 %v2466, %v1316
  %v2468 = vadd.f32 %v2467, %v1319
  %v2469 = vadd.f32 %v2468, %v1324
  %v2470 = vadd.f32 %v2469, %v1327
  %v2471 = vadd.f32 %v2470, %v1332
  %v2472 = vadd.f32 %v2471, %v1335
  %v2473 = vadd.f32 %v2472, %v1340
  %v2474 = vadd.f32 %v2473, %v1343
  %v2475 = vadd.f32 %v2474, %v1348
  %v2476 = vadd.f32 %v2475, %v1351
  %v2477 = vadd.f32 %v2476, %v1356
  %v2478 = vadd.f32 %v2477, %v1359
  %v2479 = vadd.f32 %v2478, %v1364
  %v2480 = vadd.f32 %v2479, %v1367
  %v2481 = vadd.f32 %v2480, %v1372
  %v2482 = vadd.f32 %v2481, %v1375
  %v2483 = vadd.f32 %v2482, %v1380
  %v2484 = vadd.f32 %v2483, %v1383
  %v2485 = vadd.f32 %v2484, %v1388
  %v2486 = vadd.f32 %v2485, %v1391
  %v2487 = vadd.f32 %v2486, %v1396
  %v2488 = vadd.f32 %v2487, %v1399
  %v2489 = vadd.f32 %v2488, %v1404
  %v2490 = vadd.f32 %v2489, %v1407
  %v2491 = vadd.f32 %v2490, %v1412
  %v2492 = vadd.f32 %v2491, %v1415
  %v2493 = vadd.f32 %v2492, %v1420
  %v2494 = vadd.f32 %v2493, %v1423
  %v2495 = vadd.f32 %v2494, %v1428
  %v2496 = vadd.f32 %v2495, %v1431
  %v2497 = vadd.f32 %v2496, %v1436
  %v2498 = vadd.f32 %v2497, %v1439
  %v2499 = vadd.f32 %v2498, %v1444
  %v2500 = vadd.f32 %v2499, %v1447
  %v2501 = vadd.f32 %v2500, %v1452
  %v2502 = vadd.f32 %v2501, %v1455
  %v2503 = vadd.f32 %v2502, %v1460
  %v2504 = vadd.f32 %v2503, %v1463
  %v2505 = vadd.f32 %v2504, %v1468
  %v2506 = vadd.f32 %v2505, %v1471
  %v2507 = vadd.f32 %v2506, %v1476
  %v2508 = vadd.f32 %v2507, %v1479
  %v2509 = vadd.f32 %v2508, %v1484
  %v2510 = vadd.f32 %v2509, %v1487
  %v2511 = vadd.f32 %v2510, %v1492
  %v2512 = vadd.f32 %v2511, %v1495
  %v2513 = vadd.f32 %v2512, %v1500
  %v2514 = vadd.f32 %v2513, %v1503
  %v2515 = vadd.f32 %v2514, %v1508
  %v2516 = vadd.f32 %v2515, %v1511
  %v2517 = vadd.f32 %v2516, %v1516
  %v2518 = vadd.f32 %v2517, %v1519
  %v2519 = vadd.f32 %v2518, %v1524
  %v2520 = vadd.f32 %v2519, %v1527
  %v2521 = vadd.f32 %v2520, %v1532
  %v2522 = vadd.f32 %v2521, %v1535
  %v2523 = vadd.f32 %v2522, %v1540
  %v2524 = vadd.f32 %v2523, %v1543
  %v2525 = vadd.f32 %v2524, %v1548
  %v2526 = vadd.f32 %v2525, %v1551
  %v2527 = vadd.f32 %v2526, %v1556
  %v2528 = vadd.f32 %v2527, %v1559
  %v2529 = vadd.f32 %v2528, %v1564
  %v2530 = vadd.f32 %v2529, %v1567
  %v2531 = vadd.f32 %v2530, %v1572
  %v2532 = vadd.f32 %v2531, %v1575
  %v2533 = vadd.f32 %v2532, %v1580
  %v2534 = vadd.f32 %v2533, %v1583
  %v2535 = vadd.f32 %v2534, %v1588
  %v2536 = vadd.f32 %v2535, %v1591
  %v2537 = vadd.f32 %v2536, %v1596
  %v2538 = vadd.f32 %v2537, %v1599
  %v2539 = vadd.f32 %v2538, %v1604
  %v2540 = vadd.f32 %v2539, %v1607
  %v2541 = vadd.f32 %v2540, %v1612
  %v2542 = vadd.f32 %v2541, %v1615
  %v2543 = vadd.f32 %v2542, %v1620
  %v2544 = vadd.f32 %v2543, %v1623
  %v2545 = vadd.f32 %v2544, %v1628
  %v2546 = vadd.f32 %v2545, %v1631
  %v2547 = vadd.f32 %v2546, %v1636
  %v2548 = vadd.f32 %v2547, %v1639
  %v2549 = vadd.f32 %v2548, %v1644
  %v2550 = vadd.f32 %v2549, %v1647
  %v2551 = vadd.f32 %v2550, %v1652
  %v2552 = vadd.f32 %v2551, %v1655
  %v2553 = vadd.f32 %v2552, %v1660
  %v2554 = vadd.f32 %v2553, %v1663
  %v2555 = vadd.f32 %v2554, %v1668
  %v2556 = vadd.f32 %v2555, %v1671
  %v2557 = vadd.f32 %v2556, %v1676
  %v2558 = vadd.f32 %v2557, %v1679
  %v2559 = vadd.f32 %v2558, %v1684
  %v2560 = vadd.f32 %v2559, %v1687
  %v2561 = vadd.f32 %v2560, %v1692
  %v2562 = vadd.f32 %v2561, %v1695
  %v2563 = vadd.f32 %v2562, %v1700
  %v2564 = vadd.f32 %v2563, %v1703
  %v2565 = vadd.f32 %v2564, %v1708
  %v2566 = vadd.f32 %v2565, %v1711
  %v2567 = vadd.f32 %v2566, %v1716
  %v2568 = vadd.f32 %v2567, %v1719
  %v2569 = vadd.f32 %v2568, %v1724
  %v2570 = vadd.f32 %v2569, %v1727
  %v2571 = vadd.f32 %v2570, %v1732
  %v2572 = vadd.f32 %v2571, %v1735
  %v2573 = vadd.f32 %v2572, %v1740
  %v2574 = vadd.f32 %v2573, %v1743
  %v2575 = vadd.f32 %v2574, %v1748
  %v2576 = vadd.f32 %v2575, %v1751
  %v2577 = vadd.f32 %v2576, %v1756
  %v2578 = vadd.f32 %v2577, %v1759
  %v2579 = vadd.f32 %v2578, %v1764
  %v2580 = vadd.f32 %v2579, %v1767
  %v2581 = vadd.f32 %v2580, %v1772
  %v2582 = vadd.f32 %v2581, %v1775
  %v2583 = vadd.f32 %v2582, %v1780
  %v2584 = vadd.f32 %v2583, %v1783
  %v2585 = vadd.f32 %v2584, %v1788
  %v2586 = vadd.f32 %v2585, %v1791
  %v2587 = vadd.f32 %v2586, %v1796
  %v2588 = vadd.f32 %v2587, %v1799
  %v2589 = vadd.f32 %v2588, %v1804
  %v2590 = vadd.f32 %v2589, %v1807
  %v2591 = vadd.f32 %v2590, %v1812
  %v2592 = vadd.f32 %v2591, %v1815
  %v2593 = vadd.f32 %v2592, %v1820
  %v2594 = vadd.f32 %v2593, %v1823
  %v2595 = vadd.f32 %v2594, %v1828
  %v2596 = vadd.f32 %v2595, %v1831
  %v2597 = vadd.f32 %v2596, %v1836
  %v2598 = vadd.f32 %v2597, %v1839
  %v2599 = vadd.f32 %v2598, %v1844
  %v2600 = vadd.f32 %v2599, %v1847
  %v2601 = vadd.f32 %v2600, %v1852
  %v2602 = vadd.f32 %v2601, %v1855
  %v2603 = vadd.f32 %v2602, %v1860
  %v2604 = vadd.f32 %v2603, %v1863
  %v2605 = vadd.f32 %v2604, %v1868
  %v2606 = vadd.f32 %v2605, %v1871
  %v2607 = vadd.f32 %v2606, %v1876
  %v2608 = vadd.f32 %v2607, %v1879
  %v2609 = vadd.f32 %v2608, %v1884
  %v2610 = vadd.f32 %v2609, %v1887
  %v2611 = vadd.f32 %v2610, %v1892
  %v2612 = vadd.f32 %v2611, %v1895
  %v2613 = vadd.f32 %v2612, %v1900
  %v2614 = vadd.f32 %v2613, %v1903
  %v2615 = vadd.f32 %v2614, %v1908
  %v2616 = vadd.f32 %v2615, %v1911
  %v2617 = vadd.f32 %v2616, %v1916
  %v2618 = vadd.f32 %v2617, %v1919
  %v2619 = vadd.f32 %v2618, %v1924
  %v2620 = vadd.f32 %v2619, %v1927
  %v2621 = vadd.f32 %v2620, %v1932
  %v2622 = vadd.f32 %v2621, %v1935
  %v2623 = vadd.f32 %v2622, %v1940
  %v2624 = vadd.f32 %v2623, %v1943
  %v2625 = vadd.f32 %v2624, %v1948
  %v2626 = vadd.f32 %v2625, %v1951
  %v2627 = vadd.f32 %v2626, %v1956
  %v2628 = vadd.f32 %v2627, %v1959
  %v2629 = vadd.f32 %v2628, %v1964
  %v2630 = vadd.f32 %v2629, %v1967
  %v2631 = vadd.f32 %v2630, %v1972
  %v2632 = vadd.f32 %v2631, %v1975
  %v2633 = vadd.f32 %v2632, %v1980
  %v2634 = vadd.f32 %v2633, %v1983
  %v2635 = vadd.f32 %v2634, %v1988
  %v2636 = vadd.f32 %v2635, %v1991
  %v2637 = vadd.f32 %v2636, %v1996
  %v2638 = vadd.f32 %v2637, %v1999
  %v2639 = vadd.f32 %v2638, %v2004
  %v2640 = vadd.f32 %v2639, %v2007
  %v2641 = vadd.f32 %v2640, %v2012
  %v2642 = vadd.f32 %v2641, %v2015
  %v2643 = vadd.f32 %v2642, %v2020
  %v2644 = vadd.f32 %v2643, %v2023
  %v2645 = vadd.f32 %v2644, %v2028
  %v2646 = vadd.f32 %v2645, %v2031
  %v2647 = vadd.f32 %v2646, %v2036
  %v2648 = vadd.f32 %v2647, %v2039
  %v2649 = vadd.f32 %v2648, %v2044
  %v2650 = vadd.f32 %v2649, %v2047
  %v2651 = vadd.f32 %v2650, %v2052
  %v2652 = vadd.f32 %v2651, %v2055
  %v2653 = vadd.f32 %v2652, %v2060
  %v2654 = vadd.f32 %v2653, %v2063
  %v2655 = vadd.f32 %v2654, %v2068
  %v2656 = vadd.f32 %v2655, %v2071
  %v2657 = vadd.f32 %v2656, %v2076
  %v2658 = vadd.f32 %v2657, %v2079
  %v2659 = vadd.f32 %v2658, %v2084
  %v2660 = vadd.f32 %v2659, %v2087
  %v2661 = vadd.f32 %v2660, %v2092
  %v2662 = vadd.f32 %v2661, %v2095
  %v2663 = vadd.f32 %v2662, %v2100
  %v2664 = vadd.f32 %v2663, %v2103
  %v2665 = vadd.f32 %v2664, %v2108
  %v2666 = vadd.f32 %v2665, %v2111
  %v2667 = vadd.f32 %v2666, %v2116
  %v2668 = vadd.f32 %v2667, %v2119
  %v2669 = vadd.f32 %v2668, %v2124
  %v2670 = vadd.f32 %v2669, %v2127
  %v2671 = vadd.f32 %v2670, %v2132
  %v2672 = vadd.f32 %v2671, %v2135
  %v2673 = vadd.f32 %v2672, %v2140
  %v2674 = vadd.f32 %v2673, %v2143
  %v2675 = vadd.f32 %v2674, %v2148
  %v2676 = vadd.f32 %v2675, %v2151
  %v2677 = vadd.f32 %v2676, %v2156
  %v2678 = vadd.f32 %v2677, %v2159
  %v2679 = vadd.f32 %v2678, %v2164
  %v2680 = vadd.f32 %v2679, %v2167
  %v2681 = vrot.slane %v2680, 4
  %v2682 = vadd.f32 %v2680, %v2681
  %v2683 = vrot.slane %v2682, 2
  %v2684 = vadd.f32 %v2682, %v2683
  %v2685 = vrot.slane %v2684, 1
  %v2686 = vadd.f32 %v2684, %v2685
  %2687 = vst [vmem:[%s4] sm:$0x1] %v2686
  %v2688 = vmul.f32 %v1148, %v1148
  %v2689 = vmul.f32 %v1151, %v1151
  %v2690 = vmul.f32 %v1156, %v1156
  %v2691 = vmul.f32 %v1159, %v1159
  %v2692 = vmul.f32 %v1164, %v1164
  %v2693 = vmul.f32 %v1167, %v1167
  %v2694 = vmul.f32 %v1172, %v1172
  %v2695 = vmul.f32 %v1175, %v1175
  %v2696 = vmul.f32 %v1180, %v1180
  %v2697 = vmul.f32 %v1183, %v1183
  %v2698 = vmul.f32 %v1188, %v1188
  %v2699 = vmul.f32 %v1191, %v1191
  %v2700 = vmul.f32 %v1196, %v1196
  %v2701 = vmul.f32 %v1199, %v1199
  %v2702 = vmul.f32 %v1204, %v1204
  %v2703 = vmul.f32 %v1207, %v1207
  %v2704 = vmul.f32 %v1212, %v1212
  %v2705 = vmul.f32 %v1215, %v1215
  %v2706 = vmul.f32 %v1220, %v1220
  %v2707 = vmul.f32 %v1223, %v1223
  %v2708 = vmul.f32 %v1228, %v1228
  %v2709 = vmul.f32 %v1231, %v1231
  %v2710 = vmul.f32 %v1236, %v1236
  %v2711 = vmul.f32 %v1239, %v1239
  %v2712 = vmul.f32 %v1244, %v1244
  %v2713 = vmul.f32 %v1247, %v1247
  %v2714 = vmul.f32 %v1252, %v1252
  %v2715 = vmul.f32 %v1255, %v1255
  %v2716 = vmul.f32 %v1260, %v1260
  %v2717 = vmul.f32 %v1263, %v1263
  %v2718 = vmul.f32 %v1268, %v1268
  %v2719 = vmul.f32 %v1271, %v1271
  %v2720 = vmul.f32 %v1276, %v1276
  %v2721 = vmul.f32 %v1279, %v1279
  %v2722 = vmul.f32 %v1284, %v1284
  %v2723 = vmul.f32 %v1287, %v1287
  %v2724 = vmul.f32 %v1292, %v1292
  %v2725 = vmul.f32 %v1295, %v1295
  %v2726 = vmul.f32 %v1300, %v1300
  %v2727 = vmul.f32 %v1303, %v1303
  %v2728 = vmul.f32 %v1308, %v1308
  %v2729 = vmul.f32 %v1311, %v1311
  %v2730 = vmul.f32 %v1316, %v1316
  %v2731 = vmul.f32 %v1319, %v1319
  %v2732 = vmul.f32 %v1324, %v1324
  %v2733 = vmul.f32 %v1327, %v1327
  %v2734 = vmul.f32 %v1332, %v1332
  %v2735 = vmul.f32 %v1335, %v1335
  %v2736 = vmul.f32 %v1340, %v1340
  %v2737 = vmul.f32 %v1343, %v1343
  %v2738 = vmul.f32 %v1348, %v1348
  %v2739 = vmul.f32 %v1351, %v1351
  %v2740 = vmul.f32 %v1356, %v1356
  %v2741 = vmul.f32 %v1359, %v1359
  %v2742 = vmul.f32 %v1364, %v1364
  %v2743 = vmul.f32 %v1367, %v1367
  %v2744 = vmul.f32 %v1372, %v1372
  %v2745 = vmul.f32 %v1375, %v1375
  %v2746 = vmul.f32 %v1380, %v1380
  %v2747 = vmul.f32 %v1383, %v1383
  %v2748 = vmul.f32 %v1388, %v1388
  %v2749 = vmul.f32 %v1391, %v1391
  %v2750 = vmul.f32 %v1396, %v1396
  %v2751 = vmul.f32 %v1399, %v1399
  %v2752 = vmul.f32 %v1404, %v1404
  %v2753 = vmul.f32 %v1407, %v1407
  %v2754 = vmul.f32 %v1412, %v1412
  %v2755 = vmul.f32 %v1415, %v1415
  %v2756 = vmul.f32 %v1420, %v1420
  %v2757 = vmul.f32 %v1423, %v1423
  %v2758 = vmul.f32 %v1428, %v1428
  %v2759 = vmul.f32 %v1431, %v1431
  %v2760 = vmul.f32 %v1436, %v1436
  %v2761 = vmul.f32 %v1439, %v1439
  %v2762 = vmul.f32 %v1444, %v1444
  %v2763 = vmul.f32 %v1447, %v1447
  %v2764 = vmul.f32 %v1452, %v1452
  %v2765 = vmul.f32 %v1455, %v1455
  %v2766 = vmul.f32 %v1460, %v1460
  %v2767 = vmul.f32 %v1463, %v1463
  %v2768 = vmul.f32 %v1468, %v1468
  %v2769 = vmul.f32 %v1471, %v1471
  %v2770 = vmul.f32 %v1476, %v1476
  %v2771 = vmul.f32 %v1479, %v1479
  %v2772 = vmul.f32 %v1484, %v1484
  %v2773 = vmul.f32 %v1487, %v1487
  %v2774 = vmul.f32 %v1492, %v1492
  %v2775 = vmul.f32 %v1495, %v1495
  %v2776 = vmul.f32 %v1500, %v1500
  %v2777 = vmul.f32 %v1503, %v1503
  %v2778 = vmul.f32 %v1508, %v1508
  %v2779 = vmul.f32 %v1511, %v1511
  %v2780 = vmul.f32 %v1516, %v1516
  %v2781 = vmul.f32 %v1519, %v1519
  %v2782 = vmul.f32 %v1524, %v1524
  %v2783 = vmul.f32 %v1527, %v1527
  %v2784 = vmul.f32 %v1532, %v1532
  %v2785 = vmul.f32 %v1535, %v1535
  %v2786 = vmul.f32 %v1540, %v1540
  %v2787 = vmul.f32 %v1543, %v1543
  %v2788 = vmul.f32 %v1548, %v1548
  %v2789 = vmul.f32 %v1551, %v1551
  %v2790 = vmul.f32 %v1556, %v1556
  %v2791 = vmul.f32 %v1559, %v1559
  %v2792 = vmul.f32 %v1564, %v1564
  %v2793 = vmul.f32 %v1567, %v1567
  %v2794 = vmul.f32 %v1572, %v1572
  %v2795 = vmul.f32 %v1575, %v1575
  %v2796 = vmul.f32 %v1580, %v1580
  %v2797 = vmul.f32 %v1583, %v1583
  %v2798 = vmul.f32 %v1588, %v1588
  %v2799 = vmul.f32 %v1591, %v1591
  %v2800 = vmul.f32 %v1596, %v1596
  %v2801 = vmul.f32 %v1599, %v1599
  %v2802 = vmul.f32 %v1604, %v1604
  %v2803 = vmul.f32 %v1607, %v1607
  %v2804 = vmul.f32 %v1612, %v1612
  %v2805 = vmul.f32 %v1615, %v1615
  %v2806 = vmul.f32 %v1620, %v1620
  %v2807 = vmul.f32 %v1623, %v1623
  %v2808 = vmul.f32 %v1628, %v1628
  %v2809 = vmul.f32 %v1631, %v1631
  %v2810 = vmul.f32 %v1636, %v1636
  %v2811 = vmul.f32 %v1639, %v1639
  %v2812 = vmul.f32 %v1644, %v1644
  %v2813 = vmul.f32 %v1647, %v1647
  %v2814 = vmul.f32 %v1652, %v1652
  %v2815 = vmul.f32 %v1655, %v1655
  %v2816 = vmul.f32 %v1660, %v1660
  %v2817 = vmul.f32 %v1663, %v1663
  %v2818 = vmul.f32 %v1668, %v1668
  %v2819 = vmul.f32 %v1671, %v1671
  %v2820 = vmul.f32 %v1676, %v1676
  %v2821 = vmul.f32 %v1679, %v1679
  %v2822 = vmul.f32 %v1684, %v1684
  %v2823 = vmul.f32 %v1687, %v1687
  %v2824 = vmul.f32 %v1692, %v1692
  %v2825 = vmul.f32 %v1695, %v1695
  %v2826 = vmul.f32 %v1700, %v1700
  %v2827 = vmul.f32 %v1703, %v1703
  %v2828 = vmul.f32 %v1708, %v1708
  %v2829 = vmul.f32 %v1711, %v1711
  %v2830 = vmul.f32 %v1716, %v1716
  %v2831 = vmul.f32 %v1719, %v1719
  %v2832 = vmul.f32 %v1724, %v1724
  %v2833 = vmul.f32 %v1727, %v1727
  %v2834 = vmul.f32 %v1732, %v1732
  %v2835 = vmul.f32 %v1735, %v1735
  %v2836 = vmul.f32 %v1740, %v1740
  %v2837 = vmul.f32 %v1743, %v1743
  %v2838 = vmul.f32 %v1748, %v1748
  %v2839 = vmul.f32 %v1751, %v1751
  %v2840 = vmul.f32 %v1756, %v1756
  %v2841 = vmul.f32 %v1759, %v1759
  %v2842 = vmul.f32 %v1764, %v1764
  %v2843 = vmul.f32 %v1767, %v1767
  %v2844 = vmul.f32 %v1772, %v1772
  %v2845 = vmul.f32 %v1775, %v1775
  %v2846 = vmul.f32 %v1780, %v1780
  %v2847 = vmul.f32 %v1783, %v1783
  %v2848 = vmul.f32 %v1788, %v1788
  %v2849 = vmul.f32 %v1791, %v1791
  %v2850 = vmul.f32 %v1796, %v1796
  %v2851 = vmul.f32 %v1799, %v1799
  %v2852 = vmul.f32 %v1804, %v1804
  %v2853 = vmul.f32 %v1807, %v1807
  %v2854 = vmul.f32 %v1812, %v1812
  %v2855 = vmul.f32 %v1815, %v1815
  %v2856 = vmul.f32 %v1820, %v1820
  %v2857 = vmul.f32 %v1823, %v1823
  %v2858 = vmul.f32 %v1828, %v1828
  %v2859 = vmul.f32 %v1831, %v1831
  %v2860 = vmul.f32 %v1836, %v1836
  %v2861 = vmul.f32 %v1839, %v1839
  %v2862 = vmul.f32 %v1844, %v1844
  %v2863 = vmul.f32 %v1847, %v1847
  %v2864 = vmul.f32 %v1852, %v1852
  %v2865 = vmul.f32 %v1855, %v1855
  %v2866 = vmul.f32 %v1860, %v1860
  %v2867 = vmul.f32 %v1863, %v1863
  %v2868 = vmul.f32 %v1868, %v1868
  %v2869 = vmul.f32 %v1871, %v1871
  %v2870 = vmul.f32 %v1876, %v1876
  %v2871 = vmul.f32 %v1879, %v1879
  %v2872 = vmul.f32 %v1884, %v1884
  %v2873 = vmul.f32 %v1887, %v1887
  %v2874 = vmul.f32 %v1892, %v1892
  %v2875 = vmul.f32 %v1895, %v1895
  %v2876 = vmul.f32 %v1900, %v1900
  %v2877 = vmul.f32 %v1903, %v1903
  %v2878 = vmul.f32 %v1908, %v1908
  %v2879 = vmul.f32 %v1911, %v1911
  %v2880 = vmul.f32 %v1916, %v1916
  %v2881 = vmul.f32 %v1919, %v1919
  %v2882 = vmul.f32 %v1924, %v1924
  %v2883 = vmul.f32 %v1927, %v1927
  %v2884 = vmul.f32 %v1932, %v1932
  %v2885 = vmul.f32 %v1935, %v1935
  %v2886 = vmul.f32 %v1940, %v1940
  %v2887 = vmul.f32 %v1943, %v1943
  %v2888 = vmul.f32 %v1948, %v1948
  %v2889 = vmul.f32 %v1951, %v1951
  %v2890 = vmul.f32 %v1956, %v1956
  %v2891 = vmul.f32 %v1959, %v1959
  %v2892 = vmul.f32 %v1964, %v1964
  %v2893 = vmul.f32 %v1967, %v1967
  %v2894 = vmul.f32 %v1972, %v1972
  %v2895 = vmul.f32 %v1975, %v1975
  %v2896 = vmul.f32 %v1980, %v1980
  %v2897 = vmul.f32 %v1983, %v1983
  %v2898 = vmul.f32 %v1988, %v1988
  %v2899 = vmul.f32 %v1991, %v1991
  %v2900 = vmul.f32 %v1996, %v1996
  %v2901 = vmul.f32 %v1999, %v1999
  %v2902 = vmul.f32 %v2004, %v2004
  %v2903 = vmul.f32 %v2007, %v2007
  %v2904 = vmul.f32 %v2012, %v2012
  %v2905 = vmul.f32 %v2015, %v2015
  %v2906 = vmul.f32 %v2020, %v2020
  %v2907 = vmul.f32 %v2023, %v2023
  %v2908 = vmul.f32 %v2028, %v2028
  %v2909 = vmul.f32 %v2031, %v2031
  %v2910 = vmul.f32 %v2036, %v2036
  %v2911 = vmul.f32 %v2039, %v2039
  %v2912 = vmul.f32 %v2044, %v2044
  %v2913 = vmul.f32 %v2047, %v2047
  %v2914 = vmul.f32 %v2052, %v2052
  %v2915 = vmul.f32 %v2055, %v2055
  %v2916 = vmul.f32 %v2060, %v2060
  %v2917 = vmul.f32 %v2063, %v2063
  %v2918 = vmul.f32 %v2068, %v2068
  %v2919 = vmul.f32 %v2071, %v2071
  %v2920 = vmul.f32 %v2076, %v2076
  %v2921 = vmul.f32 %v2079, %v2079
  %v2922 = vmul.f32 %v2084, %v2084
  %v2923 = vmul.f32 %v2087, %v2087
  %v2924 = vmul.f32 %v2092, %v2092
  %v2925 = vmul.f32 %v2095, %v2095
  %v2926 = vmul.f32 %v2100, %v2100
  %v2927 = vmul.f32 %v2103, %v2103
  %v2928 = vmul.f32 %v2108, %v2108
  %v2929 = vmul.f32 %v2111, %v2111
  %v2930 = vmul.f32 %v2116, %v2116
  %v2931 = vmul.f32 %v2119, %v2119
  %v2932 = vmul.f32 %v2124, %v2124
  %v2933 = vmul.f32 %v2127, %v2127
  %v2934 = vmul.f32 %v2132, %v2132
  %v2935 = vmul.f32 %v2135, %v2135
  %v2936 = vmul.f32 %v2140, %v2140
  %v2937 = vmul.f32 %v2143, %v2143
  %v2938 = vmul.f32 %v2148, %v2148
  %v2939 = vmul.f32 %v2151, %v2151
  %v2940 = vmul.f32 %v2156, %v2156
  %v2941 = vmul.f32 %v2159, %v2159
  %v2942 = vmul.f32 %v2164, %v2164
  %v2943 = vmul.f32 %v2167, %v2167
  %v2944 = vadd.f32 %v2688, %v2689
  %v2945 = vadd.f32 %v2944, %v2690
  %v2946 = vadd.f32 %v2945, %v2691
  %v2947 = vadd.f32 %v2946, %v2692
  %v2948 = vadd.f32 %v2947, %v2693
  %v2949 = vadd.f32 %v2948, %v2694
  %v2950 = vadd.f32 %v2949, %v2695
  %v2951 = vadd.f32 %v2950, %v2696
  %v2952 = vadd.f32 %v2951, %v2697
  %v2953 = vadd.f32 %v2952, %v2698
  %v2954 = vadd.f32 %v2953, %v2699
  %v2955 = vadd.f32 %v2954, %v2700
  %v2956 = vadd.f32 %v2955, %v2701
  %v2957 = vadd.f32 %v2956, %v2702
  %v2958 = vadd.f32 %v2957, %v2703
  %v2959 = vadd.f32 %v2958, %v2704
  %v2960 = vadd.f32 %v2959, %v2705
  %v2961 = vadd.f32 %v2960, %v2706
  %v2962 = vadd.f32 %v2961, %v2707
  %v2963 = vadd.f32 %v2962, %v2708
  %v2964 = vadd.f32 %v2963, %v2709
  %v2965 = vadd.f32 %v2964, %v2710
  %v2966 = vadd.f32 %v2965, %v2711
  %v2967 = vadd.f32 %v2966, %v2712
  %v2968 = vadd.f32 %v2967, %v2713
  %v2969 = vadd.f32 %v2968, %v2714
  %v2970 = vadd.f32 %v2969, %v2715
  %v2971 = vadd.f32 %v2970, %v2716
  %v2972 = vadd.f32 %v2971, %v2717
  %v2973 = vadd.f32 %v2972, %v2718
  %v2974 = vadd.f32 %v2973, %v2719
  %v2975 = vadd.f32 %v2974, %v2720
  %v2976 = vadd.f32 %v2975, %v2721
  %v2977 = vadd.f32 %v2976, %v2722
  %v2978 = vadd.f32 %v2977, %v2723
  %v2979 = vadd.f32 %v2978, %v2724
  %v2980 = vadd.f32 %v2979, %v2725
  %v2981 = vadd.f32 %v2980, %v2726
  %v2982 = vadd.f32 %v2981, %v2727
  %v2983 = vadd.f32 %v2982, %v2728
  %v2984 = vadd.f32 %v2983, %v2729
  %v2985 = vadd.f32 %v2984, %v2730
  %v2986 = vadd.f32 %v2985, %v2731
  %v2987 = vadd.f32 %v2986, %v2732
  %v2988 = vadd.f32 %v2987, %v2733
  %v2989 = vadd.f32 %v2988, %v2734
  %v2990 = vadd.f32 %v2989, %v2735
  %v2991 = vadd.f32 %v2990, %v2736
  %v2992 = vadd.f32 %v2991, %v2737
  %v2993 = vadd.f32 %v2992, %v2738
  %v2994 = vadd.f32 %v2993, %v2739
  %v2995 = vadd.f32 %v2994, %v2740
  %v2996 = vadd.f32 %v2995, %v2741
  %v2997 = vadd.f32 %v2996, %v2742
  %v2998 = vadd.f32 %v2997, %v2743
  %v2999 = vadd.f32 %v2998, %v2744
  %v3000 = vadd.f32 %v2999, %v2745
  %v3001 = vadd.f32 %v3000, %v2746
  %v3002 = vadd.f32 %v3001, %v2747
  %v3003 = vadd.f32 %v3002, %v2748
  %v3004 = vadd.f32 %v3003, %v2749
  %v3005 = vadd.f32 %v3004, %v2750
  %v3006 = vadd.f32 %v3005, %v2751
  %v3007 = vadd.f32 %v3006, %v2752
  %v3008 = vadd.f32 %v3007, %v2753
  %v3009 = vadd.f32 %v3008, %v2754
  %v3010 = vadd.f32 %v3009, %v2755
  %v3011 = vadd.f32 %v3010, %v2756
  %v3012 = vadd.f32 %v3011, %v2757
  %v3013 = vadd.f32 %v3012, %v2758
  %v3014 = vadd.f32 %v3013, %v2759
  %v3015 = vadd.f32 %v3014, %v2760
  %v3016 = vadd.f32 %v3015, %v2761
  %v3017 = vadd.f32 %v3016, %v2762
  %v3018 = vadd.f32 %v3017, %v2763
  %v3019 = vadd.f32 %v3018, %v2764
  %v3020 = vadd.f32 %v3019, %v2765
  %v3021 = vadd.f32 %v3020, %v2766
  %v3022 = vadd.f32 %v3021, %v2767
  %v3023 = vadd.f32 %v3022, %v2768
  %v3024 = vadd.f32 %v3023, %v2769
  %v3025 = vadd.f32 %v3024, %v2770
  %v3026 = vadd.f32 %v3025, %v2771
  %v3027 = vadd.f32 %v3026, %v2772
  %v3028 = vadd.f32 %v3027, %v2773
  %v3029 = vadd.f32 %v3028, %v2774
  %v3030 = vadd.f32 %v3029, %v2775
  %v3031 = vadd.f32 %v3030, %v2776
  %v3032 = vadd.f32 %v3031, %v2777
  %v3033 = vadd.f32 %v3032, %v2778
  %v3034 = vadd.f32 %v3033, %v2779
  %v3035 = vadd.f32 %v3034, %v2780
  %v3036 = vadd.f32 %v3035, %v2781
  %v3037 = vadd.f32 %v3036, %v2782
  %v3038 = vadd.f32 %v3037, %v2783
  %v3039 = vadd.f32 %v3038, %v2784
  %v3040 = vadd.f32 %v3039, %v2785
  %v3041 = vadd.f32 %v3040, %v2786
  %v3042 = vadd.f32 %v3041, %v2787
  %v3043 = vadd.f32 %v3042, %v2788
  %v3044 = vadd.f32 %v3043, %v2789
  %v3045 = vadd.f32 %v3044, %v2790
  %v3046 = vadd.f32 %v3045, %v2791
  %v3047 = vadd.f32 %v3046, %v2792
  %v3048 = vadd.f32 %v3047, %v2793
  %v3049 = vadd.f32 %v3048, %v2794
  %v3050 = vadd.f32 %v3049, %v2795
  %v3051 = vadd.f32 %v3050, %v2796
  %v3052 = vadd.f32 %v3051, %v2797
  %v3053 = vadd.f32 %v3052, %v2798
  %v3054 = vadd.f32 %v3053, %v2799
  %v3055 = vadd.f32 %v3054, %v2800
  %v3056 = vadd.f32 %v3055, %v2801
  %v3057 = vadd.f32 %v3056, %v2802
  %v3058 = vadd.f32 %v3057, %v2803
  %v3059 = vadd.f32 %v3058, %v2804
  %v3060 = vadd.f32 %v3059, %v2805
  %v3061 = vadd.f32 %v3060, %v2806
  %v3062 = vadd.f32 %v3061, %v2807
  %v3063 = vadd.f32 %v3062, %v2808
  %v3064 = vadd.f32 %v3063, %v2809
  %v3065 = vadd.f32 %v3064, %v2810
  %v3066 = vadd.f32 %v3065, %v2811
  %v3067 = vadd.f32 %v3066, %v2812
  %v3068 = vadd.f32 %v3067, %v2813
  %v3069 = vadd.f32 %v3068, %v2814
  %v3070 = vadd.f32 %v3069, %v2815
  %v3071 = vadd.f32 %v3070, %v2816
  %v3072 = vadd.f32 %v3071, %v2817
  %v3073 = vadd.f32 %v3072, %v2818
  %v3074 = vadd.f32 %v3073, %v2819
  %v3075 = vadd.f32 %v3074, %v2820
  %v3076 = vadd.f32 %v3075, %v2821
  %v3077 = vadd.f32 %v3076, %v2822
  %v3078 = vadd.f32 %v3077, %v2823
  %v3079 = vadd.f32 %v3078, %v2824
  %v3080 = vadd.f32 %v3079, %v2825
  %v3081 = vadd.f32 %v3080, %v2826
  %v3082 = vadd.f32 %v3081, %v2827
  %v3083 = vadd.f32 %v3082, %v2828
  %v3084 = vadd.f32 %v3083, %v2829
  %v3085 = vadd.f32 %v3084, %v2830
  %v3086 = vadd.f32 %v3085, %v2831
  %v3087 = vadd.f32 %v3086, %v2832
  %v3088 = vadd.f32 %v3087, %v2833
  %v3089 = vadd.f32 %v3088, %v2834
  %v3090 = vadd.f32 %v3089, %v2835
  %v3091 = vadd.f32 %v3090, %v2836
  %v3092 = vadd.f32 %v3091, %v2837
  %v3093 = vadd.f32 %v3092, %v2838
  %v3094 = vadd.f32 %v3093, %v2839
  %v3095 = vadd.f32 %v3094, %v2840
  %v3096 = vadd.f32 %v3095, %v2841
  %v3097 = vadd.f32 %v3096, %v2842
  %v3098 = vadd.f32 %v3097, %v2843
  %v3099 = vadd.f32 %v3098, %v2844
  %v3100 = vadd.f32 %v3099, %v2845
  %v3101 = vadd.f32 %v3100, %v2846
  %v3102 = vadd.f32 %v3101, %v2847
  %v3103 = vadd.f32 %v3102, %v2848
  %v3104 = vadd.f32 %v3103, %v2849
  %v3105 = vadd.f32 %v3104, %v2850
  %v3106 = vadd.f32 %v3105, %v2851
  %v3107 = vadd.f32 %v3106, %v2852
  %v3108 = vadd.f32 %v3107, %v2853
  %v3109 = vadd.f32 %v3108, %v2854
  %v3110 = vadd.f32 %v3109, %v2855
  %v3111 = vadd.f32 %v3110, %v2856
  %v3112 = vadd.f32 %v3111, %v2857
  %v3113 = vadd.f32 %v3112, %v2858
  %v3114 = vadd.f32 %v3113, %v2859
  %v3115 = vadd.f32 %v3114, %v2860
  %v3116 = vadd.f32 %v3115, %v2861
  %v3117 = vadd.f32 %v3116, %v2862
  %v3118 = vadd.f32 %v3117, %v2863
  %v3119 = vadd.f32 %v3118, %v2864
  %v3120 = vadd.f32 %v3119, %v2865
  %v3121 = vadd.f32 %v3120, %v2866
  %v3122 = vadd.f32 %v3121, %v2867
  %v3123 = vadd.f32 %v3122, %v2868
  %v3124 = vadd.f32 %v3123, %v2869
  %v3125 = vadd.f32 %v3124, %v2870
  %v3126 = vadd.f32 %v3125, %v2871
  %v3127 = vadd.f32 %v3126, %v2872
  %v3128 = vadd.f32 %v3127, %v2873
  %v3129 = vadd.f32 %v3128, %v2874
  %v3130 = vadd.f32 %v3129, %v2875
  %v3131 = vadd.f32 %v3130, %v2876
  %v3132 = vadd.f32 %v3131, %v2877
  %v3133 = vadd.f32 %v3132, %v2878
  %v3134 = vadd.f32 %v3133, %v2879
  %v3135 = vadd.f32 %v3134, %v2880
  %v3136 = vadd.f32 %v3135, %v2881
  %v3137 = vadd.f32 %v3136, %v2882
  %v3138 = vadd.f32 %v3137, %v2883
  %v3139 = vadd.f32 %v3138, %v2884
  %v3140 = vadd.f32 %v3139, %v2885
  %v3141 = vadd.f32 %v3140, %v2886
  %v3142 = vadd.f32 %v3141, %v2887
  %v3143 = vadd.f32 %v3142, %v2888
  %v3144 = vadd.f32 %v3143, %v2889
  %v3145 = vadd.f32 %v3144, %v2890
  %v3146 = vadd.f32 %v3145, %v2891
  %v3147 = vadd.f32 %v3146, %v2892
  %v3148 = vadd.f32 %v3147, %v2893
  %v3149 = vadd.f32 %v3148, %v2894
  %v3150 = vadd.f32 %v3149, %v2895
  %v3151 = vadd.f32 %v3150, %v2896
  %v3152 = vadd.f32 %v3151, %v2897
  %v3153 = vadd.f32 %v3152, %v2898
  %v3154 = vadd.f32 %v3153, %v2899
  %v3155 = vadd.f32 %v3154, %v2900
  %v3156 = vadd.f32 %v3155, %v2901
  %v3157 = vadd.f32 %v3156, %v2902
  %v3158 = vadd.f32 %v3157, %v2903
  %v3159 = vadd.f32 %v3158, %v2904
  %v3160 = vadd.f32 %v3159, %v2905
  %v3161 = vadd.f32 %v3160, %v2906
  %v3162 = vadd.f32 %v3161, %v2907
  %v3163 = vadd.f32 %v3162, %v2908
  %v3164 = vadd.f32 %v3163, %v2909
  %v3165 = vadd.f32 %v3164, %v2910
  %v3166 = vadd.f32 %v3165, %v2911
  %v3167 = vadd.f32 %v3166, %v2912
  %v3168 = vadd.f32 %v3167, %v2913
  %v3169 = vadd.f32 %v3168, %v2914
  %v3170 = vadd.f32 %v3169, %v2915
  %v3171 = vadd.f32 %v3170, %v2916
  %v3172 = vadd.f32 %v3171, %v2917
  %v3173 = vadd.f32 %v3172, %v2918
  %v3174 = vadd.f32 %v3173, %v2919
  %v3175 = vadd.f32 %v3174, %v2920
  %v3176 = vadd.f32 %v3175, %v2921
  %v3177 = vadd.f32 %v3176, %v2922
  %v3178 = vadd.f32 %v3177, %v2923
  %v3179 = vadd.f32 %v3178, %v2924
  %v3180 = vadd.f32 %v3179, %v2925
  %v3181 = vadd.f32 %v3180, %v2926
  %v3182 = vadd.f32 %v3181, %v2927
  %v3183 = vadd.f32 %v3182, %v2928
  %v3184 = vadd.f32 %v3183, %v2929
  %v3185 = vadd.f32 %v3184, %v2930
  %v3186 = vadd.f32 %v3185, %v2931
  %v3187 = vadd.f32 %v3186, %v2932
  %v3188 = vadd.f32 %v3187, %v2933
  %v3189 = vadd.f32 %v3188, %v2934
  %v3190 = vadd.f32 %v3189, %v2935
  %v3191 = vadd.f32 %v3190, %v2936
  %v3192 = vadd.f32 %v3191, %v2937
  %v3193 = vadd.f32 %v3192, %v2938
  %v3194 = vadd.f32 %v3193, %v2939
  %v3195 = vadd.f32 %v3194, %v2940
  %v3196 = vadd.f32 %v3195, %v2941
  %v3197 = vadd.f32 %v3196, %v2942
  %v3198 = vadd.f32 %v3197, %v2943
  %v3199 = vrot.slane %v3198, 4
  %v3200 = vadd.f32 %v3198, %v3199
  %v3201 = vrot.slane %v3200, 2
  %v3202 = vadd.f32 %v3200, %v3201
  %v3203 = vrot.slane %v3202, 1
  %v3204 = vadd.f32 %v3202, %v3203
  %3205 = vst [vmem:[%s5] sm:$0x1] %v3204
  // Predicated region
  $region14: #{tebn_layer_forward.2} parent=0 // pred_check
    _
  $region15: #{tebn_layer_forward.2} parent=0 // pred_check_branch
    %3207 = sbr.rel (0) target = $region17
  $region16: #{tebn_layer_forward.2} parent=0 // pred_region
    _
  $region17: #{tebn_layer_forward.2} parent=0 // pred_fallthru
    _
  // Predicated region
  $region18: #{tebn_layer_forward.2} parent=0 // pred_check
    _
  $region19: #{tebn_layer_forward.2} parent=0 // pred_check_branch
    %3209 = sbr.rel (0) target = $region21
  $region20: #{tebn_layer_forward.2} parent=0 // pred_region
    _
  $region21: #{tebn_layer_forward.2} parent=0 // pred_fallthru
    _
  // Predicated region
  $region22: #{tebn_layer_forward.2} parent=0 // pred_check
    _
  $region23: #{tebn_layer_forward.2} parent=0 // pred_check_branch
    %3211 = sbr.rel (0) target = $region25
  $region24: #{tebn_layer_forward.2} parent=0 // pred_region
    _
  $region25: #{tebn_layer_forward.2} parent=0 // pred_fallthru
    _
  // Predicated region
  $region26: #{tebn_layer_forward.2} parent=0 // pred_check
    _
  $region27: #{tebn_layer_forward.2} parent=0 // pred_check_branch
    %3213 = sbr.rel (0) target = $region29
  $region28: #{tebn_layer_forward.2} parent=0 // pred_region
    _
  $region29: #{tebn_layer_forward.2} parent=0 // pred_fallthru
    _
  // Predicated region
  $region30: #{tebn_layer_forward.2} parent=0 // pred_check
    _
  $region31: #{tebn_layer_forward.2} parent=0 // pred_check_branch
    %3215 = sbr.rel (0) target = $region33
  $region32: #{tebn_layer_forward.2} parent=0 // pred_region
    _
  $region33: #{tebn_layer_forward.2} parent=0 // pred_fallthru
    _
  // Predicated region
  $region34: #{tebn_layer_forward.2} parent=0 // pred_check
    _
  $region35: #{tebn_layer_forward.2} parent=0 // pred_check_branch
    %3217 = sbr.rel (0) target = $region37
  $region36: #{tebn_layer_forward.2} parent=0 // pred_region
    _
  $region37: #{tebn_layer_forward.2} parent=0 // pred_fallthru
    _

</llo_original>
